<compile_context>
chip_gen: v7x
topology: tpu7x:2x2x1
jax: 0.10.0
libtpu: 0.0.40
codegen_flags: <defaults>
</compile_context>

<pallas_src>
import functools
import math

import jax
import jax.numpy as jnp
from jax import lax
from jax.experimental import pallas as pl
from jax.experimental.pallas import tpu as pltpu


# y = a @ b.T without materializing b.T (contract dim 1 of both operands).
_CONTRACT_RHS_T = (((1,), (1,)), ((), ()))


def _layer_norm(y, gamma, beta, eps):
    mean = jnp.mean(y, axis=-1, keepdims=True)
    cent = y - mean
    var = jnp.mean(cent * cent, axis=-1, keepdims=True)
    return cent * lax.rsqrt(var + eps) * gamma + beta


def _encoder_block_kernel(
    x_ref,        # (S, Bblk, E)  activations (torch seq-first layout, batch block)
    w_in_ref,     # (3E, E)       fused QKV projection weight (torch in_proj_weight)
    b_in_ref,     # (1, 3E)
    w_out_ref,    # (E, E)        attention output projection weight
    b_out_ref,    # (1, E)
    g1_ref,       # (1, E)        LayerNorm1 gamma
    bt1_ref,      # (1, E)        LayerNorm1 beta
    w1_ref,       # (F, E)        FFN dense1 weight
    b1_ref,       # (1, F)
    w2_ref,       # (E, F)        FFN dense2 weight
    b2_ref,       # (1, E)
    g2_ref,       # (1, E)        LayerNorm2 gamma
    bt2_ref,      # (1, E)        LayerNorm2 beta
    o_ref,        # (S, Bblk, E)
    *,
    num_heads: int,
    head_dim: int,
    eps: float,
):
    f32 = jnp.float32
    seq, bblk, emb = x_ref.shape
    m = seq * bblk                       # batch folded into the matmul M dimension
    bh = bblk * num_heads

    x2 = x_ref[...].reshape(m, emb)      # row order = (s, b)

    # --- fused QKV projection on the whole slab: x @ W_in^T + b_in -------------
    qkv = lax.dot_general(x2, w_in_ref[...], _CONTRACT_RHS_T,
                          preferred_element_type=f32)
    qkv = qkv + b_in_ref[...].astype(f32)                      # (M, 3E)

    scale = 1.0 / math.sqrt(head_dim)

    def split_heads(cols):               # (M, Heads*Dh) -> (Bblk*H, S, Dh)
        t = cols.reshape(seq, bblk, num_heads, head_dim)
        return jnp.transpose(t, (1, 2, 0, 3)).reshape(bh, seq, head_dim)

    q = split_heads(qkv[:, :emb] * scale)
    k = split_heads(qkv[:, emb:2 * emb])
    v = split_heads(qkv[:, 2 * emb:])

    # --- attention: one batched matmul over (batch*head) -----------------------
    s = jnp.einsum("bqd,bkd->bqk", q, k, preferred_element_type=f32)     # (BH,S,S)
    s = s - jnp.max(s, axis=-1, keepdims=True)
    p = jnp.exp(s)
    denom = jnp.sum(p, axis=-1, keepdims=True)                           # (BH,S,1)
    ctx = jnp.einsum("bqk,bkd->bqd", p, v, preferred_element_type=f32)   # (BH,S,Dh)
    # Deferred softmax normalization: normalize S*Dh elements instead of S*S.
    # (approx=True would move the divide to the EUP but risks the 1e-4 tolerance.)
    ctx = ctx * pl.reciprocal(denom, approx=False)

    # back to (M, E) row layout (rows (s, b), heads concatenated along the lanes)
    ctx2 = jnp.transpose(ctx.reshape(bblk, num_heads, seq, head_dim),
                         (2, 0, 1, 3)).reshape(m, emb)

    # --- single attention output projection -------------------------------------
    attn = lax.dot_general(ctx2, w_out_ref[...], _CONTRACT_RHS_T,
                           preferred_element_type=f32)
    attn = attn + b_out_ref[...].astype(f32)

    # --- residual + LayerNorm1 (attnDropout is identity in inference mode) ------
    h1 = _layer_norm(attn + x2.astype(f32),
                     g1_ref[...].astype(f32), bt1_ref[...].astype(f32), eps)

    # --- feed-forward: relu(h1 @ W1^T + b1) @ W2^T + b2 (dropouts identity) ------
    ff = lax.dot_general(h1, w1_ref[...], _CONTRACT_RHS_T,
                         preferred_element_type=f32) + b1_ref[...].astype(f32)
    ff = jnp.maximum(ff, 0.0)
    ff = lax.dot_general(ff, w2_ref[...], _CONTRACT_RHS_T,
                         preferred_element_type=f32) + b2_ref[...].astype(f32)

    # --- residual + LayerNorm2 ---------------------------------------------------
    out = _layer_norm(ff + h1, g2_ref[...].astype(f32), bt2_ref[...].astype(f32), eps)
    o_ref[...] = out.reshape(seq, bblk, emb).astype(o_ref.dtype)


def _pick_batch_block(batch: int) -> int:
    """Fold as much batch as possible into the matmul M dimension.

    Keep >= 2 grid steps when the batch allows it (v7x has 2 TensorCores) while
    respecting the (8,128) rule on the second-to-last block dim: the block must
    either cover the full batch or be a multiple of 8 that divides it.
    """
    if batch % 16 == 0:
        return batch // 2
    return batch


def encoder_transformer_block(x, params, *, num_heads, eps=1e-5, batch_block=None):
    """Pallas forward of EncoderTransformerBlock (inference mode: dropout = identity).

    x: (seq, batch, embedding_dim)  -- torch MultiheadAttention batch_first=False layout.
    params (torch conventions): w_in (3E,E), b_in (3E,), w_out (E,E), b_out (E,),
      g1/beta1 (E,), w1 (F,E), b1 (F,), w2 (E,F), b2 (E,), g2/beta2 (E,).
    returns (seq, batch, embedding_dim)
    """
    seq, batch, emb = x.shape
    assert emb % num_heads == 0
    head_dim = emb // num_heads
    ff_dim = params["w1"].shape[0]

    bblk = _pick_batch_block(batch) if batch_block is None else batch_block
    assert batch % bblk == 0
    grid = (batch // bblk,)

    def row2d(v):
        return v.reshape(1, -1)

    weight_args = (
        params["w_in"], row2d(params["b_in"]),
        params["w_out"], row2d(params["b_out"]),
        row2d(params["g1"]), row2d(params["beta1"]),
        params["w1"], row2d(params["b1"]),
        params["w2"], row2d(params["b2"]),
        row2d(params["g2"]), row2d(params["beta2"]),
    )

    # Weights: full-array blocks with constant index_maps -> resident in VMEM across
    # all grid steps (no re-DMA per step).
    # TODO(synk): at production E/F on v7x (64 MiB VMEM), add pipeline_mode=
    # pl.Buffered(1) on these specs or stream w1/w2 over a K-tiled inner pipeline.
    def resident(shape):
        n = len(shape)
        return pl.BlockSpec(shape, lambda b, _n=n: (0,) * _n)

    in_specs = [pl.BlockSpec((seq, bblk, emb), lambda b: (0, b, 0))]
    in_specs += [resident(tuple(w.shape)) for w in weight_args]
    out_spec = pl.BlockSpec((seq, bblk, emb), lambda b: (0, b, 0))

    flops_per_batch = (
        2 * seq * emb * 3 * emb        # QKV projection
        + 4 * seq * seq * emb          # scores + context (all heads)
        + 2 * seq * emb * emb          # output projection
        + 4 * seq * emb * ff_dim       # FFN dense1 + dense2
    )
    bytes_weights = sum(int(w.size) * w.dtype.itemsize for w in weight_args)
    cost = pl.CostEstimate(
        flops=batch * flops_per_batch,
        transcendentals=batch * (num_heads * seq * seq + 2 * seq),
        bytes_accessed=2 * int(x.size) * x.dtype.itemsize + bytes_weights,
    )

    # Raise the scoped-VMEM limit only if the double-buffered resident weights plus
    # activation blocks would not fit the default limit (guards v7x's smaller VMEM
    # without touching the flag at small shapes).
    vmem_need = (2 * bytes_weights
                 + 4 * seq * bblk * emb * x.dtype.itemsize
                 + (4 << 20))
    compiler_kwargs = dict(dimension_semantics=("parallel",))
    if vmem_need > (16 << 20):
        compiler_kwargs["vmem_limit_bytes"] = min(vmem_need, 64 << 20)

    kernel = functools.partial(
        _encoder_block_kernel, num_heads=num_heads, head_dim=head_dim, eps=eps)

    return pl.pallas_call(
        kernel,
        out_shape=jax.ShapeDtypeStruct((seq, batch, emb), x.dtype),
        grid=grid,
        in_specs=in_specs,
        out_specs=out_spec,
        compiler_params=pltpu.CompilerParams(**compiler_kwargs),
        cost_estimate=cost,
    )(x, *weight_args)


# ------------------------- pure-JAX reference (same math) -------------------------
def _ref_encoder_block(x, params, *, num_heads, eps=1e-5):
    seq, batch, emb = x.shape
    head_dim = emb // num_heads

    qkv = x @ params["w_in"].T + params["b_in"]                # (S, B, 3E)
    q, k, v = jnp.split(qkv, 3, axis=-1)

    def split_heads(t):
        return t.reshape(seq, batch, num_heads, head_dim).transpose(1, 2, 0, 3)

    q, k, v = split_heads(q), split_heads(k), split_heads(v)   # (B, H, S, Dh)
    scores = jnp.einsum("bhqd,bhkd->bhqk", q, k) / math.sqrt(head_dim)
    probs = jax.nn.softmax(scores, axis=-1)
    ctx = jnp.einsum("bhqk,bhkd->bhqd", probs, v)
    ctx = ctx.transpose(2, 0, 1, 3).reshape(seq, batch, emb)
    attn = ctx @ params["w_out"].T + params["b_out"]

    def ln(y, g, b):
        m = y.mean(-1, keepdims=True)
        var = ((y - m) ** 2).mean(-1, keepdims=True)
        return (y - m) / jnp.sqrt(var + eps) * g + b

    h1 = ln(attn + x, params["g1"], params["beta1"])
    ff = jnp.maximum(h1 @ params["w1"].T + params["b1"], 0.0)
    ff = ff @ params["w2"].T + params["b2"]
    return ln(ff + h1, params["g2"], params["beta2"])


if __name__ == "__main__":
    embedding_dim = 128     # lane-dense (multiple of 128): unmasked full-lane stores
    head_num = 4
    ff_dim = 256
    seq, batch = 8, 2
    # dropout_rate / attn_dropout are identity in this deterministic forward.

    key = jax.random.PRNGKey(0)
    keys = jax.random.split(key, 9)
    bound_e = 1.0 / math.sqrt(embedding_dim)
    bound_f = 1.0 / math.sqrt(ff_dim)

    def u(k, shape, bound):
        return jax.random.uniform(k, shape, jnp.float32, minval=-bound, maxval=bound)

    params = {
        "w_in": u(keys[0], (3 * embedding_dim, embedding_dim), bound_e),
        "b_in": u(keys[1], (3 * embedding_dim,), bound_e),
        "w_out": u(keys[2], (embedding_dim, embedding_dim), bound_e),
        "b_out": u(keys[3], (embedding_dim,), bound_e),
        "g1": jnp.ones((embedding_dim,), jnp.float32),
        "beta1": jnp.zeros((embedding_dim,), jnp.float32),
        "w1": u(keys[4], (ff_dim, embedding_dim), bound_e),
        "b1": u(keys[5], (ff_dim,), bound_e),
        "w2": u(keys[6], (embedding_dim, ff_dim), bound_f),
        "b2": u(keys[7], (embedding_dim,), bound_f),
        "g2": jnp.ones((embedding_dim,), jnp.float32),
        "beta2": jnp.zeros((embedding_dim,), jnp.float32),
    }

    x = jax.random.normal(keys[8], (seq, batch, embedding_dim), jnp.float32)

    out = encoder_transformer_block(x, params, num_heads=head_num)
    out = jax.block_until_ready(out)

    ref = _ref_encoder_block(x, params, num_heads=head_num)
    assert out.shape == (seq, batch, embedding_dim)
    assert jnp.allclose(out, ref, atol=1e-4, rtol=1e-4), (
        f"mismatch vs reference, max abs diff = {jnp.max(jnp.abs(out - ref))}")

    print("KERNEL_OK")
</pallas_src>

<mosaic_0001>
module attributes {stable_mosaic.version = 11 : i64} {
  func.func @_encoder_block_kernel(%arg0: i32, %arg1: memref<8x2x128xf32, #tpu.memory_space<vmem>>, %arg2: memref<384x128xf32, #tpu.memory_space<vmem>>, %arg3: memref<1x384xf32, #tpu.memory_space<vmem>>, %arg4: memref<128x128xf32, #tpu.memory_space<vmem>>, %arg5: memref<1x128xf32, #tpu.memory_space<vmem>>, %arg6: memref<1x128xf32, #tpu.memory_space<vmem>>, %arg7: memref<1x128xf32, #tpu.memory_space<vmem>>, %arg8: memref<256x128xf32, #tpu.memory_space<vmem>>, %arg9: memref<1x256xf32, #tpu.memory_space<vmem>>, %arg10: memref<128x256xf32, #tpu.memory_space<vmem>>, %arg11: memref<1x128xf32, #tpu.memory_space<vmem>>, %arg12: memref<1x128xf32, #tpu.memory_space<vmem>>, %arg13: memref<1x128xf32, #tpu.memory_space<vmem>>, %arg14: memref<8x2x128xf32, #tpu.memory_space<vmem>>) attributes {dimension_semantics = [#tpu.dimension_semantics<parallel>], iteration_bounds = array<i64: 1>, scalar_prefetch = 0 : i64, scratch_operands = 0 : i64, tpu.core_type = #tpu.core_type<tc>, window_params = [{transform_indices = @transform_0, window_bounds = array<i64: 8, 2, 128>}, {pipeline_mode = #tpu.pipeline_mode<synchronous>, transform_indices = @transform_1, window_bounds = array<i64: 384, 128>}, {pipeline_mode = #tpu.pipeline_mode<synchronous>, transform_indices = @transform_2, window_bounds = array<i64: 1, 384>}, {pipeline_mode = #tpu.pipeline_mode<synchronous>, transform_indices = @transform_3, window_bounds = array<i64: 128, 128>}, {pipeline_mode = #tpu.pipeline_mode<synchronous>, transform_indices = @transform_4, window_bounds = array<i64: 1, 128>}, {pipeline_mode = #tpu.pipeline_mode<synchronous>, transform_indices = @transform_5, window_bounds = array<i64: 1, 128>}, {pipeline_mode = #tpu.pipeline_mode<synchronous>, transform_indices = @transform_6, window_bounds = array<i64: 1, 128>}, {pipeline_mode = #tpu.pipeline_mode<synchronous>, transform_indices = @transform_7, window_bounds = array<i64: 256, 128>}, {pipeline_mode = #tpu.pipeline_mode<synchronous>, transform_indices = @transform_8, window_bounds = array<i64: 1, 256>}, {pipeline_mode = #tpu.pipeline_mode<synchronous>, transform_indices = @transform_9, window_bounds = array<i64: 128, 256>}, {pipeline_mode = #tpu.pipeline_mode<synchronous>, transform_indices = @transform_10, window_bounds = array<i64: 1, 128>}, {pipeline_mode = #tpu.pipeline_mode<synchronous>, transform_indices = @transform_11, window_bounds = array<i64: 1, 128>}, {pipeline_mode = #tpu.pipeline_mode<synchronous>, transform_indices = @transform_12, window_bounds = array<i64: 1, 128>}, {transform_indices = @transform_13, window_bounds = array<i64: 8, 2, 128>}]} {
    %c0 = arith.constant 0 : index
    %c0_0 = arith.constant 0 : index
    %c0_1 = arith.constant 0 : index
    %0 = vector.load %arg1[%c0, %c0_0, %c0_1] : memref<8x2x128xf32, #tpu.memory_space<vmem>>, vector<8x2x128xf32>
    %1 = vector.shape_cast %0 : vector<8x2x128xf32> to vector<16x128xf32>
    %c0_2 = arith.constant 0 : index
    %c0_3 = arith.constant 0 : index
    %2 = vector.load %arg2[%c0_2, %c0_3] : memref<384x128xf32, #tpu.memory_space<vmem>>, vector<384x128xf32>
    %cst = arith.constant dense<0.000000e+00> : vector<16x384xf32>
    %3 = tpu.matmul %1, %2, %cst {dimension_numbers = #tpu.dot_dimension_numbers<[1], [1], [0], [0], [0, 0, 1, 0], [], []>} : vector<16x128xf32>, vector<384x128xf32>, vector<16x384xf32> -> vector<16x384xf32>
    %c0_4 = arith.constant 0 : index
    %c0_5 = arith.constant 0 : index
    %4 = vector.load %arg3[%c0_4, %c0_5] : memref<1x384xf32, #tpu.memory_space<vmem>>, vector<1x384xf32>
    %5 = vector.broadcast %4 : vector<1x384xf32> to vector<16x384xf32>
    %6 = arith.addf %3, %5 : vector<16x384xf32>
    %7 = vector.extract_strided_slice %6 {offsets = [0, 0], sizes = [16, 128], strides = [1, 1]} : vector<16x384xf32> to vector<16x128xf32>
    %cst_6 = arith.constant 0.176776692 : f32
    %8 = vector.broadcast %cst_6 : f32 to vector<16x128xf32>
    %9 = arith.mulf %7, %8 : vector<16x128xf32>
    %10 = vector.shape_cast %9 : vector<16x128xf32> to vector<8x2x4x32xf32>
    %11 = tpu.transpose %10, [1, 2, 0, 3] : vector<8x2x4x32xf32> -> vector<2x4x8x32xf32>
    %12 = vector.shape_cast %11 : vector<2x4x8x32xf32> to vector<8x8x32xf32>
    %13 = vector.extract_strided_slice %6 {offsets = [0, 128], sizes = [16, 128], strides = [1, 1]} : vector<16x384xf32> to vector<16x128xf32>
    %14 = vector.shape_cast %13 : vector<16x128xf32> to vector<8x2x4x32xf32>
    %15 = tpu.transpose %14, [1, 2, 0, 3] : vector<8x2x4x32xf32> -> vector<2x4x8x32xf32>
    %16 = vector.shape_cast %15 : vector<2x4x8x32xf32> to vector<8x8x32xf32>
    %17 = vector.extract_strided_slice %6 {offsets = [0, 256], sizes = [16, 128], strides = [1, 1]} : vector<16x384xf32> to vector<16x128xf32>
    %18 = vector.shape_cast %17 : vector<16x128xf32> to vector<8x2x4x32xf32>
    %19 = tpu.transpose %18, [1, 2, 0, 3] : vector<8x2x4x32xf32> -> vector<2x4x8x32xf32>
    %20 = vector.shape_cast %19 : vector<2x4x8x32xf32> to vector<8x8x32xf32>
    "tpu.trace_start"() <{level = 10 : i32, message = "bqd,bkd->bqk"}> : () -> ()
    %cst_7 = arith.constant dense<0.000000e+00> : vector<8x8x8xf32>
    %21 = tpu.matmul %12, %16, %cst_7 {dimension_numbers = #tpu.dot_dimension_numbers<[2], [2], [1], [1], [0, 0, 0, 1, 1, 1], [0], [0]>} : vector<8x8x32xf32>, vector<8x8x32xf32>, vector<8x8x8xf32> -> vector<8x8x8xf32>
    "tpu.trace_stop"() : () -> ()
    %cst_8 = arith.constant dense<0xFF800000> : vector<8x8xf32>
    %22 = vector.multi_reduction <maximumf>, %21, %cst_8 [2] : vector<8x8x8xf32> to vector<8x8xf32>
    %23 = vector.shape_cast %22 : vector<8x8xf32> to vector<8x8x1xf32>
    %24 = vector.broadcast %23 : vector<8x8x1xf32> to vector<8x8x8xf32>
    %25 = arith.subf %21, %24 : vector<8x8x8xf32>
    %26 = math.exp %25 : vector<8x8x8xf32>
    %cst_9 = arith.constant dense<0.000000e+00> : vector<8x8xf32>
    %27 = vector.multi_reduction <add>, %26, %cst_9 [2] : vector<8x8x8xf32> to vector<8x8xf32>
    %28 = vector.shape_cast %27 : vector<8x8xf32> to vector<8x8x1xf32>
    "tpu.trace_start"() <{level = 10 : i32, message = "bqk,bkd->bqd"}> : () -> ()
    %cst_10 = arith.constant dense<0.000000e+00> : vector<8x8x32xf32>
    %29 = tpu.matmul %26, %20, %cst_10 {dimension_numbers = #tpu.dot_dimension_numbers<[2], [1], [1], [2], [0, 0, 0, 1, 1, 2], [0], [0]>} : vector<8x8x8xf32>, vector<8x8x32xf32>, vector<8x8x32xf32> -> vector<8x8x32xf32>
    "tpu.trace_stop"() : () -> ()
    %30 = tpu.reciprocal %28 : vector<8x8x1xf32> -> vector<8x8x1xf32>
    %31 = vector.broadcast %30 : vector<8x8x1xf32> to vector<8x8x32xf32>
    %32 = arith.mulf %29, %31 : vector<8x8x32xf32>
    %33 = vector.shape_cast %32 : vector<8x8x32xf32> to vector<2x4x8x32xf32>
    %34 = tpu.transpose %33, [2, 0, 1, 3] : vector<2x4x8x32xf32> -> vector<8x2x4x32xf32>
    %35 = vector.shape_cast %34 : vector<8x2x4x32xf32> to vector<16x128xf32>
    %c0_11 = arith.constant 0 : index
    %c0_12 = arith.constant 0 : index
    %36 = vector.load %arg4[%c0_11, %c0_12] : memref<128x128xf32, #tpu.memory_space<vmem>>, vector<128x128xf32>
    %cst_13 = arith.constant dense<0.000000e+00> : vector<16x128xf32>
    %37 = tpu.matmul %35, %36, %cst_13 {dimension_numbers = #tpu.dot_dimension_numbers<[1], [1], [0], [0], [0, 0, 1, 0], [], []>} : vector<16x128xf32>, vector<128x128xf32>, vector<16x128xf32> -> vector<16x128xf32>
    %c0_14 = arith.constant 0 : index
    %c0_15 = arith.constant 0 : index
    %38 = vector.load %arg5[%c0_14, %c0_15] : memref<1x128xf32, #tpu.memory_space<vmem>>, vector<1x128xf32>
    %39 = vector.broadcast %38 : vector<1x128xf32> to vector<16x128xf32>
    %40 = arith.addf %37, %39 : vector<16x128xf32>
    %41 = arith.addf %40, %1 : vector<16x128xf32>
    %c0_16 = arith.constant 0 : index
    %c0_17 = arith.constant 0 : index
    %42 = vector.load %arg6[%c0_16, %c0_17] : memref<1x128xf32, #tpu.memory_space<vmem>>, vector<1x128xf32>
    %c0_18 = arith.constant 0 : index
    %c0_19 = arith.constant 0 : index
    %43 = vector.load %arg7[%c0_18, %c0_19] : memref<1x128xf32, #tpu.memory_space<vmem>>, vector<1x128xf32>
    %cst_20 = arith.constant dense<0.000000e+00> : vector<16xf32>
    %44 = vector.multi_reduction <add>, %41, %cst_20 [1] : vector<16x128xf32> to vector<16xf32>
    %45 = vector.shape_cast %44 : vector<16xf32> to vector<16x1xf32>
    %cst_21 = arith.constant 1.280000e+02 : f32
    %46 = vector.broadcast %cst_21 : f32 to vector<16x1xf32>
    %47 = arith.divf %45, %46 : vector<16x1xf32>
    %48 = vector.broadcast %47 : vector<16x1xf32> to vector<16x128xf32>
    %49 = arith.subf %41, %48 : vector<16x128xf32>
    %50 = arith.mulf %49, %49 : vector<16x128xf32>
    %cst_22 = arith.constant dense<0.000000e+00> : vector<16xf32>
    %51 = vector.multi_reduction <add>, %50, %cst_22 [1] : vector<16x128xf32> to vector<16xf32>
    %52 = vector.shape_cast %51 : vector<16xf32> to vector<16x1xf32>
    %cst_23 = arith.constant 1.280000e+02 : f32
    %53 = vector.broadcast %cst_23 : f32 to vector<16x1xf32>
    %54 = arith.divf %52, %53 : vector<16x1xf32>
    %cst_24 = arith.constant 9.99999974E-6 : f32
    %55 = vector.broadcast %cst_24 : f32 to vector<16x1xf32>
    %56 = arith.addf %54, %55 : vector<16x1xf32>
    %57 = math.rsqrt %56 : vector<16x1xf32>
    %58 = vector.broadcast %57 : vector<16x1xf32> to vector<16x128xf32>
    %59 = arith.mulf %49, %58 : vector<16x128xf32>
    %60 = vector.broadcast %42 : vector<1x128xf32> to vector<16x128xf32>
    %61 = arith.mulf %59, %60 : vector<16x128xf32>
    %62 = vector.broadcast %43 : vector<1x128xf32> to vector<16x128xf32>
    %63 = arith.addf %61, %62 : vector<16x128xf32>
    %c0_25 = arith.constant 0 : index
    %c0_26 = arith.constant 0 : index
    %64 = vector.load %arg8[%c0_25, %c0_26] : memref<256x128xf32, #tpu.memory_space<vmem>>, vector<256x128xf32>
    %cst_27 = arith.constant dense<0.000000e+00> : vector<16x256xf32>
    %65 = tpu.matmul %63, %64, %cst_27 {dimension_numbers = #tpu.dot_dimension_numbers<[1], [1], [0], [0], [0, 0, 1, 0], [], []>} : vector<16x128xf32>, vector<256x128xf32>, vector<16x256xf32> -> vector<16x256xf32>
    %c0_28 = arith.constant 0 : index
    %c0_29 = arith.constant 0 : index
    %66 = vector.load %arg9[%c0_28, %c0_29] : memref<1x256xf32, #tpu.memory_space<vmem>>, vector<1x256xf32>
    %67 = vector.broadcast %66 : vector<1x256xf32> to vector<16x256xf32>
    %68 = arith.addf %65, %67 : vector<16x256xf32>
    %cst_30 = arith.constant 0.000000e+00 : f32
    %69 = vector.broadcast %cst_30 : f32 to vector<16x256xf32>
    %70 = arith.maximumf %68, %69 : vector<16x256xf32>
    %c0_31 = arith.constant 0 : index
    %c0_32 = arith.constant 0 : index
    %71 = vector.load %arg10[%c0_31, %c0_32] : memref<128x256xf32, #tpu.memory_space<vmem>>, vector<128x256xf32>
    %cst_33 = arith.constant dense<0.000000e+00> : vector<16x128xf32>
    %72 = tpu.matmul %70, %71, %cst_33 {dimension_numbers = #tpu.dot_dimension_numbers<[1], [1], [0], [0], [0, 0, 1, 0], [], []>} : vector<16x256xf32>, vector<128x256xf32>, vector<16x128xf32> -> vector<16x128xf32>
    %c0_34 = arith.constant 0 : index
    %c0_35 = arith.constant 0 : index
    %73 = vector.load %arg11[%c0_34, %c0_35] : memref<1x128xf32, #tpu.memory_space<vmem>>, vector<1x128xf32>
    %74 = vector.broadcast %73 : vector<1x128xf32> to vector<16x128xf32>
    %75 = arith.addf %72, %74 : vector<16x128xf32>
    %76 = arith.addf %75, %63 : vector<16x128xf32>
    %c0_36 = arith.constant 0 : index
    %c0_37 = arith.constant 0 : index
    %77 = vector.load %arg12[%c0_36, %c0_37] : memref<1x128xf32, #tpu.memory_space<vmem>>, vector<1x128xf32>
    %c0_38 = arith.constant 0 : index
    %c0_39 = arith.constant 0 : index
    %78 = vector.load %arg13[%c0_38, %c0_39] : memref<1x128xf32, #tpu.memory_space<vmem>>, vector<1x128xf32>
    %cst_40 = arith.constant dense<0.000000e+00> : vector<16xf32>
    %79 = vector.multi_reduction <add>, %76, %cst_40 [1] : vector<16x128xf32> to vector<16xf32>
    %80 = vector.shape_cast %79 : vector<16xf32> to vector<16x1xf32>
    %cst_41 = arith.constant 1.280000e+02 : f32
    %81 = vector.broadcast %cst_41 : f32 to vector<16x1xf32>
    %82 = arith.divf %80, %81 : vector<16x1xf32>
    %83 = vector.broadcast %82 : vector<16x1xf32> to vector<16x128xf32>
    %84 = arith.subf %76, %83 : vector<16x128xf32>
    %85 = arith.mulf %84, %84 : vector<16x128xf32>
    %cst_42 = arith.constant dense<0.000000e+00> : vector<16xf32>
    %86 = vector.multi_reduction <add>, %85, %cst_42 [1] : vector<16x128xf32> to vector<16xf32>
    %87 = vector.shape_cast %86 : vector<16xf32> to vector<16x1xf32>
    %cst_43 = arith.constant 1.280000e+02 : f32
    %88 = vector.broadcast %cst_43 : f32 to vector<16x1xf32>
    %89 = arith.divf %87, %88 : vector<16x1xf32>
    %cst_44 = arith.constant 9.99999974E-6 : f32
    %90 = vector.broadcast %cst_44 : f32 to vector<16x1xf32>
    %91 = arith.addf %89, %90 : vector<16x1xf32>
    %92 = math.rsqrt %91 : vector<16x1xf32>
    %93 = vector.broadcast %92 : vector<16x1xf32> to vector<16x128xf32>
    %94 = arith.mulf %84, %93 : vector<16x128xf32>
    %95 = vector.broadcast %77 : vector<1x128xf32> to vector<16x128xf32>
    %96 = arith.mulf %94, %95 : vector<16x128xf32>
    %97 = vector.broadcast %78 : vector<1x128xf32> to vector<16x128xf32>
    %98 = arith.addf %96, %97 : vector<16x128xf32>
    %99 = vector.shape_cast %98 : vector<16x128xf32> to vector<8x2x128xf32>
    %c0_45 = arith.constant 0 : index
    %c0_46 = arith.constant 0 : index
    %c0_47 = arith.constant 0 : index
    %100 = vector.load %arg14[%c0_45, %c0_46, %c0_47] : memref<8x2x128xf32, #tpu.memory_space<vmem>>, vector<8x2x128xf32>
    tpu.vector_store %arg14[%c0_45, %c0_46, %c0_47], %99 {strides = array<i32>} : memref<8x2x128xf32, #tpu.memory_space<vmem>>, vector<8x2x128xf32>,
    return
  }
  func.func @transform_0(%arg0: i32) -> (i32, i32, i32) {
    %c0_i32 = arith.constant 0 : i32
    %c0_i32_0 = arith.constant 0 : i32
    %c0_i32_1 = arith.constant 0 : i32
    return %c0_i32, %arg0, %c0_i32_0 : i32, i32, i32
  }
  func.func @transform_1(%arg0: i32) -> (i32, i32) {
    %c0_i32 = arith.constant 0 : i32
    %c0_i32_0 = arith.constant 0 : i32
    %c0_i32_1 = arith.constant 0 : i32
    return %c0_i32, %c0_i32_0 : i32, i32
  }
  func.func @transform_2(%arg0: i32) -> (i32, i32) {
    %c0_i32 = arith.constant 0 : i32
    %c0_i32_0 = arith.constant 0 : i32
    %c0_i32_1 = arith.constant 0 : i32
    return %c0_i32, %c0_i32_0 : i32, i32
  }
  func.func @transform_3(%arg0: i32) -> (i32, i32) {
    %c0_i32 = arith.constant 0 : i32
    %c0_i32_0 = arith.constant 0 : i32
    %c0_i32_1 = arith.constant 0 : i32
    return %c0_i32, %c0_i32_0 : i32, i32
  }
  func.func @transform_4(%arg0: i32) -> (i32, i32) {
    %c0_i32 = arith.constant 0 : i32
    %c0_i32_0 = arith.constant 0 : i32
    %c0_i32_1 = arith.constant 0 : i32
    return %c0_i32, %c0_i32_0 : i32, i32
  }
  func.func @transform_5(%arg0: i32) -> (i32, i32) {
    %c0_i32 = arith.constant 0 : i32
    %c0_i32_0 = arith.constant 0 : i32
    %c0_i32_1 = arith.constant 0 : i32
    return %c0_i32, %c0_i32_0 : i32, i32
  }
  func.func @transform_6(%arg0: i32) -> (i32, i32) {
    %c0_i32 = arith.constant 0 : i32
    %c0_i32_0 = arith.constant 0 : i32
    %c0_i32_1 = arith.constant 0 : i32
    return %c0_i32, %c0_i32_0 : i32, i32
  }
  func.func @transform_7(%arg0: i32) -> (i32, i32) {
    %c0_i32 = arith.constant 0 : i32
    %c0_i32_0 = arith.constant 0 : i32
    %c0_i32_1 = arith.constant 0 : i32
    return %c0_i32, %c0_i32_0 : i32, i32
  }
  func.func @transform_8(%arg0: i32) -> (i32, i32) {
    %c0_i32 = arith.constant 0 : i32
    %c0_i32_0 = arith.constant 0 : i32
    %c0_i32_1 = arith.constant 0 : i32
    return %c0_i32, %c0_i32_0 : i32, i32
  }
  func.func @transform_9(%arg0: i32) -> (i32, i32) {
    %c0_i32 = arith.constant 0 : i32
    %c0_i32_0 = arith.constant 0 : i32
    %c0_i32_1 = arith.constant 0 : i32
    return %c0_i32, %c0_i32_0 : i32, i32
  }
  func.func @transform_10(%arg0: i32) -> (i32, i32) {
    %c0_i32 = arith.constant 0 : i32
    %c0_i32_0 = arith.constant 0 : i32
    %c0_i32_1 = arith.constant 0 : i32
    return %c0_i32, %c0_i32_0 : i32, i32
  }
  func.func @transform_11(%arg0: i32) -> (i32, i32) {
    %c0_i32 = arith.constant 0 : i32
    %c0_i32_0 = arith.constant 0 : i32
    %c0_i32_1 = arith.constant 0 : i32
    return %c0_i32, %c0_i32_0 : i32, i32
  }
  func.func @transform_12(%arg0: i32) -> (i32, i32) {
    %c0_i32 = arith.constant 0 : i32
    %c0_i32_0 = arith.constant 0 : i32
    %c0_i32_1 = arith.constant 0 : i32
    return %c0_i32, %c0_i32_0 : i32, i32
  }
  func.func @transform_13(%arg0: i32) -> (i32, i32, i32) {
    %c0_i32 = arith.constant 0 : i32
    %c0_i32_0 = arith.constant 0 : i32
    %c0_i32_1 = arith.constant 0 : i32
    return %c0_i32, %arg0, %c0_i32_0 : i32, i32, i32
  }
}

</mosaic_0001>

<llo_original>
// kernel: tpu_custom_call.1
$region0: #{tpu_custom_call.1}
  #allocation0 [shape = 'u32[]', space=smem, size = 0x4, offset = 0x4, fixed_abs, tag = 'smem constant byte address 0x4 - core index']
  #allocation1 [shape = 'u32[144,128]{1,0:T(1,128)}', space=vmem, size = 0x12000, scoped, tag = 'internal scratch']
  %s0 = inlined_call_operand.hbm [shape: f32[8,2,128], index: 0, kind: input, shape index: {}]
  %s1 = inlined_call_operand.hbm [shape: f32[384,128], index: 1, kind: input, shape index: {}]
  %s2 = inlined_call_operand.vmem [shape: f32[1,384], index: 2, kind: input, shape index: {}]
  %s3 = inlined_call_operand.hbm [shape: f32[128,128], index: 3, kind: input, shape index: {}]
  %s4 = inlined_call_operand.vmem [shape: f32[1,128], index: 4, kind: input, shape index: {}]
  %s5 = inlined_call_operand.vmem [shape: f32[1,128], index: 5, kind: input, shape index: {}]
  %s6 = inlined_call_operand.vmem [shape: f32[1,128], index: 6, kind: input, shape index: {}]
  %s7 = inlined_call_operand.hbm [shape: f32[256,128], index: 7, kind: input, shape index: {}]
  %s8 = inlined_call_operand.vmem [shape: f32[1,256], index: 8, kind: input, shape index: {}]
  %s9 = inlined_call_operand.hbm [shape: f32[128,256], index: 9, kind: input, shape index: {}]
  %s10 = inlined_call_operand.vmem [shape: f32[1,128], index: 10, kind: input, shape index: {}]
  %s11 = inlined_call_operand.vmem [shape: f32[1,128], index: 11, kind: input, shape index: {}]
  %s12 = inlined_call_operand.vmem [shape: f32[1,128], index: 12, kind: input, shape index: {}]
  %s13 = inlined_call_operand.hbm [shape: f32[8,2,128], index: 13, kind: output, shape index: {}]
  %s14 = sld [smem:[#allocation0]]
  $region82: #{tpu_custom_call.1} parent=0
    _
  %s16 = ssub.s32 1, %s14
  %s17 = scalar_select 0, %s16, %s14
  $region1: #{tpu_custom_call.1} parent=0
    #allocation2 [shape = 'u8[8192]{0}', space=vmem, size = 0x2000, scoped, tag = 'input window, operand 0, single buffered']
    #allocation3 [shape = 's32[1]{0}', space=sflag, size = 0x4, scoped, tag = 'scoped memory for tpu_custom_call.1']
    #allocation4 [shape = 's32[1]{0}', space=sflag, size = 0x4, scoped, tag = 'scoped memory for tpu_custom_call.1']
    #allocation5 [shape = 'u8[196608]{0}', space=vmem, size = 0x30000, scoped, tag = 'input window, operand 1, single buffered']
    #allocation6 [shape = 's32[1]{0}', space=sflag, size = 0x4, scoped, tag = 'scoped memory for tpu_custom_call.1']
    #allocation7 [shape = 'u8[65536]{0}', space=vmem, size = 0x10000, scoped, tag = 'input window, operand 3, single buffered']
    #allocation8 [shape = 'u8[131072]{0}', space=vmem, size = 0x20000, scoped, tag = 'input window, operand 7, single buffered']
    #allocation9 [shape = 's32[1]{0}', space=sflag, size = 0x4, scoped, tag = 'scoped memory for tpu_custom_call.1']
    #allocation10 [shape = 'u8[131072]{0}', space=vmem, size = 0x20000, scoped, tag = 'input window, operand 9, single buffered']
    #allocation11 [shape = 'u8[8192]{0}', space=vmem, size = 0x2000, scoped, tag = 'output window, operand 0, single buffered']
    %18 = vsyncpa [#allocation3], 0
    %19 = vsyncpa [#allocation6], 0
    %20 = vsyncpa [#allocation9], 0
    %21 = vsyncpa [#allocation4], 0
    // Predicated region
    $region2: #{tpu_custom_call.1} parent=1 // pred_check
      _
    $region3: #{tpu_custom_call.1} parent=1 // pred_check_branch
      %23 = sbr.rel (0) target = $region5
    $region4: #{tpu_custom_call.1} parent=1 // pred_region
      %s25 = ssub.s32 256, 256
      %26 = vsyncadd [#allocation3], %s25
      %s27 = sshll.u32 [#allocation2], 4
      %s28 = int_to_ptr.vmem [resolvable:$true] %s27
      %33 = dma.hbm_to_vmem [thread:$0]  %s0, 256, %s28, [#allocation3], 32, 32, 2
    $region5: #{tpu_custom_call.1} parent=1 // pred_fallthru
      _
    // Predicated region
    $region6: #{tpu_custom_call.1} parent=1 // pred_check
      _
    $region7: #{tpu_custom_call.1} parent=1 // pred_check_branch
      %35 = sbr.rel (0) target = $region9
    $region8: #{tpu_custom_call.1} parent=1 // pred_region
      %s37 = ssub.s32 6144, 6144
      %38 = vsyncadd [#allocation6], %s37
      %s39 = sshll.u32 [#allocation5], 4
      %s40 = int_to_ptr.vmem [resolvable:$true] %s39
      %45 = dma.hbm_to_vmem [thread:$0]  %s1, 6144, %s40, [#allocation6], 128, 128, 8
    $region9: #{tpu_custom_call.1} parent=1 // pred_fallthru
      _
    // Predicated region
    $region10: #{tpu_custom_call.1} parent=1 // pred_check
      _
    $region11: #{tpu_custom_call.1} parent=1 // pred_check_branch
      %47 = sbr.rel (0) target = $region13
    $region12: #{tpu_custom_call.1} parent=1 // pred_region
      _
    $region13: #{tpu_custom_call.1} parent=1 // pred_fallthru
      _
    // Predicated region
    $region14: #{tpu_custom_call.1} parent=1 // pred_check
      _
    $region15: #{tpu_custom_call.1} parent=1 // pred_check_branch
      %49 = sbr.rel (0) target = $region17
    $region16: #{tpu_custom_call.1} parent=1 // pred_region
      %s51 = ssub.s32 2048, 2048
      %52 = vsyncadd [#allocation6], %s51
      %s53 = sshll.u32 [#allocation7], 4
      %s54 = int_to_ptr.vmem [resolvable:$true] %s53
      %59 = dma.hbm_to_vmem [thread:$0]  %s3, 2048, %s54, [#allocation6], 128, 128, 8
    $region17: #{tpu_custom_call.1} parent=1 // pred_fallthru
      _
    // Predicated region
    $region18: #{tpu_custom_call.1} parent=1 // pred_check
      _
    $region19: #{tpu_custom_call.1} parent=1 // pred_check_branch
      %61 = sbr.rel (0) target = $region21
    $region20: #{tpu_custom_call.1} parent=1 // pred_region
      _
    $region21: #{tpu_custom_call.1} parent=1 // pred_fallthru
      _
    // Predicated region
    $region22: #{tpu_custom_call.1} parent=1 // pred_check
      _
    $region23: #{tpu_custom_call.1} parent=1 // pred_check_branch
      %63 = sbr.rel (0) target = $region25
    $region24: #{tpu_custom_call.1} parent=1 // pred_region
      _
    $region25: #{tpu_custom_call.1} parent=1 // pred_fallthru
      _
    // Predicated region
    $region26: #{tpu_custom_call.1} parent=1 // pred_check
      _
    $region27: #{tpu_custom_call.1} parent=1 // pred_check_branch
      %65 = sbr.rel (0) target = $region29
    $region28: #{tpu_custom_call.1} parent=1 // pred_region
      _
    $region29: #{tpu_custom_call.1} parent=1 // pred_fallthru
      _
    // Predicated region
    $region30: #{tpu_custom_call.1} parent=1 // pred_check
      _
    $region31: #{tpu_custom_call.1} parent=1 // pred_check_branch
      %67 = sbr.rel (0) target = $region33
    $region32: #{tpu_custom_call.1} parent=1 // pred_region
      %s69 = ssub.s32 4096, 4096
      %70 = vsyncadd [#allocation9], %s69
      %s71 = sshll.u32 [#allocation8], 4
      %s72 = int_to_ptr.vmem [resolvable:$true] %s71
      %77 = dma.hbm_to_vmem [thread:$0]  %s7, 4096, %s72, [#allocation9], 128, 128, 8
    $region33: #{tpu_custom_call.1} parent=1 // pred_fallthru
      _
    // Predicated region
    $region34: #{tpu_custom_call.1} parent=1 // pred_check
      _
    $region35: #{tpu_custom_call.1} parent=1 // pred_check_branch
      %79 = sbr.rel (0) target = $region37
    $region36: #{tpu_custom_call.1} parent=1 // pred_region
      _
    $region37: #{tpu_custom_call.1} parent=1 // pred_fallthru
      _
    // Predicated region
    $region38: #{tpu_custom_call.1} parent=1 // pred_check
      _
    $region39: #{tpu_custom_call.1} parent=1 // pred_check_branch
      %81 = sbr.rel (0) target = $region41
    $region40: #{tpu_custom_call.1} parent=1 // pred_region
      %s83 = ssub.s32 4096, 4096
      %84 = vsyncadd [#allocation9], %s83
      %s85 = sshll.u32 [#allocation10], 4
      %s86 = int_to_ptr.vmem [resolvable:$true] %s85
      %91 = dma.hbm_to_vmem [thread:$0]  %s9, 4096, %s86, [#allocation9], 256, 256, 16
    $region41: #{tpu_custom_call.1} parent=1 // pred_fallthru
      _
    // Predicated region
    $region42: #{tpu_custom_call.1} parent=1 // pred_check
      _
    $region43: #{tpu_custom_call.1} parent=1 // pred_check_branch
      %93 = sbr.rel (0) target = $region45
    $region44: #{tpu_custom_call.1} parent=1 // pred_region
      _
    $region45: #{tpu_custom_call.1} parent=1 // pred_fallthru
      _
    // Predicated region
    $region46: #{tpu_custom_call.1} parent=1 // pred_check
      _
    $region47: #{tpu_custom_call.1} parent=1 // pred_check_branch
      %95 = sbr.rel (0) target = $region49
    $region48: #{tpu_custom_call.1} parent=1 // pred_region
      _
    $region49: #{tpu_custom_call.1} parent=1 // pred_fallthru
      _
    // Predicated region
    $region50: #{tpu_custom_call.1} parent=1 // pred_check
      _
    $region51: #{tpu_custom_call.1} parent=1 // pred_check_branch
      %97 = sbr.rel (0) target = $region53
    $region52: #{tpu_custom_call.1} parent=1 // pred_region
      _
    $region53: #{tpu_custom_call.1} parent=1 // pred_fallthru
      _
    // Predicated region
    $region54: #{tpu_custom_call.1} parent=1 // pred_check
      _
    $region55: #{tpu_custom_call.1} parent=1 // pred_check_branch
      %99 = sbr.rel (0) target = $region57
    $region56: #{tpu_custom_call.1} parent=1 // pred_region
      %100 = dma.done [#allocation3], 256
    $region57: #{tpu_custom_call.1} parent=1 // pred_fallthru
      _
    // Predicated region
    $region58: #{tpu_custom_call.1} parent=1 // pred_check
      _
    $region59: #{tpu_custom_call.1} parent=1 // pred_check_branch
      %102 = sbr.rel (0) target = $region61
    $region60: #{tpu_custom_call.1} parent=1 // pred_region
      %103 = dma.done [#allocation6], 6144
    $region61: #{tpu_custom_call.1} parent=1 // pred_fallthru
      _
    // Predicated region
    $region62: #{tpu_custom_call.1} parent=1 // pred_check
      _
    $region63: #{tpu_custom_call.1} parent=1 // pred_check_branch
      %105 = sbr.rel (0) target = $region65
    $region64: #{tpu_custom_call.1} parent=1 // pred_region
      %106 = dma.done [#allocation6], 2048
    $region65: #{tpu_custom_call.1} parent=1 // pred_fallthru
      _
    // Predicated region
    $region66: #{tpu_custom_call.1} parent=1 // pred_check
      _
    $region67: #{tpu_custom_call.1} parent=1 // pred_check_branch
      %108 = sbr.rel (0) target = $region69
    $region68: #{tpu_custom_call.1} parent=1 // pred_region
      %109 = dma.done [#allocation9], 4096
    $region69: #{tpu_custom_call.1} parent=1 // pred_fallthru
      _
    // Predicated region
    $region70: #{tpu_custom_call.1} parent=1 // pred_check
      _
    $region71: #{tpu_custom_call.1} parent=1 // pred_check_branch
      %111 = sbr.rel (0) target = $region73
    $region72: #{tpu_custom_call.1} parent=1 // pred_region
      %112 = dma.done [#allocation9], 4096
    $region73: #{tpu_custom_call.1} parent=1 // pred_fallthru
      _
    %v113 = vld [vmem:[#allocation2] sm:$0x3]
    %v114 = vld [vmem:[#allocation2 + $0x2] sm:$0x3]
    %v115 = vld [vmem:[#allocation2 + $0x4] sm:$0x3]
    %v116 = vld [vmem:[#allocation2 + $0x6] sm:$0x3]
    %v117 = vld [vmem:[#allocation2 + $0x8] sm:$0x3]
    %v118 = vld [vmem:[#allocation2 + $0xa] sm:$0x3]
    %v119 = vld [vmem:[#allocation2 + $0xc] sm:$0x3]
    %v120 = vld [vmem:[#allocation2 + $0xe] sm:$0x3]
    %v121 = vld [vmem:[#allocation5] sm:$0xff]
    %v122 = vld [vmem:[#allocation5 + $0x8] sm:$0xff]
    %v123 = vld [vmem:[#allocation5 + $0x10] sm:$0xff]
    %v124 = vld [vmem:[#allocation5 + $0x18] sm:$0xff]
    %v125 = vld [vmem:[#allocation5 + $0x20] sm:$0xff]
    %v126 = vld [vmem:[#allocation5 + $0x28] sm:$0xff]
    %v127 = vld [vmem:[#allocation5 + $0x30] sm:$0xff]
    %v128 = vld [vmem:[#allocation5 + $0x38] sm:$0xff]
    %v129 = vld [vmem:[#allocation5 + $0x40] sm:$0xff]
    %v130 = vld [vmem:[#allocation5 + $0x48] sm:$0xff]
    %v131 = vld [vmem:[#allocation5 + $0x50] sm:$0xff]
    %v132 = vld [vmem:[#allocation5 + $0x58] sm:$0xff]
    %v133 = vld [vmem:[#allocation5 + $0x60] sm:$0xff]
    %v134 = vld [vmem:[#allocation5 + $0x68] sm:$0xff]
    %v135 = vld [vmem:[#allocation5 + $0x70] sm:$0xff]
    %v136 = vld [vmem:[#allocation5 + $0x78] sm:$0xff]
    %v137 = vld [vmem:[#allocation5 + $0x80] sm:$0xff]
    %v138 = vld [vmem:[#allocation5 + $0x88] sm:$0xff]
    %v139 = vld [vmem:[#allocation5 + $0x90] sm:$0xff]
    %v140 = vld [vmem:[#allocation5 + $0x98] sm:$0xff]
    %v141 = vld [vmem:[#allocation5 + $0xa0] sm:$0xff]
    %v142 = vld [vmem:[#allocation5 + $0xa8] sm:$0xff]
    %v143 = vld [vmem:[#allocation5 + $0xb0] sm:$0xff]
    %v144 = vld [vmem:[#allocation5 + $0xb8] sm:$0xff]
    %v145 = vld [vmem:[#allocation5 + $0xc0] sm:$0xff]
    %v146 = vld [vmem:[#allocation5 + $0xc8] sm:$0xff]
    %v147 = vld [vmem:[#allocation5 + $0xd0] sm:$0xff]
    %v148 = vld [vmem:[#allocation5 + $0xd8] sm:$0xff]
    %v149 = vld [vmem:[#allocation5 + $0xe0] sm:$0xff]
    %v150 = vld [vmem:[#allocation5 + $0xe8] sm:$0xff]
    %v151 = vld [vmem:[#allocation5 + $0xf0] sm:$0xff]
    %v152 = vld [vmem:[#allocation5 + $0xf8] sm:$0xff]
    %v153 = vld [vmem:[#allocation5 + $0x100] sm:$0xff]
    %v154 = vld [vmem:[#allocation5 + $0x108] sm:$0xff]
    %v155 = vld [vmem:[#allocation5 + $0x110] sm:$0xff]
    %v156 = vld [vmem:[#allocation5 + $0x118] sm:$0xff]
    %v157 = vld [vmem:[#allocation5 + $0x120] sm:$0xff]
    %v158 = vld [vmem:[#allocation5 + $0x128] sm:$0xff]
    %v159 = vld [vmem:[#allocation5 + $0x130] sm:$0xff]
    %v160 = vld [vmem:[#allocation5 + $0x138] sm:$0xff]
    %v161 = vld [vmem:[#allocation5 + $0x140] sm:$0xff]
    %v162 = vld [vmem:[#allocation5 + $0x148] sm:$0xff]
    %v163 = vld [vmem:[#allocation5 + $0x150] sm:$0xff]
    %v164 = vld [vmem:[#allocation5 + $0x158] sm:$0xff]
    %v165 = vld [vmem:[#allocation5 + $0x160] sm:$0xff]
    %v166 = vld [vmem:[#allocation5 + $0x168] sm:$0xff]
    %v167 = vld [vmem:[#allocation5 + $0x170] sm:$0xff]
    %v168 = vld [vmem:[#allocation5 + $0x178] sm:$0xff]
    %v169 = vld [vmem:[%s2] sm:$0x7]
    %v171 = vlaneseq
    %v172 = vshrl.u32 %v171, 7
    %v173 = vsub.s32 0, %v172
    %v174 = vrot.slane %v169, %v173
    %v175 = vlaneseq
    %v176 = vshrl.u32 %v175, 7
    %v177 = vsub.s32 1, %v176
    %v178 = vrot.slane %v169, %v177
    %v179 = vlaneseq
    %v180 = vshrl.u32 %v179, 7
    %v181 = vsub.s32 2, %v180
    %v182 = vrot.slane %v169, %v181
    %v194 = vcombine.low %v113, %v114
    %v195 = vcombine.low %v115, %v116
    %v197 = vunpack.c.l.s4 1983009808
    %v198 = vunpack.c.0.s8 %v197
    %v199 = vlaneseq
    %v200 = vshrl.u32 %v199, 7
    %v201 = vsub.s32 %v198, %v200
    %v202 = vrot.slane %v194, %v201
    %v204 = vunpack.c.l.s4 1983009808
    %v205 = vunpack.c.0.s8 %v204
    %v206 = vlaneseq
    %v207 = vshrl.u32 %v206, 7
    %v208 = vsub.s32 %v205, %v207
    %v209 = vrot.slane %v195, %v208
    %v210 = vcombine.low %v202, %v209
    %v211 = vcombine.low %v117, %v118
    %v212 = vcombine.low %v119, %v120
    %v214 = vunpack.c.l.s4 1983009808
    %v215 = vunpack.c.0.s8 %v214
    %v216 = vlaneseq
    %v217 = vshrl.u32 %v216, 7
    %v218 = vsub.s32 %v215, %v217
    %v219 = vrot.slane %v211, %v218
    %v221 = vunpack.c.l.s4 1983009808
    %v222 = vunpack.c.0.s8 %v221
    %v223 = vlaneseq
    %v224 = vshrl.u32 %v223, 7
    %v225 = vsub.s32 %v222, %v224
    %v226 = vrot.slane %v212, %v225
    %v227 = vcombine.low %v219, %v226
    %230 = vmatprep.subr.mxu0 0.0
    %231 = vmatpush1.xpose.msra.mxu0 %v121
    %232 = vmatprep.subr.mxu0 0.0
    %233 = vmatpush1.xpose.msra.mxu0 %v122
    %234 = vmatprep.subr.mxu0 0.0
    %235 = vmatpush1.xpose.msra.mxu0 %v123
    %236 = vmatprep.subr.mxu0 0.0
    %237 = vmatpush1.xpose.msra.mxu0 %v124
    %238 = vmatprep.subr.mxu0 0.0
    %239 = vmatpush1.xpose.msra.mxu0 %v125
    %240 = vmatprep.subr.mxu0 0.0
    %241 = vmatpush1.xpose.msra.mxu0 %v126
    %242 = vmatprep.subr.mxu0 0.0
    %243 = vmatpush1.xpose.msra.mxu0 %v127
    %244 = vmatprep.subr.mxu0 0.0
    %245 = vmatpush1.xpose.msra.mxu0 %v128
    %246 = vmatprep.subr.mxu0 0.0
    %247 = vmatpush1.xpose.msra.mxu0 %v129
    %248 = vmatprep.subr.mxu0 0.0
    %249 = vmatpush1.xpose.msra.mxu0 %v130
    %250 = vmatprep.subr.mxu0 0.0
    %251 = vmatpush1.xpose.msra.mxu0 %v131
    %252 = vmatprep.subr.mxu0 0.0
    %253 = vmatpush1.xpose.msra.mxu0 %v132
    %254 = vmatprep.subr.mxu0 0.0
    %255 = vmatpush1.xpose.msra.mxu0 %v133
    %256 = vmatprep.subr.mxu0 0.0
    %257 = vmatpush1.xpose.msra.mxu0 %v134
    %258 = vmatprep.subr.mxu0 0.0
    %259 = vmatpush1.xpose.msra.mxu0 %v135
    %260 = vmatprep.subr.mxu0 0.0
    %261 = vmatpush1.xpose.msra.mxu0 %v136
    %262 = vmatprep.subr.mxu0 0.0
    %263 = vmatpush1.xpose.msra.mxu0 %v137
    %264 = vmatprep.subr.mxu0 0.0
    %265 = vmatpush1.xpose.msra.mxu0 %v138
    %266 = vmatprep.subr.mxu0 0.0
    %267 = vmatpush1.xpose.msra.mxu0 %v139
    %268 = vmatprep.subr.mxu0 0.0
    %269 = vmatpush1.xpose.msra.mxu0 %v140
    %270 = vmatprep.subr.mxu0 0.0
    %271 = vmatpush1.xpose.msra.mxu0 %v141
    %272 = vmatprep.subr.mxu0 0.0
    %273 = vmatpush1.xpose.msra.mxu0 %v142
    %274 = vmatprep.subr.mxu0 0.0
    %275 = vmatpush1.xpose.msra.mxu0 %v143
    %276 = vmatprep.subr.mxu0 0.0
    %277 = vmatpush1.xpose.msra.mxu0 %v144
    %278 = vmatprep.subr.mxu0 0.0
    %279 = vmatpush1.xpose.msra.mxu0 %v145
    %280 = vmatprep.subr.mxu0 0.0
    %281 = vmatpush1.xpose.msra.mxu0 %v146
    %282 = vmatprep.subr.mxu0 0.0
    %283 = vmatpush1.xpose.msra.mxu0 %v147
    %284 = vmatprep.subr.mxu0 0.0
    %285 = vmatpush1.xpose.msra.mxu0 %v148
    %286 = vmatprep.subr.mxu0 0.0
    %287 = vmatpush1.xpose.msra.mxu0 %v149
    %288 = vmatprep.subr.mxu0 0.0
    %289 = vmatpush1.xpose.msra.mxu0 %v150
    %290 = vmatprep.subr.mxu0 0.0
    %291 = vmatpush1.xpose.msra.mxu0 %v151
    %292 = vmatprep.subr.mxu0 0.0
    %293 = vmatpush1.xpose.msra.mxu0 %v152
    %294 = vmatprep.mubr.f32.mxu0 0.0
    %295 = vmatmul.mubr.f32.gmra.mrb[0].mxu0 %v210
    %v296 = vpop.f32.mrb[0].mxu0
    %v297 = vadd.f32 %v174, %v296
    %v298 = vpop.f32.mrb[0].mxu0
    %v299 = vadd.f32 %v178, %v298
    %300 = vmatprep.mubr.f32.mxu0 0.0
    %301 = vmatmul.mubr.f32.gmra.mrb[0].mxu0 %v227
    %v302 = vpop.f32.mrb[0].mxu0
    %v303 = vadd.f32 %v174, %v302
    %v304 = vpop.f32.mrb[0].mxu0
    %v305 = vadd.f32 %v178, %v304
    %306 = vdwg.mxu0
    %307 = vmatprep.subr.mxu0 0.0
    %308 = vmatpush1.xpose.msra.mxu0 %v153
    %309 = vmatprep.subr.mxu0 0.0
    %310 = vmatpush1.xpose.msra.mxu0 %v154
    %311 = vmatprep.subr.mxu0 0.0
    %312 = vmatpush1.xpose.msra.mxu0 %v155
    %313 = vmatprep.subr.mxu0 0.0
    %314 = vmatpush1.xpose.msra.mxu0 %v156
    %315 = vmatprep.subr.mxu0 0.0
    %316 = vmatpush1.xpose.msra.mxu0 %v157
    %317 = vmatprep.subr.mxu0 0.0
    %318 = vmatpush1.xpose.msra.mxu0 %v158
    %319 = vmatprep.subr.mxu0 0.0
    %320 = vmatpush1.xpose.msra.mxu0 %v159
    %321 = vmatprep.subr.mxu0 0.0
    %322 = vmatpush1.xpose.msra.mxu0 %v160
    %323 = vmatprep.subr.mxu0 0.0
    %324 = vmatpush1.xpose.msra.mxu0 %v161
    %325 = vmatprep.subr.mxu0 0.0
    %326 = vmatpush1.xpose.msra.mxu0 %v162
    %327 = vmatprep.subr.mxu0 0.0
    %328 = vmatpush1.xpose.msra.mxu0 %v163
    %329 = vmatprep.subr.mxu0 0.0
    %330 = vmatpush1.xpose.msra.mxu0 %v164
    %331 = vmatprep.subr.mxu0 0.0
    %332 = vmatpush1.xpose.msra.mxu0 %v165
    %333 = vmatprep.subr.mxu0 0.0
    %334 = vmatpush1.xpose.msra.mxu0 %v166
    %335 = vmatprep.subr.mxu0 0.0
    %336 = vmatpush1.xpose.msra.mxu0 %v167
    %337 = vmatprep.subr.mxu0 0.0
    %338 = vmatpush1.xpose.msra.mxu0 %v168
    %339 = vmatprep.subr.mxu0 0.0
    %340 = vmatpush1.xpose.msra.mxu0 0.0
    %341 = vmatprep.subr.mxu0 0.0
    %342 = vmatpush1.xpose.msra.mxu0 0.0
    %343 = vmatprep.subr.mxu0 0.0
    %344 = vmatpush1.xpose.msra.mxu0 0.0
    %345 = vmatprep.subr.mxu0 0.0
    %346 = vmatpush1.xpose.msra.mxu0 0.0
    %347 = vmatprep.subr.mxu0 0.0
    %348 = vmatpush1.xpose.msra.mxu0 0.0
    %349 = vmatprep.subr.mxu0 0.0
    %350 = vmatpush1.xpose.msra.mxu0 0.0
    %351 = vmatprep.subr.mxu0 0.0
    %352 = vmatpush1.xpose.msra.mxu0 0.0
    %353 = vmatprep.subr.mxu0 0.0
    %354 = vmatpush1.xpose.msra.mxu0 0.0
    %355 = vmatprep.subr.mxu0 0.0
    %356 = vmatpush1.xpose.msra.mxu0 0.0
    %357 = vmatprep.subr.mxu0 0.0
    %358 = vmatpush1.xpose.msra.mxu0 0.0
    %359 = vmatprep.subr.mxu0 0.0
    %360 = vmatpush1.xpose.msra.mxu0 0.0
    %361 = vmatprep.subr.mxu0 0.0
    %362 = vmatpush1.xpose.msra.mxu0 0.0
    %363 = vmatprep.subr.mxu0 0.0
    %364 = vmatpush1.xpose.msra.mxu0 0.0
    %365 = vmatprep.subr.mxu0 0.0
    %366 = vmatpush1.xpose.msra.mxu0 0.0
    %367 = vmatprep.subr.mxu0 0.0
    %368 = vmatpush1.xpose.msra.mxu0 0.0
    %369 = vmatprep.subr.mxu0 0.0
    %370 = vmatpush1.xpose.msra.mxu0 0.0
    %371 = vmatprep.mubr.f32.mxu0 0.0
    %372 = vmatmul.mubr.f32.gmra.mrb[0].mxu0 %v210
    %v373 = vpop.f32.mrb[0].mxu0
    %v374 = vadd.f32 %v182, %v373
    %v375 = vpop.f32.mrb[0].mxu0
    %376 = vmatprep.mubr.f32.mxu0 0.0
    %377 = vmatmul.mubr.f32.gmra.mrb[0].mxu0 %v227
    %v378 = vpop.f32.mrb[0].mxu0
    %v379 = vadd.f32 %v182, %v378
    %v380 = vpop.f32.mrb[0].mxu0
    %381 = vdwg.mxu0
    %v382 = vmul.f32 %v297, 0.17677669
    %v383 = vmul.f32 %v303, 0.17677669
    %386 = vrot.lane.b32.xlu0 %v382, 96
    %v387 = vpop.permute.xlu0 %386
    %388 = vrot.lane.b32.xlu0 %v383, 96
    %v389 = vpop.permute.xlu0 %388
    %392 = vrot.lane.b32.xlu0 %v382, 64
    %v393 = vpop.permute.xlu0 %392
    %394 = vrot.lane.b32.xlu0 %v383, 64
    %v395 = vpop.permute.xlu0 %394
    %398 = vrot.lane.b32.xlu0 %v382, 32
    %v399 = vpop.permute.xlu0 %398
    %400 = vrot.lane.b32.xlu0 %v383, 32
    %v401 = vpop.permute.xlu0 %400
    %v404 = vcombine.low %v382, %v393
    %v405 = vcombine.high %v382, %v393
    %v407 = vunpack.c.l.s4 1983009808
    %v408 = vunpack.c.0.s8 %v407
    %v409 = vlaneseq
    %v410 = vshrl.u32 %v409, 7
    %v411 = vsub.s32 %v408, %v410
    %v412 = vrot.slane %v404, %v411
    %v414 = vunpack.c.l.s4 1983009808
    %v415 = vunpack.c.0.s8 %v414
    %v416 = vlaneseq
    %v417 = vshrl.u32 %v416, 7
    %v418 = vsub.s32 %v415, %v417
    %v419 = vrot.slane %v405, %v418
    %v420 = vcombine.low %v387, %v399
    %v421 = vcombine.high %v387, %v399
    %v423 = vunpack.c.l.s4 1983009808
    %v424 = vunpack.c.0.s8 %v423
    %v425 = vlaneseq
    %v426 = vshrl.u32 %v425, 7
    %v427 = vsub.s32 %v424, %v426
    %v428 = vrot.slane %v420, %v427
    %v430 = vunpack.c.l.s4 1983009808
    %v431 = vunpack.c.0.s8 %v430
    %v432 = vlaneseq
    %v433 = vshrl.u32 %v432, 7
    %v434 = vsub.s32 %v431, %v433
    %v435 = vrot.slane %v421, %v434
    %v436 = vcombine.low %v412, %v428
    %v437 = vcombine.high %v412, %v428
    %v439 = vunpack.c.l.s4 1934713408
    %v440 = vunpack.c.0.s8 %v439
    %v441 = vlaneseq
    %v442 = vshrl.u32 %v441, 7
    %v443 = vsub.s32 %v440, %v442
    %v444 = vrot.slane %v436, %v443
    %v446 = vunpack.c.l.s4 1934713408
    %v447 = vunpack.c.0.s8 %v446
    %v448 = vlaneseq
    %v449 = vshrl.u32 %v448, 7
    %v450 = vsub.s32 %v447, %v449
    %v451 = vrot.slane %v437, %v450
    %v452 = vcombine.low %v419, %v435
    %v453 = vcombine.high %v419, %v435
    %v455 = vunpack.c.l.s4 1934713408
    %v456 = vunpack.c.0.s8 %v455
    %v457 = vlaneseq
    %v458 = vshrl.u32 %v457, 7
    %v459 = vsub.s32 %v456, %v458
    %v460 = vrot.slane %v452, %v459
    %v462 = vunpack.c.l.s4 1934713408
    %v463 = vunpack.c.0.s8 %v462
    %v464 = vlaneseq
    %v465 = vshrl.u32 %v464, 7
    %v466 = vsub.s32 %v463, %v465
    %v467 = vrot.slane %v453, %v466
    %v468 = vcombine.high %v444, 0.0
    %v469 = vcombine.high %v451, 0.0
    %v470 = vcombine.high %v460, 0.0
    %v471 = vcombine.high %v467, 0.0
    %v472 = vcombine.low %v383, %v395
    %v473 = vcombine.high %v383, %v395
    %v475 = vunpack.c.l.s4 1983009808
    %v476 = vunpack.c.0.s8 %v475
    %v477 = vlaneseq
    %v478 = vshrl.u32 %v477, 7
    %v479 = vsub.s32 %v476, %v478
    %v480 = vrot.slane %v472, %v479
    %v482 = vunpack.c.l.s4 1983009808
    %v483 = vunpack.c.0.s8 %v482
    %v484 = vlaneseq
    %v485 = vshrl.u32 %v484, 7
    %v486 = vsub.s32 %v483, %v485
    %v487 = vrot.slane %v473, %v486
    %v488 = vcombine.low %v389, %v401
    %v489 = vcombine.high %v389, %v401
    %v491 = vunpack.c.l.s4 1983009808
    %v492 = vunpack.c.0.s8 %v491
    %v493 = vlaneseq
    %v494 = vshrl.u32 %v493, 7
    %v495 = vsub.s32 %v492, %v494
    %v496 = vrot.slane %v488, %v495
    %v498 = vunpack.c.l.s4 1983009808
    %v499 = vunpack.c.0.s8 %v498
    %v500 = vlaneseq
    %v501 = vshrl.u32 %v500, 7
    %v502 = vsub.s32 %v499, %v501
    %v503 = vrot.slane %v489, %v502
    %v504 = vcombine.low %v480, %v496
    %v505 = vcombine.high %v480, %v496
    %v507 = vunpack.c.l.s4 1934713408
    %v508 = vunpack.c.0.s8 %v507
    %v509 = vlaneseq
    %v510 = vshrl.u32 %v509, 7
    %v511 = vsub.s32 %v508, %v510
    %v512 = vrot.slane %v504, %v511
    %v514 = vunpack.c.l.s4 1934713408
    %v515 = vunpack.c.0.s8 %v514
    %v516 = vlaneseq
    %v517 = vshrl.u32 %v516, 7
    %v518 = vsub.s32 %v515, %v517
    %v519 = vrot.slane %v505, %v518
    %v520 = vcombine.low %v487, %v503
    %v521 = vcombine.high %v487, %v503
    %v523 = vunpack.c.l.s4 1934713408
    %v524 = vunpack.c.0.s8 %v523
    %v525 = vlaneseq
    %v526 = vshrl.u32 %v525, 7
    %v527 = vsub.s32 %v524, %v526
    %v528 = vrot.slane %v520, %v527
    %v530 = vunpack.c.l.s4 1934713408
    %v531 = vunpack.c.0.s8 %v530
    %v532 = vlaneseq
    %v533 = vshrl.u32 %v532, 7
    %v534 = vsub.s32 %v531, %v533
    %v535 = vrot.slane %v521, %v534
    %v536 = vcombine.high %v512, 0.0
    %v537 = vcombine.high %v519, 0.0
    %v538 = vcombine.high %v528, 0.0
    %v539 = vcombine.high %v535, 0.0
    %v540 = vcombine.low %v444, %v460
    %v542 = vunpack.c.l.s4 1983009808
    %v543 = vunpack.c.0.s8 %v542
    %v544 = vlaneseq
    %v545 = vshrl.u32 %v544, 7
    %v546 = vsub.s32 %v543, %v545
    %v547 = vrot.slane %v540, %v546
    %v548 = vcombine.low %v451, %v467
    %v550 = vunpack.c.l.s4 1983009808
    %v551 = vunpack.c.0.s8 %v550
    %v552 = vlaneseq
    %v553 = vshrl.u32 %v552, 7
    %v554 = vsub.s32 %v551, %v553
    %v555 = vrot.slane %v548, %v554
    %v556 = vcombine.low %v512, %v528
    %v558 = vunpack.c.l.s4 1983009808
    %v559 = vunpack.c.0.s8 %v558
    %v560 = vlaneseq
    %v561 = vshrl.u32 %v560, 7
    %v562 = vsub.s32 %v559, %v561
    %v563 = vrot.slane %v556, %v562
    %v564 = vcombine.low %v519, %v535
    %v566 = vunpack.c.l.s4 1983009808
    %v567 = vunpack.c.0.s8 %v566
    %v568 = vlaneseq
    %v569 = vshrl.u32 %v568, 7
    %v570 = vsub.s32 %v567, %v569
    %v571 = vrot.slane %v564, %v570
    %v572 = vcombine.low %v547, %v555
    %v573 = vcombine.high %v547, %v555
    %v575 = vunpack.c.l.s4 1934713408
    %v576 = vunpack.c.0.s8 %v575
    %v577 = vlaneseq
    %v578 = vshrl.u32 %v577, 7
    %v579 = vsub.s32 %v576, %v578
    %v580 = vrot.slane %v572, %v579
    %v582 = vunpack.c.l.s4 1934713408
    %v583 = vunpack.c.0.s8 %v582
    %v584 = vlaneseq
    %v585 = vshrl.u32 %v584, 7
    %v586 = vsub.s32 %v583, %v585
    %v587 = vrot.slane %v573, %v586
    %v588 = vcombine.low %v563, %v571
    %v589 = vcombine.high %v563, %v571
    %v591 = vunpack.c.l.s4 1934713408
    %v592 = vunpack.c.0.s8 %v591
    %v593 = vlaneseq
    %v594 = vshrl.u32 %v593, 7
    %v595 = vsub.s32 %v592, %v594
    %v596 = vrot.slane %v588, %v595
    %v598 = vunpack.c.l.s4 1934713408
    %v599 = vunpack.c.0.s8 %v598
    %v600 = vlaneseq
    %v601 = vshrl.u32 %v600, 7
    %v602 = vsub.s32 %v599, %v601
    %v603 = vrot.slane %v589, %v602
    %v604 = vcombine.low %v580, %v596
    %v605 = vcombine.high %v580, %v596
    %v606 = vcombine.low %v587, %v603
    %v607 = vcombine.high %v587, %v603
    %v608 = vcombine.low %v468, %v470
    %v610 = vunpack.c.l.s4 1983009808
    %v611 = vunpack.c.0.s8 %v610
    %v612 = vlaneseq
    %v613 = vshrl.u32 %v612, 7
    %v614 = vsub.s32 %v611, %v613
    %v615 = vrot.slane %v608, %v614
    %v616 = vcombine.low %v469, %v471
    %v618 = vunpack.c.l.s4 1983009808
    %v619 = vunpack.c.0.s8 %v618
    %v620 = vlaneseq
    %v621 = vshrl.u32 %v620, 7
    %v622 = vsub.s32 %v619, %v621
    %v623 = vrot.slane %v616, %v622
    %v624 = vcombine.low %v536, %v538
    %v626 = vunpack.c.l.s4 1983009808
    %v627 = vunpack.c.0.s8 %v626
    %v628 = vlaneseq
    %v629 = vshrl.u32 %v628, 7
    %v630 = vsub.s32 %v627, %v629
    %v631 = vrot.slane %v624, %v630
    %v632 = vcombine.low %v537, %v539
    %v634 = vunpack.c.l.s4 1983009808
    %v635 = vunpack.c.0.s8 %v634
    %v636 = vlaneseq
    %v637 = vshrl.u32 %v636, 7
    %v638 = vsub.s32 %v635, %v637
    %v639 = vrot.slane %v632, %v638
    %v640 = vcombine.low %v615, %v623
    %v641 = vcombine.high %v615, %v623
    %v643 = vunpack.c.l.s4 1934713408
    %v644 = vunpack.c.0.s8 %v643
    %v645 = vlaneseq
    %v646 = vshrl.u32 %v645, 7
    %v647 = vsub.s32 %v644, %v646
    %v648 = vrot.slane %v640, %v647
    %v650 = vunpack.c.l.s4 1934713408
    %v651 = vunpack.c.0.s8 %v650
    %v652 = vlaneseq
    %v653 = vshrl.u32 %v652, 7
    %v654 = vsub.s32 %v651, %v653
    %v655 = vrot.slane %v641, %v654
    %v656 = vcombine.low %v631, %v639
    %v657 = vcombine.high %v631, %v639
    %v659 = vunpack.c.l.s4 1934713408
    %v660 = vunpack.c.0.s8 %v659
    %v661 = vlaneseq
    %v662 = vshrl.u32 %v661, 7
    %v663 = vsub.s32 %v660, %v662
    %v664 = vrot.slane %v656, %v663
    %v666 = vunpack.c.l.s4 1934713408
    %v667 = vunpack.c.0.s8 %v666
    %v668 = vlaneseq
    %v669 = vshrl.u32 %v668, 7
    %v670 = vsub.s32 %v667, %v669
    %v671 = vrot.slane %v657, %v670
    %v672 = vcombine.low %v648, %v664
    %v673 = vcombine.high %v648, %v664
    %v674 = vcombine.low %v655, %v671
    %v675 = vcombine.high %v655, %v671
    %678 = vrot.lane.b32.xlu0 %v299, 96
    %v679 = vpop.permute.xlu0 %678
    %680 = vrot.lane.b32.xlu0 %v305, 96
    %v681 = vpop.permute.xlu0 %680
    %684 = vrot.lane.b32.xlu0 %v299, 64
    %v685 = vpop.permute.xlu0 %684
    %686 = vrot.lane.b32.xlu0 %v305, 64
    %v687 = vpop.permute.xlu0 %686
    %690 = vrot.lane.b32.xlu0 %v299, 32
    %v691 = vpop.permute.xlu0 %690
    %692 = vrot.lane.b32.xlu0 %v305, 32
    %v693 = vpop.permute.xlu0 %692
    %v696 = vcombine.low %v299, %v685
    %v697 = vcombine.high %v299, %v685
    %v699 = vunpack.c.l.s4 1983009808
    %v700 = vunpack.c.0.s8 %v699
    %v701 = vlaneseq
    %v702 = vshrl.u32 %v701, 7
    %v703 = vsub.s32 %v700, %v702
    %v704 = vrot.slane %v696, %v703
    %v706 = vunpack.c.l.s4 1983009808
    %v707 = vunpack.c.0.s8 %v706
    %v708 = vlaneseq
    %v709 = vshrl.u32 %v708, 7
    %v710 = vsub.s32 %v707, %v709
    %v711 = vrot.slane %v697, %v710
    %v712 = vcombine.low %v679, %v691
    %v713 = vcombine.high %v679, %v691
    %v715 = vunpack.c.l.s4 1983009808
    %v716 = vunpack.c.0.s8 %v715
    %v717 = vlaneseq
    %v718 = vshrl.u32 %v717, 7
    %v719 = vsub.s32 %v716, %v718
    %v720 = vrot.slane %v712, %v719
    %v722 = vunpack.c.l.s4 1983009808
    %v723 = vunpack.c.0.s8 %v722
    %v724 = vlaneseq
    %v725 = vshrl.u32 %v724, 7
    %v726 = vsub.s32 %v723, %v725
    %v727 = vrot.slane %v713, %v726
    %v728 = vcombine.low %v704, %v720
    %v729 = vcombine.high %v704, %v720
    %v731 = vunpack.c.l.s4 1934713408
    %v732 = vunpack.c.0.s8 %v731
    %v733 = vlaneseq
    %v734 = vshrl.u32 %v733, 7
    %v735 = vsub.s32 %v732, %v734
    %v736 = vrot.slane %v728, %v735
    %v738 = vunpack.c.l.s4 1934713408
    %v739 = vunpack.c.0.s8 %v738
    %v740 = vlaneseq
    %v741 = vshrl.u32 %v740, 7
    %v742 = vsub.s32 %v739, %v741
    %v743 = vrot.slane %v729, %v742
    %v744 = vcombine.low %v711, %v727
    %v745 = vcombine.high %v711, %v727
    %v747 = vunpack.c.l.s4 1934713408
    %v748 = vunpack.c.0.s8 %v747
    %v749 = vlaneseq
    %v750 = vshrl.u32 %v749, 7
    %v751 = vsub.s32 %v748, %v750
    %v752 = vrot.slane %v744, %v751
    %v754 = vunpack.c.l.s4 1934713408
    %v755 = vunpack.c.0.s8 %v754
    %v756 = vlaneseq
    %v757 = vshrl.u32 %v756, 7
    %v758 = vsub.s32 %v755, %v757
    %v759 = vrot.slane %v745, %v758
    %v760 = vcombine.high %v736, 0.0
    %v761 = vcombine.high %v743, 0.0
    %v762 = vcombine.high %v752, 0.0
    %v763 = vcombine.high %v759, 0.0
    %v764 = vcombine.low %v305, %v687
    %v765 = vcombine.high %v305, %v687
    %v767 = vunpack.c.l.s4 1983009808
    %v768 = vunpack.c.0.s8 %v767
    %v769 = vlaneseq
    %v770 = vshrl.u32 %v769, 7
    %v771 = vsub.s32 %v768, %v770
    %v772 = vrot.slane %v764, %v771
    %v774 = vunpack.c.l.s4 1983009808
    %v775 = vunpack.c.0.s8 %v774
    %v776 = vlaneseq
    %v777 = vshrl.u32 %v776, 7
    %v778 = vsub.s32 %v775, %v777
    %v779 = vrot.slane %v765, %v778
    %v780 = vcombine.low %v681, %v693
    %v781 = vcombine.high %v681, %v693
    %v783 = vunpack.c.l.s4 1983009808
    %v784 = vunpack.c.0.s8 %v783
    %v785 = vlaneseq
    %v786 = vshrl.u32 %v785, 7
    %v787 = vsub.s32 %v784, %v786
    %v788 = vrot.slane %v780, %v787
    %v790 = vunpack.c.l.s4 1983009808
    %v791 = vunpack.c.0.s8 %v790
    %v792 = vlaneseq
    %v793 = vshrl.u32 %v792, 7
    %v794 = vsub.s32 %v791, %v793
    %v795 = vrot.slane %v781, %v794
    %v796 = vcombine.low %v772, %v788
    %v797 = vcombine.high %v772, %v788
    %v799 = vunpack.c.l.s4 1934713408
    %v800 = vunpack.c.0.s8 %v799
    %v801 = vlaneseq
    %v802 = vshrl.u32 %v801, 7
    %v803 = vsub.s32 %v800, %v802
    %v804 = vrot.slane %v796, %v803
    %v806 = vunpack.c.l.s4 1934713408
    %v807 = vunpack.c.0.s8 %v806
    %v808 = vlaneseq
    %v809 = vshrl.u32 %v808, 7
    %v810 = vsub.s32 %v807, %v809
    %v811 = vrot.slane %v797, %v810
    %v812 = vcombine.low %v779, %v795
    %v813 = vcombine.high %v779, %v795
    %v815 = vunpack.c.l.s4 1934713408
    %v816 = vunpack.c.0.s8 %v815
    %v817 = vlaneseq
    %v818 = vshrl.u32 %v817, 7
    %v819 = vsub.s32 %v816, %v818
    %v820 = vrot.slane %v812, %v819
    %v822 = vunpack.c.l.s4 1934713408
    %v823 = vunpack.c.0.s8 %v822
    %v824 = vlaneseq
    %v825 = vshrl.u32 %v824, 7
    %v826 = vsub.s32 %v823, %v825
    %v827 = vrot.slane %v813, %v826
    %v828 = vcombine.high %v804, 0.0
    %v829 = vcombine.high %v811, 0.0
    %v830 = vcombine.high %v820, 0.0
    %v831 = vcombine.high %v827, 0.0
    %v832 = vcombine.low %v736, %v752
    %v834 = vunpack.c.l.s4 1983009808
    %v835 = vunpack.c.0.s8 %v834
    %v836 = vlaneseq
    %v837 = vshrl.u32 %v836, 7
    %v838 = vsub.s32 %v835, %v837
    %v839 = vrot.slane %v832, %v838
    %v840 = vcombine.low %v743, %v759
    %v842 = vunpack.c.l.s4 1983009808
    %v843 = vunpack.c.0.s8 %v842
    %v844 = vlaneseq
    %v845 = vshrl.u32 %v844, 7
    %v846 = vsub.s32 %v843, %v845
    %v847 = vrot.slane %v840, %v846
    %v848 = vcombine.low %v804, %v820
    %v850 = vunpack.c.l.s4 1983009808
    %v851 = vunpack.c.0.s8 %v850
    %v852 = vlaneseq
    %v853 = vshrl.u32 %v852, 7
    %v854 = vsub.s32 %v851, %v853
    %v855 = vrot.slane %v848, %v854
    %v856 = vcombine.low %v811, %v827
    %v858 = vunpack.c.l.s4 1983009808
    %v859 = vunpack.c.0.s8 %v858
    %v860 = vlaneseq
    %v861 = vshrl.u32 %v860, 7
    %v862 = vsub.s32 %v859, %v861
    %v863 = vrot.slane %v856, %v862
    %v864 = vcombine.low %v839, %v847
    %v865 = vcombine.high %v839, %v847
    %v867 = vunpack.c.l.s4 1934713408
    %v868 = vunpack.c.0.s8 %v867
    %v869 = vlaneseq
    %v870 = vshrl.u32 %v869, 7
    %v871 = vsub.s32 %v868, %v870
    %v872 = vrot.slane %v864, %v871
    %v874 = vunpack.c.l.s4 1934713408
    %v875 = vunpack.c.0.s8 %v874
    %v876 = vlaneseq
    %v877 = vshrl.u32 %v876, 7
    %v878 = vsub.s32 %v875, %v877
    %v879 = vrot.slane %v865, %v878
    %v880 = vcombine.low %v855, %v863
    %v881 = vcombine.high %v855, %v863
    %v883 = vunpack.c.l.s4 1934713408
    %v884 = vunpack.c.0.s8 %v883
    %v885 = vlaneseq
    %v886 = vshrl.u32 %v885, 7
    %v887 = vsub.s32 %v884, %v886
    %v888 = vrot.slane %v880, %v887
    %v890 = vunpack.c.l.s4 1934713408
    %v891 = vunpack.c.0.s8 %v890
    %v892 = vlaneseq
    %v893 = vshrl.u32 %v892, 7
    %v894 = vsub.s32 %v891, %v893
    %v895 = vrot.slane %v881, %v894
    %v896 = vcombine.low %v872, %v888
    %v897 = vcombine.high %v872, %v888
    %v898 = vcombine.low %v879, %v895
    %v899 = vcombine.high %v879, %v895
    %v900 = vcombine.low %v760, %v762
    %v902 = vunpack.c.l.s4 1983009808
    %v903 = vunpack.c.0.s8 %v902
    %v904 = vlaneseq
    %v905 = vshrl.u32 %v904, 7
    %v906 = vsub.s32 %v903, %v905
    %v907 = vrot.slane %v900, %v906
    %v908 = vcombine.low %v761, %v763
    %v910 = vunpack.c.l.s4 1983009808
    %v911 = vunpack.c.0.s8 %v910
    %v912 = vlaneseq
    %v913 = vshrl.u32 %v912, 7
    %v914 = vsub.s32 %v911, %v913
    %v915 = vrot.slane %v908, %v914
    %v916 = vcombine.low %v828, %v830
    %v918 = vunpack.c.l.s4 1983009808
    %v919 = vunpack.c.0.s8 %v918
    %v920 = vlaneseq
    %v921 = vshrl.u32 %v920, 7
    %v922 = vsub.s32 %v919, %v921
    %v923 = vrot.slane %v916, %v922
    %v924 = vcombine.low %v829, %v831
    %v926 = vunpack.c.l.s4 1983009808
    %v927 = vunpack.c.0.s8 %v926
    %v928 = vlaneseq
    %v929 = vshrl.u32 %v928, 7
    %v930 = vsub.s32 %v927, %v929
    %v931 = vrot.slane %v924, %v930
    %v932 = vcombine.low %v907, %v915
    %v933 = vcombine.high %v907, %v915
    %v935 = vunpack.c.l.s4 1934713408
    %v936 = vunpack.c.0.s8 %v935
    %v937 = vlaneseq
    %v938 = vshrl.u32 %v937, 7
    %v939 = vsub.s32 %v936, %v938
    %v940 = vrot.slane %v932, %v939
    %v942 = vunpack.c.l.s4 1934713408
    %v943 = vunpack.c.0.s8 %v942
    %v944 = vlaneseq
    %v945 = vshrl.u32 %v944, 7
    %v946 = vsub.s32 %v943, %v945
    %v947 = vrot.slane %v933, %v946
    %v948 = vcombine.low %v923, %v931
    %v949 = vcombine.high %v923, %v931
    %v951 = vunpack.c.l.s4 1934713408
    %v952 = vunpack.c.0.s8 %v951
    %v953 = vlaneseq
    %v954 = vshrl.u32 %v953, 7
    %v955 = vsub.s32 %v952, %v954
    %v956 = vrot.slane %v948, %v955
    %v958 = vunpack.c.l.s4 1934713408
    %v959 = vunpack.c.0.s8 %v958
    %v960 = vlaneseq
    %v961 = vshrl.u32 %v960, 7
    %v962 = vsub.s32 %v959, %v961
    %v963 = vrot.slane %v949, %v962
    %v964 = vcombine.low %v940, %v956
    %v965 = vcombine.high %v940, %v956
    %v966 = vcombine.low %v947, %v963
    %v967 = vcombine.high %v947, %v963
    %970 = vrot.lane.b32.xlu0 %v374, 96
    %v971 = vpop.permute.xlu0 %970
    %972 = vrot.lane.b32.xlu0 %v379, 96
    %v973 = vpop.permute.xlu0 %972
    %976 = vrot.lane.b32.xlu0 %v374, 64
    %v977 = vpop.permute.xlu0 %976
    %978 = vrot.lane.b32.xlu0 %v379, 64
    %v979 = vpop.permute.xlu0 %978
    %982 = vrot.lane.b32.xlu0 %v374, 32
    %v983 = vpop.permute.xlu0 %982
    %984 = vrot.lane.b32.xlu0 %v379, 32
    %v985 = vpop.permute.xlu0 %984
    %v988 = vcombine.low %v374, %v977
    %v989 = vcombine.high %v374, %v977
    %v991 = vunpack.c.l.s4 1983009808
    %v992 = vunpack.c.0.s8 %v991
    %v993 = vlaneseq
    %v994 = vshrl.u32 %v993, 7
    %v995 = vsub.s32 %v992, %v994
    %v996 = vrot.slane %v988, %v995
    %v998 = vunpack.c.l.s4 1983009808
    %v999 = vunpack.c.0.s8 %v998
    %v1000 = vlaneseq
    %v1001 = vshrl.u32 %v1000, 7
    %v1002 = vsub.s32 %v999, %v1001
    %v1003 = vrot.slane %v989, %v1002
    %v1004 = vcombine.low %v971, %v983
    %v1005 = vcombine.high %v971, %v983
    %v1007 = vunpack.c.l.s4 1983009808
    %v1008 = vunpack.c.0.s8 %v1007
    %v1009 = vlaneseq
    %v1010 = vshrl.u32 %v1009, 7
    %v1011 = vsub.s32 %v1008, %v1010
    %v1012 = vrot.slane %v1004, %v1011
    %v1014 = vunpack.c.l.s4 1983009808
    %v1015 = vunpack.c.0.s8 %v1014
    %v1016 = vlaneseq
    %v1017 = vshrl.u32 %v1016, 7
    %v1018 = vsub.s32 %v1015, %v1017
    %v1019 = vrot.slane %v1005, %v1018
    %v1020 = vcombine.low %v996, %v1012
    %v1021 = vcombine.high %v996, %v1012
    %v1023 = vunpack.c.l.s4 1934713408
    %v1024 = vunpack.c.0.s8 %v1023
    %v1025 = vlaneseq
    %v1026 = vshrl.u32 %v1025, 7
    %v1027 = vsub.s32 %v1024, %v1026
    %v1028 = vrot.slane %v1020, %v1027
    %v1030 = vunpack.c.l.s4 1934713408
    %v1031 = vunpack.c.0.s8 %v1030
    %v1032 = vlaneseq
    %v1033 = vshrl.u32 %v1032, 7
    %v1034 = vsub.s32 %v1031, %v1033
    %v1035 = vrot.slane %v1021, %v1034
    %v1036 = vcombine.low %v1003, %v1019
    %v1037 = vcombine.high %v1003, %v1019
    %v1039 = vunpack.c.l.s4 1934713408
    %v1040 = vunpack.c.0.s8 %v1039
    %v1041 = vlaneseq
    %v1042 = vshrl.u32 %v1041, 7
    %v1043 = vsub.s32 %v1040, %v1042
    %v1044 = vrot.slane %v1036, %v1043
    %v1046 = vunpack.c.l.s4 1934713408
    %v1047 = vunpack.c.0.s8 %v1046
    %v1048 = vlaneseq
    %v1049 = vshrl.u32 %v1048, 7
    %v1050 = vsub.s32 %v1047, %v1049
    %v1051 = vrot.slane %v1037, %v1050
    %v1052 = vcombine.high %v1028, 0.0
    %v1053 = vcombine.high %v1035, 0.0
    %v1054 = vcombine.high %v1044, 0.0
    %v1055 = vcombine.high %v1051, 0.0
    %v1056 = vcombine.low %v379, %v979
    %v1057 = vcombine.high %v379, %v979
    %v1059 = vunpack.c.l.s4 1983009808
    %v1060 = vunpack.c.0.s8 %v1059
    %v1061 = vlaneseq
    %v1062 = vshrl.u32 %v1061, 7
    %v1063 = vsub.s32 %v1060, %v1062
    %v1064 = vrot.slane %v1056, %v1063
    %v1066 = vunpack.c.l.s4 1983009808
    %v1067 = vunpack.c.0.s8 %v1066
    %v1068 = vlaneseq
    %v1069 = vshrl.u32 %v1068, 7
    %v1070 = vsub.s32 %v1067, %v1069
    %v1071 = vrot.slane %v1057, %v1070
    %v1072 = vcombine.low %v973, %v985
    %v1073 = vcombine.high %v973, %v985
    %v1075 = vunpack.c.l.s4 1983009808
    %v1076 = vunpack.c.0.s8 %v1075
    %v1077 = vlaneseq
    %v1078 = vshrl.u32 %v1077, 7
    %v1079 = vsub.s32 %v1076, %v1078
    %v1080 = vrot.slane %v1072, %v1079
    %v1082 = vunpack.c.l.s4 1983009808
    %v1083 = vunpack.c.0.s8 %v1082
    %v1084 = vlaneseq
    %v1085 = vshrl.u32 %v1084, 7
    %v1086 = vsub.s32 %v1083, %v1085
    %v1087 = vrot.slane %v1073, %v1086
    %v1088 = vcombine.low %v1064, %v1080
    %v1089 = vcombine.high %v1064, %v1080
    %v1091 = vunpack.c.l.s4 1934713408
    %v1092 = vunpack.c.0.s8 %v1091
    %v1093 = vlaneseq
    %v1094 = vshrl.u32 %v1093, 7
    %v1095 = vsub.s32 %v1092, %v1094
    %v1096 = vrot.slane %v1088, %v1095
    %v1098 = vunpack.c.l.s4 1934713408
    %v1099 = vunpack.c.0.s8 %v1098
    %v1100 = vlaneseq
    %v1101 = vshrl.u32 %v1100, 7
    %v1102 = vsub.s32 %v1099, %v1101
    %v1103 = vrot.slane %v1089, %v1102
    %v1104 = vcombine.low %v1071, %v1087
    %v1105 = vcombine.high %v1071, %v1087
    %v1107 = vunpack.c.l.s4 1934713408
    %v1108 = vunpack.c.0.s8 %v1107
    %v1109 = vlaneseq
    %v1110 = vshrl.u32 %v1109, 7
    %v1111 = vsub.s32 %v1108, %v1110
    %v1112 = vrot.slane %v1104, %v1111
    %v1114 = vunpack.c.l.s4 1934713408
    %v1115 = vunpack.c.0.s8 %v1114
    %v1116 = vlaneseq
    %v1117 = vshrl.u32 %v1116, 7
    %v1118 = vsub.s32 %v1115, %v1117
    %v1119 = vrot.slane %v1105, %v1118
    %v1120 = vcombine.high %v1096, 0.0
    %v1121 = vcombine.high %v1103, 0.0
    %v1122 = vcombine.high %v1112, 0.0
    %v1123 = vcombine.high %v1119, 0.0
    %v1124 = vcombine.low %v1028, %v1044
    %v1126 = vunpack.c.l.s4 1983009808
    %v1127 = vunpack.c.0.s8 %v1126
    %v1128 = vlaneseq
    %v1129 = vshrl.u32 %v1128, 7
    %v1130 = vsub.s32 %v1127, %v1129
    %v1131 = vrot.slane %v1124, %v1130
    %v1132 = vcombine.low %v1035, %v1051
    %v1134 = vunpack.c.l.s4 1983009808
    %v1135 = vunpack.c.0.s8 %v1134
    %v1136 = vlaneseq
    %v1137 = vshrl.u32 %v1136, 7
    %v1138 = vsub.s32 %v1135, %v1137
    %v1139 = vrot.slane %v1132, %v1138
    %v1140 = vcombine.low %v1096, %v1112
    %v1142 = vunpack.c.l.s4 1983009808
    %v1143 = vunpack.c.0.s8 %v1142
    %v1144 = vlaneseq
    %v1145 = vshrl.u32 %v1144, 7
    %v1146 = vsub.s32 %v1143, %v1145
    %v1147 = vrot.slane %v1140, %v1146
    %v1148 = vcombine.low %v1103, %v1119
    %v1150 = vunpack.c.l.s4 1983009808
    %v1151 = vunpack.c.0.s8 %v1150
    %v1152 = vlaneseq
    %v1153 = vshrl.u32 %v1152, 7
    %v1154 = vsub.s32 %v1151, %v1153
    %v1155 = vrot.slane %v1148, %v1154
    %v1156 = vcombine.low %v1131, %v1139
    %v1157 = vcombine.high %v1131, %v1139
    %v1159 = vunpack.c.l.s4 1934713408
    %v1160 = vunpack.c.0.s8 %v1159
    %v1161 = vlaneseq
    %v1162 = vshrl.u32 %v1161, 7
    %v1163 = vsub.s32 %v1160, %v1162
    %v1164 = vrot.slane %v1156, %v1163
    %v1166 = vunpack.c.l.s4 1934713408
    %v1167 = vunpack.c.0.s8 %v1166
    %v1168 = vlaneseq
    %v1169 = vshrl.u32 %v1168, 7
    %v1170 = vsub.s32 %v1167, %v1169
    %v1171 = vrot.slane %v1157, %v1170
    %v1172 = vcombine.low %v1147, %v1155
    %v1173 = vcombine.high %v1147, %v1155
    %v1175 = vunpack.c.l.s4 1934713408
    %v1176 = vunpack.c.0.s8 %v1175
    %v1177 = vlaneseq
    %v1178 = vshrl.u32 %v1177, 7
    %v1179 = vsub.s32 %v1176, %v1178
    %v1180 = vrot.slane %v1172, %v1179
    %v1182 = vunpack.c.l.s4 1934713408
    %v1183 = vunpack.c.0.s8 %v1182
    %v1184 = vlaneseq
    %v1185 = vshrl.u32 %v1184, 7
    %v1186 = vsub.s32 %v1183, %v1185
    %v1187 = vrot.slane %v1173, %v1186
    %v1188 = vcombine.low %v1164, %v1180
    %v1189 = vcombine.high %v1164, %v1180
    %v1190 = vcombine.low %v1171, %v1187
    %v1191 = vcombine.high %v1171, %v1187
    %v1192 = vcombine.low %v1052, %v1054
    %v1194 = vunpack.c.l.s4 1983009808
    %v1195 = vunpack.c.0.s8 %v1194
    %v1196 = vlaneseq
    %v1197 = vshrl.u32 %v1196, 7
    %v1198 = vsub.s32 %v1195, %v1197
    %v1199 = vrot.slane %v1192, %v1198
    %v1200 = vcombine.low %v1053, %v1055
    %v1202 = vunpack.c.l.s4 1983009808
    %v1203 = vunpack.c.0.s8 %v1202
    %v1204 = vlaneseq
    %v1205 = vshrl.u32 %v1204, 7
    %v1206 = vsub.s32 %v1203, %v1205
    %v1207 = vrot.slane %v1200, %v1206
    %v1208 = vcombine.low %v1120, %v1122
    %v1210 = vunpack.c.l.s4 1983009808
    %v1211 = vunpack.c.0.s8 %v1210
    %v1212 = vlaneseq
    %v1213 = vshrl.u32 %v1212, 7
    %v1214 = vsub.s32 %v1211, %v1213
    %v1215 = vrot.slane %v1208, %v1214
    %v1216 = vcombine.low %v1121, %v1123
    %v1218 = vunpack.c.l.s4 1983009808
    %v1219 = vunpack.c.0.s8 %v1218
    %v1220 = vlaneseq
    %v1221 = vshrl.u32 %v1220, 7
    %v1222 = vsub.s32 %v1219, %v1221
    %v1223 = vrot.slane %v1216, %v1222
    %v1224 = vcombine.low %v1199, %v1207
    %v1225 = vcombine.high %v1199, %v1207
    %v1227 = vunpack.c.l.s4 1934713408
    %v1228 = vunpack.c.0.s8 %v1227
    %v1229 = vlaneseq
    %v1230 = vshrl.u32 %v1229, 7
    %v1231 = vsub.s32 %v1228, %v1230
    %v1232 = vrot.slane %v1224, %v1231
    %v1234 = vunpack.c.l.s4 1934713408
    %v1235 = vunpack.c.0.s8 %v1234
    %v1236 = vlaneseq
    %v1237 = vshrl.u32 %v1236, 7
    %v1238 = vsub.s32 %v1235, %v1237
    %v1239 = vrot.slane %v1225, %v1238
    %v1240 = vcombine.low %v1215, %v1223
    %v1241 = vcombine.high %v1215, %v1223
    %v1243 = vunpack.c.l.s4 1934713408
    %v1244 = vunpack.c.0.s8 %v1243
    %v1245 = vlaneseq
    %v1246 = vshrl.u32 %v1245, 7
    %v1247 = vsub.s32 %v1244, %v1246
    %v1248 = vrot.slane %v1240, %v1247
    %v1250 = vunpack.c.l.s4 1934713408
    %v1251 = vunpack.c.0.s8 %v1250
    %v1252 = vlaneseq
    %v1253 = vshrl.u32 %v1252, 7
    %v1254 = vsub.s32 %v1251, %v1253
    %v1255 = vrot.slane %v1241, %v1254
    %v1256 = vcombine.low %v1232, %v1248
    %v1257 = vcombine.high %v1232, %v1248
    %v1258 = vcombine.low %v1239, %v1255
    %v1259 = vcombine.high %v1239, %v1255
    %vm1260 = vcmask 261120
    %v1262 = vsel %vm1260, %v604, 0
    %v1265 = vsel %vm1260, %v896, 0
    %1267 = vmatprep.subr.mxu0 0.0
    %1268 = vmatpush1.xpose.msra.mxu0 %v1265
    %1269 = vmatprep.subr.mxu0 0.0
    %1270 = vmatpush1.xpose.msra.mxu0 0.0
    %1271 = vmatprep.subr.mxu0 0.0
    %1272 = vmatpush1.xpose.msra.mxu0 0.0
    %1273 = vmatprep.subr.mxu0 0.0
    %1274 = vmatpush1.xpose.msra.mxu0 0.0
    %1275 = vmatprep.subr.mxu0 0.0
    %1276 = vmatpush1.xpose.msra.mxu0 0.0
    %1277 = vmatprep.subr.mxu0 0.0
    %1278 = vmatpush1.xpose.msra.mxu0 0.0
    %1279 = vmatprep.subr.mxu0 0.0
    %1280 = vmatpush1.xpose.msra.mxu0 0.0
    %1281 = vmatprep.subr.mxu0 0.0
    %1282 = vmatpush1.xpose.msra.mxu0 0.0
    %1283 = vmatprep.subr.mxu0 0.0
    %1284 = vmatpush1.xpose.msra.mxu0 0.0
    %1285 = vmatprep.subr.mxu0 0.0
    %1286 = vmatpush1.xpose.msra.mxu0 0.0
    %1287 = vmatprep.subr.mxu0 0.0
    %1288 = vmatpush1.xpose.msra.mxu0 0.0
    %1289 = vmatprep.subr.mxu0 0.0
    %1290 = vmatpush1.xpose.msra.mxu0 0.0
    %1291 = vmatprep.subr.mxu0 0.0
    %1292 = vmatpush1.xpose.msra.mxu0 0.0
    %1293 = vmatprep.subr.mxu0 0.0
    %1294 = vmatpush1.xpose.msra.mxu0 0.0
    %1295 = vmatprep.subr.mxu0 0.0
    %1296 = vmatpush1.xpose.msra.mxu0 0.0
    %1297 = vmatprep.subr.mxu0 0.0
    %1298 = vmatpush1.xpose.msra.mxu0 0.0
    %1299 = vmatprep.subr.mxu0 0.0
    %1300 = vmatpush1.xpose.msra.mxu0 0.0
    %1301 = vmatprep.subr.mxu0 0.0
    %1302 = vmatpush1.xpose.msra.mxu0 0.0
    %1303 = vmatprep.subr.mxu0 0.0
    %1304 = vmatpush1.xpose.msra.mxu0 0.0
    %1305 = vmatprep.subr.mxu0 0.0
    %1306 = vmatpush1.xpose.msra.mxu0 0.0
    %1307 = vmatprep.subr.mxu0 0.0
    %1308 = vmatpush1.xpose.msra.mxu0 0.0
    %1309 = vmatprep.subr.mxu0 0.0
    %1310 = vmatpush1.xpose.msra.mxu0 0.0
    %1311 = vmatprep.subr.mxu0 0.0
    %1312 = vmatpush1.xpose.msra.mxu0 0.0
    %1313 = vmatprep.subr.mxu0 0.0
    %1314 = vmatpush1.xpose.msra.mxu0 0.0
    %1315 = vmatprep.subr.mxu0 0.0
    %1316 = vmatpush1.xpose.msra.mxu0 0.0
    %1317 = vmatprep.subr.mxu0 0.0
    %1318 = vmatpush1.xpose.msra.mxu0 0.0
    %1319 = vmatprep.subr.mxu0 0.0
    %1320 = vmatpush1.xpose.msra.mxu0 0.0
    %1321 = vmatprep.subr.mxu0 0.0
    %1322 = vmatpush1.xpose.msra.mxu0 0.0
    %1323 = vmatprep.subr.mxu0 0.0
    %1324 = vmatpush1.xpose.msra.mxu0 0.0
    %1325 = vmatprep.subr.mxu0 0.0
    %1326 = vmatpush1.xpose.msra.mxu0 0.0
    %1327 = vmatprep.subr.mxu0 0.0
    %1328 = vmatpush1.xpose.msra.mxu0 0.0
    %1329 = vmatprep.subr.mxu0 0.0
    %1330 = vmatpush1.xpose.msra.mxu0 0.0
    %1331 = vmatprep.mubr.f32.mxu0 0.0
    %1332 = vmatmul.mubr.f32.gmra.mrb[0].mxu0 %v1262
    %v1333 = vpop.f32.mrb[0].mxu0
    %v1334 = vadd.f32 0.0, %v1333
    %v1335 = vpop.f32.mrb[0].mxu0
    %1336 = vdwg.mxu0
    %v1338 = vsel %vm1260, %v605, 0
    %v1341 = vsel %vm1260, %v897, 0
    %1343 = vmatprep.subr.mxu0 0.0
    %1344 = vmatpush1.xpose.msra.mxu0 %v1341
    %1345 = vmatprep.subr.mxu0 0.0
    %1346 = vmatpush1.xpose.msra.mxu0 0.0
    %1347 = vmatprep.subr.mxu0 0.0
    %1348 = vmatpush1.xpose.msra.mxu0 0.0
    %1349 = vmatprep.subr.mxu0 0.0
    %1350 = vmatpush1.xpose.msra.mxu0 0.0
    %1351 = vmatprep.subr.mxu0 0.0
    %1352 = vmatpush1.xpose.msra.mxu0 0.0
    %1353 = vmatprep.subr.mxu0 0.0
    %1354 = vmatpush1.xpose.msra.mxu0 0.0
    %1355 = vmatprep.subr.mxu0 0.0
    %1356 = vmatpush1.xpose.msra.mxu0 0.0
    %1357 = vmatprep.subr.mxu0 0.0
    %1358 = vmatpush1.xpose.msra.mxu0 0.0
    %1359 = vmatprep.subr.mxu0 0.0
    %1360 = vmatpush1.xpose.msra.mxu0 0.0
    %1361 = vmatprep.subr.mxu0 0.0
    %1362 = vmatpush1.xpose.msra.mxu0 0.0
    %1363 = vmatprep.subr.mxu0 0.0
    %1364 = vmatpush1.xpose.msra.mxu0 0.0
    %1365 = vmatprep.subr.mxu0 0.0
    %1366 = vmatpush1.xpose.msra.mxu0 0.0
    %1367 = vmatprep.subr.mxu0 0.0
    %1368 = vmatpush1.xpose.msra.mxu0 0.0
    %1369 = vmatprep.subr.mxu0 0.0
    %1370 = vmatpush1.xpose.msra.mxu0 0.0
    %1371 = vmatprep.subr.mxu0 0.0
    %1372 = vmatpush1.xpose.msra.mxu0 0.0
    %1373 = vmatprep.subr.mxu0 0.0
    %1374 = vmatpush1.xpose.msra.mxu0 0.0
    %1375 = vmatprep.subr.mxu0 0.0
    %1376 = vmatpush1.xpose.msra.mxu0 0.0
    %1377 = vmatprep.subr.mxu0 0.0
    %1378 = vmatpush1.xpose.msra.mxu0 0.0
    %1379 = vmatprep.subr.mxu0 0.0
    %1380 = vmatpush1.xpose.msra.mxu0 0.0
    %1381 = vmatprep.subr.mxu0 0.0
    %1382 = vmatpush1.xpose.msra.mxu0 0.0
    %1383 = vmatprep.subr.mxu0 0.0
    %1384 = vmatpush1.xpose.msra.mxu0 0.0
    %1385 = vmatprep.subr.mxu0 0.0
    %1386 = vmatpush1.xpose.msra.mxu0 0.0
    %1387 = vmatprep.subr.mxu0 0.0
    %1388 = vmatpush1.xpose.msra.mxu0 0.0
    %1389 = vmatprep.subr.mxu0 0.0
    %1390 = vmatpush1.xpose.msra.mxu0 0.0
    %1391 = vmatprep.subr.mxu0 0.0
    %1392 = vmatpush1.xpose.msra.mxu0 0.0
    %1393 = vmatprep.subr.mxu0 0.0
    %1394 = vmatpush1.xpose.msra.mxu0 0.0
    %1395 = vmatprep.subr.mxu0 0.0
    %1396 = vmatpush1.xpose.msra.mxu0 0.0
    %1397 = vmatprep.subr.mxu0 0.0
    %1398 = vmatpush1.xpose.msra.mxu0 0.0
    %1399 = vmatprep.subr.mxu0 0.0
    %1400 = vmatpush1.xpose.msra.mxu0 0.0
    %1401 = vmatprep.subr.mxu0 0.0
    %1402 = vmatpush1.xpose.msra.mxu0 0.0
    %1403 = vmatprep.subr.mxu0 0.0
    %1404 = vmatpush1.xpose.msra.mxu0 0.0
    %1405 = vmatprep.subr.mxu0 0.0
    %1406 = vmatpush1.xpose.msra.mxu0 0.0
    %1407 = vmatprep.mubr.f32.mxu0 0.0
    %1408 = vmatmul.mubr.f32.gmra.mrb[0].mxu0 %v1338
    %v1409 = vpop.f32.mrb[0].mxu0
    %v1410 = vadd.f32 0.0, %v1409
    %v1411 = vpop.f32.mrb[0].mxu0
    %1412 = vdwg.mxu0
    %v1414 = vsel %vm1260, %v606, 0
    %v1417 = vsel %vm1260, %v898, 0
    %1419 = vmatprep.subr.mxu0 0.0
    %1420 = vmatpush1.xpose.msra.mxu0 %v1417
    %1421 = vmatprep.subr.mxu0 0.0
    %1422 = vmatpush1.xpose.msra.mxu0 0.0
    %1423 = vmatprep.subr.mxu0 0.0
    %1424 = vmatpush1.xpose.msra.mxu0 0.0
    %1425 = vmatprep.subr.mxu0 0.0
    %1426 = vmatpush1.xpose.msra.mxu0 0.0
    %1427 = vmatprep.subr.mxu0 0.0
    %1428 = vmatpush1.xpose.msra.mxu0 0.0
    %1429 = vmatprep.subr.mxu0 0.0
    %1430 = vmatpush1.xpose.msra.mxu0 0.0
    %1431 = vmatprep.subr.mxu0 0.0
    %1432 = vmatpush1.xpose.msra.mxu0 0.0
    %1433 = vmatprep.subr.mxu0 0.0
    %1434 = vmatpush1.xpose.msra.mxu0 0.0
    %1435 = vmatprep.subr.mxu0 0.0
    %1436 = vmatpush1.xpose.msra.mxu0 0.0
    %1437 = vmatprep.subr.mxu0 0.0
    %1438 = vmatpush1.xpose.msra.mxu0 0.0
    %1439 = vmatprep.subr.mxu0 0.0
    %1440 = vmatpush1.xpose.msra.mxu0 0.0
    %1441 = vmatprep.subr.mxu0 0.0
    %1442 = vmatpush1.xpose.msra.mxu0 0.0
    %1443 = vmatprep.subr.mxu0 0.0
    %1444 = vmatpush1.xpose.msra.mxu0 0.0
    %1445 = vmatprep.subr.mxu0 0.0
    %1446 = vmatpush1.xpose.msra.mxu0 0.0
    %1447 = vmatprep.subr.mxu0 0.0
    %1448 = vmatpush1.xpose.msra.mxu0 0.0
    %1449 = vmatprep.subr.mxu0 0.0
    %1450 = vmatpush1.xpose.msra.mxu0 0.0
    %1451 = vmatprep.subr.mxu0 0.0
    %1452 = vmatpush1.xpose.msra.mxu0 0.0
    %1453 = vmatprep.subr.mxu0 0.0
    %1454 = vmatpush1.xpose.msra.mxu0 0.0
    %1455 = vmatprep.subr.mxu0 0.0
    %1456 = vmatpush1.xpose.msra.mxu0 0.0
    %1457 = vmatprep.subr.mxu0 0.0
    %1458 = vmatpush1.xpose.msra.mxu0 0.0
    %1459 = vmatprep.subr.mxu0 0.0
    %1460 = vmatpush1.xpose.msra.mxu0 0.0
    %1461 = vmatprep.subr.mxu0 0.0
    %1462 = vmatpush1.xpose.msra.mxu0 0.0
    %1463 = vmatprep.subr.mxu0 0.0
    %1464 = vmatpush1.xpose.msra.mxu0 0.0
    %1465 = vmatprep.subr.mxu0 0.0
    %1466 = vmatpush1.xpose.msra.mxu0 0.0
    %1467 = vmatprep.subr.mxu0 0.0
    %1468 = vmatpush1.xpose.msra.mxu0 0.0
    %1469 = vmatprep.subr.mxu0 0.0
    %1470 = vmatpush1.xpose.msra.mxu0 0.0
    %1471 = vmatprep.subr.mxu0 0.0
    %1472 = vmatpush1.xpose.msra.mxu0 0.0
    %1473 = vmatprep.subr.mxu0 0.0
    %1474 = vmatpush1.xpose.msra.mxu0 0.0
    %1475 = vmatprep.subr.mxu0 0.0
    %1476 = vmatpush1.xpose.msra.mxu0 0.0
    %1477 = vmatprep.subr.mxu0 0.0
    %1478 = vmatpush1.xpose.msra.mxu0 0.0
    %1479 = vmatprep.subr.mxu0 0.0
    %1480 = vmatpush1.xpose.msra.mxu0 0.0
    %1481 = vmatprep.subr.mxu0 0.0
    %1482 = vmatpush1.xpose.msra.mxu0 0.0
    %1483 = vmatprep.mubr.f32.mxu0 0.0
    %1484 = vmatmul.mubr.f32.gmra.mrb[0].mxu0 %v1414
    %v1485 = vpop.f32.mrb[0].mxu0
    %v1486 = vadd.f32 0.0, %v1485
    %v1487 = vpop.f32.mrb[0].mxu0
    %1488 = vdwg.mxu0
    %v1490 = vsel %vm1260, %v607, 0
    %v1493 = vsel %vm1260, %v899, 0
    %1495 = vmatprep.subr.mxu0 0.0
    %1496 = vmatpush1.xpose.msra.mxu0 %v1493
    %1497 = vmatprep.subr.mxu0 0.0
    %1498 = vmatpush1.xpose.msra.mxu0 0.0
    %1499 = vmatprep.subr.mxu0 0.0
    %1500 = vmatpush1.xpose.msra.mxu0 0.0
    %1501 = vmatprep.subr.mxu0 0.0
    %1502 = vmatpush1.xpose.msra.mxu0 0.0
    %1503 = vmatprep.subr.mxu0 0.0
    %1504 = vmatpush1.xpose.msra.mxu0 0.0
    %1505 = vmatprep.subr.mxu0 0.0
    %1506 = vmatpush1.xpose.msra.mxu0 0.0
    %1507 = vmatprep.subr.mxu0 0.0
    %1508 = vmatpush1.xpose.msra.mxu0 0.0
    %1509 = vmatprep.subr.mxu0 0.0
    %1510 = vmatpush1.xpose.msra.mxu0 0.0
    %1511 = vmatprep.subr.mxu0 0.0
    %1512 = vmatpush1.xpose.msra.mxu0 0.0
    %1513 = vmatprep.subr.mxu0 0.0
    %1514 = vmatpush1.xpose.msra.mxu0 0.0
    %1515 = vmatprep.subr.mxu0 0.0
    %1516 = vmatpush1.xpose.msra.mxu0 0.0
    %1517 = vmatprep.subr.mxu0 0.0
    %1518 = vmatpush1.xpose.msra.mxu0 0.0
    %1519 = vmatprep.subr.mxu0 0.0
    %1520 = vmatpush1.xpose.msra.mxu0 0.0
    %1521 = vmatprep.subr.mxu0 0.0
    %1522 = vmatpush1.xpose.msra.mxu0 0.0
    %1523 = vmatprep.subr.mxu0 0.0
    %1524 = vmatpush1.xpose.msra.mxu0 0.0
    %1525 = vmatprep.subr.mxu0 0.0
    %1526 = vmatpush1.xpose.msra.mxu0 0.0
    %1527 = vmatprep.subr.mxu0 0.0
    %1528 = vmatpush1.xpose.msra.mxu0 0.0
    %1529 = vmatprep.subr.mxu0 0.0
    %1530 = vmatpush1.xpose.msra.mxu0 0.0
    %1531 = vmatprep.subr.mxu0 0.0
    %1532 = vmatpush1.xpose.msra.mxu0 0.0
    %1533 = vmatprep.subr.mxu0 0.0
    %1534 = vmatpush1.xpose.msra.mxu0 0.0
    %1535 = vmatprep.subr.mxu0 0.0
    %1536 = vmatpush1.xpose.msra.mxu0 0.0
    %1537 = vmatprep.subr.mxu0 0.0
    %1538 = vmatpush1.xpose.msra.mxu0 0.0
    %1539 = vmatprep.subr.mxu0 0.0
    %1540 = vmatpush1.xpose.msra.mxu0 0.0
    %1541 = vmatprep.subr.mxu0 0.0
    %1542 = vmatpush1.xpose.msra.mxu0 0.0
    %1543 = vmatprep.subr.mxu0 0.0
    %1544 = vmatpush1.xpose.msra.mxu0 0.0
    %1545 = vmatprep.subr.mxu0 0.0
    %1546 = vmatpush1.xpose.msra.mxu0 0.0
    %1547 = vmatprep.subr.mxu0 0.0
    %1548 = vmatpush1.xpose.msra.mxu0 0.0
    %1549 = vmatprep.subr.mxu0 0.0
    %1550 = vmatpush1.xpose.msra.mxu0 0.0
    %1551 = vmatprep.subr.mxu0 0.0
    %1552 = vmatpush1.xpose.msra.mxu0 0.0
    %1553 = vmatprep.subr.mxu0 0.0
    %1554 = vmatpush1.xpose.msra.mxu0 0.0
    %1555 = vmatprep.subr.mxu0 0.0
    %1556 = vmatpush1.xpose.msra.mxu0 0.0
    %1557 = vmatprep.subr.mxu0 0.0
    %1558 = vmatpush1.xpose.msra.mxu0 0.0
    %1559 = vmatprep.mubr.f32.mxu0 0.0
    %1560 = vmatmul.mubr.f32.gmra.mrb[0].mxu0 %v1490
    %v1561 = vpop.f32.mrb[0].mxu0
    %v1562 = vadd.f32 0.0, %v1561
    %v1563 = vpop.f32.mrb[0].mxu0
    %1564 = vdwg.mxu0
    %v1566 = vsel %vm1260, %v672, 0
    %v1569 = vsel %vm1260, %v964, 0
    %1571 = vmatprep.subr.mxu0 0.0
    %1572 = vmatpush1.xpose.msra.mxu0 %v1569
    %1573 = vmatprep.subr.mxu0 0.0
    %1574 = vmatpush1.xpose.msra.mxu0 0.0
    %1575 = vmatprep.subr.mxu0 0.0
    %1576 = vmatpush1.xpose.msra.mxu0 0.0
    %1577 = vmatprep.subr.mxu0 0.0
    %1578 = vmatpush1.xpose.msra.mxu0 0.0
    %1579 = vmatprep.subr.mxu0 0.0
    %1580 = vmatpush1.xpose.msra.mxu0 0.0
    %1581 = vmatprep.subr.mxu0 0.0
    %1582 = vmatpush1.xpose.msra.mxu0 0.0
    %1583 = vmatprep.subr.mxu0 0.0
    %1584 = vmatpush1.xpose.msra.mxu0 0.0
    %1585 = vmatprep.subr.mxu0 0.0
    %1586 = vmatpush1.xpose.msra.mxu0 0.0
    %1587 = vmatprep.subr.mxu0 0.0
    %1588 = vmatpush1.xpose.msra.mxu0 0.0
    %1589 = vmatprep.subr.mxu0 0.0
    %1590 = vmatpush1.xpose.msra.mxu0 0.0
    %1591 = vmatprep.subr.mxu0 0.0
    %1592 = vmatpush1.xpose.msra.mxu0 0.0
    %1593 = vmatprep.subr.mxu0 0.0
    %1594 = vmatpush1.xpose.msra.mxu0 0.0
    %1595 = vmatprep.subr.mxu0 0.0
    %1596 = vmatpush1.xpose.msra.mxu0 0.0
    %1597 = vmatprep.subr.mxu0 0.0
    %1598 = vmatpush1.xpose.msra.mxu0 0.0
    %1599 = vmatprep.subr.mxu0 0.0
    %1600 = vmatpush1.xpose.msra.mxu0 0.0
    %1601 = vmatprep.subr.mxu0 0.0
    %1602 = vmatpush1.xpose.msra.mxu0 0.0
    %1603 = vmatprep.subr.mxu0 0.0
    %1604 = vmatpush1.xpose.msra.mxu0 0.0
    %1605 = vmatprep.subr.mxu0 0.0
    %1606 = vmatpush1.xpose.msra.mxu0 0.0
    %1607 = vmatprep.subr.mxu0 0.0
    %1608 = vmatpush1.xpose.msra.mxu0 0.0
    %1609 = vmatprep.subr.mxu0 0.0
    %1610 = vmatpush1.xpose.msra.mxu0 0.0
    %1611 = vmatprep.subr.mxu0 0.0
    %1612 = vmatpush1.xpose.msra.mxu0 0.0
    %1613 = vmatprep.subr.mxu0 0.0
    %1614 = vmatpush1.xpose.msra.mxu0 0.0
    %1615 = vmatprep.subr.mxu0 0.0
    %1616 = vmatpush1.xpose.msra.mxu0 0.0
    %1617 = vmatprep.subr.mxu0 0.0
    %1618 = vmatpush1.xpose.msra.mxu0 0.0
    %1619 = vmatprep.subr.mxu0 0.0
    %1620 = vmatpush1.xpose.msra.mxu0 0.0
    %1621 = vmatprep.subr.mxu0 0.0
    %1622 = vmatpush1.xpose.msra.mxu0 0.0
    %1623 = vmatprep.subr.mxu0 0.0
    %1624 = vmatpush1.xpose.msra.mxu0 0.0
    %1625 = vmatprep.subr.mxu0 0.0
    %1626 = vmatpush1.xpose.msra.mxu0 0.0
    %1627 = vmatprep.subr.mxu0 0.0
    %1628 = vmatpush1.xpose.msra.mxu0 0.0
    %1629 = vmatprep.subr.mxu0 0.0
    %1630 = vmatpush1.xpose.msra.mxu0 0.0
    %1631 = vmatprep.subr.mxu0 0.0
    %1632 = vmatpush1.xpose.msra.mxu0 0.0
    %1633 = vmatprep.subr.mxu0 0.0
    %1634 = vmatpush1.xpose.msra.mxu0 0.0
    %1635 = vmatprep.mubr.f32.mxu0 0.0
    %1636 = vmatmul.mubr.f32.gmra.mrb[0].mxu0 %v1566
    %v1637 = vpop.f32.mrb[0].mxu0
    %v1638 = vadd.f32 0.0, %v1637
    %v1639 = vpop.f32.mrb[0].mxu0
    %1640 = vdwg.mxu0
    %v1642 = vsel %vm1260, %v673, 0
    %v1645 = vsel %vm1260, %v965, 0
    %1647 = vmatprep.subr.mxu0 0.0
    %1648 = vmatpush1.xpose.msra.mxu0 %v1645
    %1649 = vmatprep.subr.mxu0 0.0
    %1650 = vmatpush1.xpose.msra.mxu0 0.0
    %1651 = vmatprep.subr.mxu0 0.0
    %1652 = vmatpush1.xpose.msra.mxu0 0.0
    %1653 = vmatprep.subr.mxu0 0.0
    %1654 = vmatpush1.xpose.msra.mxu0 0.0
    %1655 = vmatprep.subr.mxu0 0.0
    %1656 = vmatpush1.xpose.msra.mxu0 0.0
    %1657 = vmatprep.subr.mxu0 0.0
    %1658 = vmatpush1.xpose.msra.mxu0 0.0
    %1659 = vmatprep.subr.mxu0 0.0
    %1660 = vmatpush1.xpose.msra.mxu0 0.0
    %1661 = vmatprep.subr.mxu0 0.0
    %1662 = vmatpush1.xpose.msra.mxu0 0.0
    %1663 = vmatprep.subr.mxu0 0.0
    %1664 = vmatpush1.xpose.msra.mxu0 0.0
    %1665 = vmatprep.subr.mxu0 0.0
    %1666 = vmatpush1.xpose.msra.mxu0 0.0
    %1667 = vmatprep.subr.mxu0 0.0
    %1668 = vmatpush1.xpose.msra.mxu0 0.0
    %1669 = vmatprep.subr.mxu0 0.0
    %1670 = vmatpush1.xpose.msra.mxu0 0.0
    %1671 = vmatprep.subr.mxu0 0.0
    %1672 = vmatpush1.xpose.msra.mxu0 0.0
    %1673 = vmatprep.subr.mxu0 0.0
    %1674 = vmatpush1.xpose.msra.mxu0 0.0
    %1675 = vmatprep.subr.mxu0 0.0
    %1676 = vmatpush1.xpose.msra.mxu0 0.0
    %1677 = vmatprep.subr.mxu0 0.0
    %1678 = vmatpush1.xpose.msra.mxu0 0.0
    %1679 = vmatprep.subr.mxu0 0.0
    %1680 = vmatpush1.xpose.msra.mxu0 0.0
    %1681 = vmatprep.subr.mxu0 0.0
    %1682 = vmatpush1.xpose.msra.mxu0 0.0
    %1683 = vmatprep.subr.mxu0 0.0
    %1684 = vmatpush1.xpose.msra.mxu0 0.0
    %1685 = vmatprep.subr.mxu0 0.0
    %1686 = vmatpush1.xpose.msra.mxu0 0.0
    %1687 = vmatprep.subr.mxu0 0.0
    %1688 = vmatpush1.xpose.msra.mxu0 0.0
    %1689 = vmatprep.subr.mxu0 0.0
    %1690 = vmatpush1.xpose.msra.mxu0 0.0
    %1691 = vmatprep.subr.mxu0 0.0
    %1692 = vmatpush1.xpose.msra.mxu0 0.0
    %1693 = vmatprep.subr.mxu0 0.0
    %1694 = vmatpush1.xpose.msra.mxu0 0.0
    %1695 = vmatprep.subr.mxu0 0.0
    %1696 = vmatpush1.xpose.msra.mxu0 0.0
    %1697 = vmatprep.subr.mxu0 0.0
    %1698 = vmatpush1.xpose.msra.mxu0 0.0
    %1699 = vmatprep.subr.mxu0 0.0
    %1700 = vmatpush1.xpose.msra.mxu0 0.0
    %1701 = vmatprep.subr.mxu0 0.0
    %1702 = vmatpush1.xpose.msra.mxu0 0.0
    %1703 = vmatprep.subr.mxu0 0.0
    %1704 = vmatpush1.xpose.msra.mxu0 0.0
    %1705 = vmatprep.subr.mxu0 0.0
    %1706 = vmatpush1.xpose.msra.mxu0 0.0
    %1707 = vmatprep.subr.mxu0 0.0
    %1708 = vmatpush1.xpose.msra.mxu0 0.0
    %1709 = vmatprep.subr.mxu0 0.0
    %1710 = vmatpush1.xpose.msra.mxu0 0.0
    %1711 = vmatprep.mubr.f32.mxu0 0.0
    %1712 = vmatmul.mubr.f32.gmra.mrb[0].mxu0 %v1642
    %v1713 = vpop.f32.mrb[0].mxu0
    %v1714 = vadd.f32 0.0, %v1713
    %v1715 = vpop.f32.mrb[0].mxu0
    %1716 = vdwg.mxu0
    %v1718 = vsel %vm1260, %v674, 0
    %v1721 = vsel %vm1260, %v966, 0
    %1723 = vmatprep.subr.mxu0 0.0
    %1724 = vmatpush1.xpose.msra.mxu0 %v1721
    %1725 = vmatprep.subr.mxu0 0.0
    %1726 = vmatpush1.xpose.msra.mxu0 0.0
    %1727 = vmatprep.subr.mxu0 0.0
    %1728 = vmatpush1.xpose.msra.mxu0 0.0
    %1729 = vmatprep.subr.mxu0 0.0
    %1730 = vmatpush1.xpose.msra.mxu0 0.0
    %1731 = vmatprep.subr.mxu0 0.0
    %1732 = vmatpush1.xpose.msra.mxu0 0.0
    %1733 = vmatprep.subr.mxu0 0.0
    %1734 = vmatpush1.xpose.msra.mxu0 0.0
    %1735 = vmatprep.subr.mxu0 0.0
    %1736 = vmatpush1.xpose.msra.mxu0 0.0
    %1737 = vmatprep.subr.mxu0 0.0
    %1738 = vmatpush1.xpose.msra.mxu0 0.0
    %1739 = vmatprep.subr.mxu0 0.0
    %1740 = vmatpush1.xpose.msra.mxu0 0.0
    %1741 = vmatprep.subr.mxu0 0.0
    %1742 = vmatpush1.xpose.msra.mxu0 0.0
    %1743 = vmatprep.subr.mxu0 0.0
    %1744 = vmatpush1.xpose.msra.mxu0 0.0
    %1745 = vmatprep.subr.mxu0 0.0
    %1746 = vmatpush1.xpose.msra.mxu0 0.0
    %1747 = vmatprep.subr.mxu0 0.0
    %1748 = vmatpush1.xpose.msra.mxu0 0.0
    %1749 = vmatprep.subr.mxu0 0.0
    %1750 = vmatpush1.xpose.msra.mxu0 0.0
    %1751 = vmatprep.subr.mxu0 0.0
    %1752 = vmatpush1.xpose.msra.mxu0 0.0
    %1753 = vmatprep.subr.mxu0 0.0
    %1754 = vmatpush1.xpose.msra.mxu0 0.0
    %1755 = vmatprep.subr.mxu0 0.0
    %1756 = vmatpush1.xpose.msra.mxu0 0.0
    %1757 = vmatprep.subr.mxu0 0.0
    %1758 = vmatpush1.xpose.msra.mxu0 0.0
    %1759 = vmatprep.subr.mxu0 0.0
    %1760 = vmatpush1.xpose.msra.mxu0 0.0
    %1761 = vmatprep.subr.mxu0 0.0
    %1762 = vmatpush1.xpose.msra.mxu0 0.0
    %1763 = vmatprep.subr.mxu0 0.0
    %1764 = vmatpush1.xpose.msra.mxu0 0.0
    %1765 = vmatprep.subr.mxu0 0.0
    %1766 = vmatpush1.xpose.msra.mxu0 0.0
    %1767 = vmatprep.subr.mxu0 0.0
    %1768 = vmatpush1.xpose.msra.mxu0 0.0
    %1769 = vmatprep.subr.mxu0 0.0
    %1770 = vmatpush1.xpose.msra.mxu0 0.0
    %1771 = vmatprep.subr.mxu0 0.0
    %1772 = vmatpush1.xpose.msra.mxu0 0.0
    %1773 = vmatprep.subr.mxu0 0.0
    %1774 = vmatpush1.xpose.msra.mxu0 0.0
    %1775 = vmatprep.subr.mxu0 0.0
    %1776 = vmatpush1.xpose.msra.mxu0 0.0
    %1777 = vmatprep.subr.mxu0 0.0
    %1778 = vmatpush1.xpose.msra.mxu0 0.0
    %1779 = vmatprep.subr.mxu0 0.0
    %1780 = vmatpush1.xpose.msra.mxu0 0.0
    %1781 = vmatprep.subr.mxu0 0.0
    %1782 = vmatpush1.xpose.msra.mxu0 0.0
    %1783 = vmatprep.subr.mxu0 0.0
    %1784 = vmatpush1.xpose.msra.mxu0 0.0
    %1785 = vmatprep.subr.mxu0 0.0
    %1786 = vmatpush1.xpose.msra.mxu0 0.0
    %1787 = vmatprep.mubr.f32.mxu0 0.0
    %1788 = vmatmul.mubr.f32.gmra.mrb[0].mxu0 %v1718
    %v1789 = vpop.f32.mrb[0].mxu0
    %v1790 = vadd.f32 0.0, %v1789
    %v1791 = vpop.f32.mrb[0].mxu0
    %1792 = vdwg.mxu0
    %v1794 = vsel %vm1260, %v675, 0
    %v1797 = vsel %vm1260, %v967, 0
    %1799 = vmatprep.subr.mxu0 0.0
    %1800 = vmatpush1.xpose.msra.mxu0 %v1797
    %1801 = vmatprep.subr.mxu0 0.0
    %1802 = vmatpush1.xpose.msra.mxu0 0.0
    %1803 = vmatprep.subr.mxu0 0.0
    %1804 = vmatpush1.xpose.msra.mxu0 0.0
    %1805 = vmatprep.subr.mxu0 0.0
    %1806 = vmatpush1.xpose.msra.mxu0 0.0
    %1807 = vmatprep.subr.mxu0 0.0
    %1808 = vmatpush1.xpose.msra.mxu0 0.0
    %1809 = vmatprep.subr.mxu0 0.0
    %1810 = vmatpush1.xpose.msra.mxu0 0.0
    %1811 = vmatprep.subr.mxu0 0.0
    %1812 = vmatpush1.xpose.msra.mxu0 0.0
    %1813 = vmatprep.subr.mxu0 0.0
    %1814 = vmatpush1.xpose.msra.mxu0 0.0
    %1815 = vmatprep.subr.mxu0 0.0
    %1816 = vmatpush1.xpose.msra.mxu0 0.0
    %1817 = vmatprep.subr.mxu0 0.0
    %1818 = vmatpush1.xpose.msra.mxu0 0.0
    %1819 = vmatprep.subr.mxu0 0.0
    %1820 = vmatpush1.xpose.msra.mxu0 0.0
    %1821 = vmatprep.subr.mxu0 0.0
    %1822 = vmatpush1.xpose.msra.mxu0 0.0
    %1823 = vmatprep.subr.mxu0 0.0
    %1824 = vmatpush1.xpose.msra.mxu0 0.0
    %1825 = vmatprep.subr.mxu0 0.0
    %1826 = vmatpush1.xpose.msra.mxu0 0.0
    %1827 = vmatprep.subr.mxu0 0.0
    %1828 = vmatpush1.xpose.msra.mxu0 0.0
    %1829 = vmatprep.subr.mxu0 0.0
    %1830 = vmatpush1.xpose.msra.mxu0 0.0
    %1831 = vmatprep.subr.mxu0 0.0
    %1832 = vmatpush1.xpose.msra.mxu0 0.0
    %1833 = vmatprep.subr.mxu0 0.0
    %1834 = vmatpush1.xpose.msra.mxu0 0.0
    %1835 = vmatprep.subr.mxu0 0.0
    %1836 = vmatpush1.xpose.msra.mxu0 0.0
    %1837 = vmatprep.subr.mxu0 0.0
    %1838 = vmatpush1.xpose.msra.mxu0 0.0
    %1839 = vmatprep.subr.mxu0 0.0
    %1840 = vmatpush1.xpose.msra.mxu0 0.0
    %1841 = vmatprep.subr.mxu0 0.0
    %1842 = vmatpush1.xpose.msra.mxu0 0.0
    %1843 = vmatprep.subr.mxu0 0.0
    %1844 = vmatpush1.xpose.msra.mxu0 0.0
    %1845 = vmatprep.subr.mxu0 0.0
    %1846 = vmatpush1.xpose.msra.mxu0 0.0
    %1847 = vmatprep.subr.mxu0 0.0
    %1848 = vmatpush1.xpose.msra.mxu0 0.0
    %1849 = vmatprep.subr.mxu0 0.0
    %1850 = vmatpush1.xpose.msra.mxu0 0.0
    %1851 = vmatprep.subr.mxu0 0.0
    %1852 = vmatpush1.xpose.msra.mxu0 0.0
    %1853 = vmatprep.subr.mxu0 0.0
    %1854 = vmatpush1.xpose.msra.mxu0 0.0
    %1855 = vmatprep.subr.mxu0 0.0
    %1856 = vmatpush1.xpose.msra.mxu0 0.0
    %1857 = vmatprep.subr.mxu0 0.0
    %1858 = vmatpush1.xpose.msra.mxu0 0.0
    %1859 = vmatprep.subr.mxu0 0.0
    %1860 = vmatpush1.xpose.msra.mxu0 0.0
    %1861 = vmatprep.subr.mxu0 0.0
    %1862 = vmatpush1.xpose.msra.mxu0 0.0
    %1863 = vmatprep.mubr.f32.mxu0 0.0
    %1864 = vmatmul.mubr.f32.gmra.mrb[0].mxu0 %v1794
    %v1865 = vpop.f32.mrb[0].mxu0
    %v1866 = vadd.f32 0.0, %v1865
    %v1867 = vpop.f32.mrb[0].mxu0
    %1868 = vdwg.mxu0
    %vm1869 = vcmask 64512
    %v1870 = vsel %vm1869, %v1334, -inf
    %1871 = vmax.xlane.f32.xlu0 %v1870
    %v1872 = vpop.xlane.xlu0 %1871
    %v1873 = vsel %vm1869, %v1410, -inf
    %1874 = vmax.xlane.f32.xlu0 %v1873
    %v1875 = vpop.xlane.xlu0 %1874
    %v1876 = vsel %vm1869, %v1486, -inf
    %1877 = vmax.xlane.f32.xlu0 %v1876
    %v1878 = vpop.xlane.xlu0 %1877
    %v1879 = vsel %vm1869, %v1562, -inf
    %1880 = vmax.xlane.f32.xlu0 %v1879
    %v1881 = vpop.xlane.xlu0 %1880
    %v1882 = vsel %vm1869, %v1638, -inf
    %1883 = vmax.xlane.f32.xlu0 %v1882
    %v1884 = vpop.xlane.xlu0 %1883
    %v1885 = vsel %vm1869, %v1714, -inf
    %1886 = vmax.xlane.f32.xlu0 %v1885
    %v1887 = vpop.xlane.xlu0 %1886
    %v1888 = vsel %vm1869, %v1790, -inf
    %1889 = vmax.xlane.f32.xlu0 %v1888
    %v1890 = vpop.xlane.xlu0 %1889
    %v1891 = vsel %vm1869, %v1866, -inf
    %1892 = vmax.xlane.f32.xlu0 %v1891
    %v1893 = vpop.xlane.xlu0 %1892
    %v1894 = vsub.f32 %v1334, %v1872
    %v1895 = vsub.f32 %v1410, %v1875
    %v1896 = vsub.f32 %v1486, %v1878
    %v1897 = vsub.f32 %v1562, %v1881
    %v1898 = vsub.f32 %v1638, %v1884
    %v1899 = vsub.f32 %v1714, %v1887
    %v1900 = vsub.f32 %v1790, %v1890
    %v1901 = vsub.f32 %v1866, %v1893
    %v1902 = vmul.f32 %v1894, 1.442695
    %v1903 = vpow.pop %v1902
    %v1904 = vmul.f32 %v1895, 1.442695
    %v1905 = vpow.pop %v1904
    %v1906 = vmul.f32 %v1896, 1.442695
    %v1907 = vpow.pop %v1906
    %v1908 = vmul.f32 %v1897, 1.442695
    %v1909 = vpow.pop %v1908
    %v1910 = vmul.f32 %v1898, 1.442695
    %v1911 = vpow.pop %v1910
    %v1912 = vmul.f32 %v1899, 1.442695
    %v1913 = vpow.pop %v1912
    %v1914 = vmul.f32 %v1900, 1.442695
    %v1915 = vpow.pop %v1914
    %v1916 = vmul.f32 %v1901, 1.442695
    %v1917 = vpow.pop %v1916
    %v1918 = vsel %vm1869, %v1903, 0.0
    %1919 = vadd.xlane.f32.xlu0 %v1918
    %v1920 = vpop.xlane.xlu0 %1919
    %v1921 = vsel %vm1869, %v1905, 0.0
    %1922 = vadd.xlane.f32.xlu0 %v1921
    %v1923 = vpop.xlane.xlu0 %1922
    %v1924 = vsel %vm1869, %v1907, 0.0
    %1925 = vadd.xlane.f32.xlu0 %v1924
    %v1926 = vpop.xlane.xlu0 %1925
    %v1927 = vsel %vm1869, %v1909, 0.0
    %1928 = vadd.xlane.f32.xlu0 %v1927
    %v1929 = vpop.xlane.xlu0 %1928
    %v1930 = vsel %vm1869, %v1911, 0.0
    %1931 = vadd.xlane.f32.xlu0 %v1930
    %v1932 = vpop.xlane.xlu0 %1931
    %v1933 = vsel %vm1869, %v1913, 0.0
    %1934 = vadd.xlane.f32.xlu0 %v1933
    %v1935 = vpop.xlane.xlu0 %1934
    %v1936 = vsel %vm1869, %v1915, 0.0
    %1937 = vadd.xlane.f32.xlu0 %v1936
    %v1938 = vpop.xlane.xlu0 %1937
    %v1939 = vsel %vm1869, %v1917, 0.0
    %1940 = vadd.xlane.f32.xlu0 %v1939
    %v1941 = vpop.xlane.xlu0 %1940
    %v1943 = vsel %vm1869, %v1903, 0
    %1945 = vmatprep.subr.mxu0 0.0
    %1946 = vmatpush1.msra.mxu0 %v1188
    %1947 = vmatprep.subr.mxu0 0.0
    %1948 = vmatpush1.msra.mxu0 0.0
    %1949 = vmatprep.subr.mxu0 0.0
    %1950 = vmatpush1.msra.mxu0 0.0
    %1951 = vmatprep.subr.mxu0 0.0
    %1952 = vmatpush1.msra.mxu0 0.0
    %1953 = vmatprep.subr.mxu0 0.0
    %1954 = vmatpush1.msra.mxu0 0.0
    %1955 = vmatprep.subr.mxu0 0.0
    %1956 = vmatpush1.msra.mxu0 0.0
    %1957 = vmatprep.subr.mxu0 0.0
    %1958 = vmatpush1.msra.mxu0 0.0
    %1959 = vmatprep.subr.mxu0 0.0
    %1960 = vmatpush1.msra.mxu0 0.0
    %1961 = vmatprep.subr.mxu0 0.0
    %1962 = vmatpush1.msra.mxu0 0.0
    %1963 = vmatprep.subr.mxu0 0.0
    %1964 = vmatpush1.msra.mxu0 0.0
    %1965 = vmatprep.subr.mxu0 0.0
    %1966 = vmatpush1.msra.mxu0 0.0
    %1967 = vmatprep.subr.mxu0 0.0
    %1968 = vmatpush1.msra.mxu0 0.0
    %1969 = vmatprep.subr.mxu0 0.0
    %1970 = vmatpush1.msra.mxu0 0.0
    %1971 = vmatprep.subr.mxu0 0.0
    %1972 = vmatpush1.msra.mxu0 0.0
    %1973 = vmatprep.subr.mxu0 0.0
    %1974 = vmatpush1.msra.mxu0 0.0
    %1975 = vmatprep.subr.mxu0 0.0
    %1976 = vmatpush1.msra.mxu0 0.0
    %1977 = vmatprep.subr.mxu0 0.0
    %1978 = vmatpush1.msra.mxu0 0.0
    %1979 = vmatprep.subr.mxu0 0.0
    %1980 = vmatpush1.msra.mxu0 0.0
    %1981 = vmatprep.subr.mxu0 0.0
    %1982 = vmatpush1.msra.mxu0 0.0
    %1983 = vmatprep.subr.mxu0 0.0
    %1984 = vmatpush1.msra.mxu0 0.0
    %1985 = vmatprep.subr.mxu0 0.0
    %1986 = vmatpush1.msra.mxu0 0.0
    %1987 = vmatprep.subr.mxu0 0.0
    %1988 = vmatpush1.msra.mxu0 0.0
    %1989 = vmatprep.subr.mxu0 0.0
    %1990 = vmatpush1.msra.mxu0 0.0
    %1991 = vmatprep.subr.mxu0 0.0
    %1992 = vmatpush1.msra.mxu0 0.0
    %1993 = vmatprep.subr.mxu0 0.0
    %1994 = vmatpush1.msra.mxu0 0.0
    %1995 = vmatprep.subr.mxu0 0.0
    %1996 = vmatpush1.msra.mxu0 0.0
    %1997 = vmatprep.subr.mxu0 0.0
    %1998 = vmatpush1.msra.mxu0 0.0
    %1999 = vmatprep.subr.mxu0 0.0
    %2000 = vmatpush1.msra.mxu0 0.0
    %2001 = vmatprep.subr.mxu0 0.0
    %2002 = vmatpush1.msra.mxu0 0.0
    %2003 = vmatprep.subr.mxu0 0.0
    %2004 = vmatpush1.msra.mxu0 0.0
    %2005 = vmatprep.subr.mxu0 0.0
    %2006 = vmatpush1.msra.mxu0 0.0
    %2007 = vmatprep.subr.mxu0 0.0
    %2008 = vmatpush1.msra.mxu0 0.0
    %2009 = vmatprep.mubr.f32.mxu0 0.0
    %2010 = vmatmul.mubr.f32.gmra.mrb[0].mxu0 %v1943
    %v2011 = vpop.f32.mrb[0].mxu0
    %v2012 = vadd.f32 0.0, %v2011
    %v2013 = vpop.f32.mrb[0].mxu0
    %2014 = vdwg.mxu0
    %v2016 = vsel %vm1869, %v1905, 0
    %2018 = vmatprep.subr.mxu0 0.0
    %2019 = vmatpush1.msra.mxu0 %v1189
    %2020 = vmatprep.subr.mxu0 0.0
    %2021 = vmatpush1.msra.mxu0 0.0
    %2022 = vmatprep.subr.mxu0 0.0
    %2023 = vmatpush1.msra.mxu0 0.0
    %2024 = vmatprep.subr.mxu0 0.0
    %2025 = vmatpush1.msra.mxu0 0.0
    %2026 = vmatprep.subr.mxu0 0.0
    %2027 = vmatpush1.msra.mxu0 0.0
    %2028 = vmatprep.subr.mxu0 0.0
    %2029 = vmatpush1.msra.mxu0 0.0
    %2030 = vmatprep.subr.mxu0 0.0
    %2031 = vmatpush1.msra.mxu0 0.0
    %2032 = vmatprep.subr.mxu0 0.0
    %2033 = vmatpush1.msra.mxu0 0.0
    %2034 = vmatprep.subr.mxu0 0.0
    %2035 = vmatpush1.msra.mxu0 0.0
    %2036 = vmatprep.subr.mxu0 0.0
    %2037 = vmatpush1.msra.mxu0 0.0
    %2038 = vmatprep.subr.mxu0 0.0
    %2039 = vmatpush1.msra.mxu0 0.0
    %2040 = vmatprep.subr.mxu0 0.0
    %2041 = vmatpush1.msra.mxu0 0.0
    %2042 = vmatprep.subr.mxu0 0.0
    %2043 = vmatpush1.msra.mxu0 0.0
    %2044 = vmatprep.subr.mxu0 0.0
    %2045 = vmatpush1.msra.mxu0 0.0
    %2046 = vmatprep.subr.mxu0 0.0
    %2047 = vmatpush1.msra.mxu0 0.0
    %2048 = vmatprep.subr.mxu0 0.0
    %2049 = vmatpush1.msra.mxu0 0.0
    %2050 = vmatprep.subr.mxu0 0.0
    %2051 = vmatpush1.msra.mxu0 0.0
    %2052 = vmatprep.subr.mxu0 0.0
    %2053 = vmatpush1.msra.mxu0 0.0
    %2054 = vmatprep.subr.mxu0 0.0
    %2055 = vmatpush1.msra.mxu0 0.0
    %2056 = vmatprep.subr.mxu0 0.0
    %2057 = vmatpush1.msra.mxu0 0.0
    %2058 = vmatprep.subr.mxu0 0.0
    %2059 = vmatpush1.msra.mxu0 0.0
    %2060 = vmatprep.subr.mxu0 0.0
    %2061 = vmatpush1.msra.mxu0 0.0
    %2062 = vmatprep.subr.mxu0 0.0
    %2063 = vmatpush1.msra.mxu0 0.0
    %2064 = vmatprep.subr.mxu0 0.0
    %2065 = vmatpush1.msra.mxu0 0.0
    %2066 = vmatprep.subr.mxu0 0.0
    %2067 = vmatpush1.msra.mxu0 0.0
    %2068 = vmatprep.subr.mxu0 0.0
    %2069 = vmatpush1.msra.mxu0 0.0
    %2070 = vmatprep.subr.mxu0 0.0
    %2071 = vmatpush1.msra.mxu0 0.0
    %2072 = vmatprep.subr.mxu0 0.0
    %2073 = vmatpush1.msra.mxu0 0.0
    %2074 = vmatprep.subr.mxu0 0.0
    %2075 = vmatpush1.msra.mxu0 0.0
    %2076 = vmatprep.subr.mxu0 0.0
    %2077 = vmatpush1.msra.mxu0 0.0
    %2078 = vmatprep.subr.mxu0 0.0
    %2079 = vmatpush1.msra.mxu0 0.0
    %2080 = vmatprep.subr.mxu0 0.0
    %2081 = vmatpush1.msra.mxu0 0.0
    %2082 = vmatprep.mubr.f32.mxu0 0.0
    %2083 = vmatmul.mubr.f32.gmra.mrb[0].mxu0 %v2016
    %v2084 = vpop.f32.mrb[0].mxu0
    %v2085 = vadd.f32 0.0, %v2084
    %v2086 = vpop.f32.mrb[0].mxu0
    %2087 = vdwg.mxu0
    %v2089 = vsel %vm1869, %v1907, 0
    %2091 = vmatprep.subr.mxu0 0.0
    %2092 = vmatpush1.msra.mxu0 %v1190
    %2093 = vmatprep.subr.mxu0 0.0
    %2094 = vmatpush1.msra.mxu0 0.0
    %2095 = vmatprep.subr.mxu0 0.0
    %2096 = vmatpush1.msra.mxu0 0.0
    %2097 = vmatprep.subr.mxu0 0.0
    %2098 = vmatpush1.msra.mxu0 0.0
    %2099 = vmatprep.subr.mxu0 0.0
    %2100 = vmatpush1.msra.mxu0 0.0
    %2101 = vmatprep.subr.mxu0 0.0
    %2102 = vmatpush1.msra.mxu0 0.0
    %2103 = vmatprep.subr.mxu0 0.0
    %2104 = vmatpush1.msra.mxu0 0.0
    %2105 = vmatprep.subr.mxu0 0.0
    %2106 = vmatpush1.msra.mxu0 0.0
    %2107 = vmatprep.subr.mxu0 0.0
    %2108 = vmatpush1.msra.mxu0 0.0
    %2109 = vmatprep.subr.mxu0 0.0
    %2110 = vmatpush1.msra.mxu0 0.0
    %2111 = vmatprep.subr.mxu0 0.0
    %2112 = vmatpush1.msra.mxu0 0.0
    %2113 = vmatprep.subr.mxu0 0.0
    %2114 = vmatpush1.msra.mxu0 0.0
    %2115 = vmatprep.subr.mxu0 0.0
    %2116 = vmatpush1.msra.mxu0 0.0
    %2117 = vmatprep.subr.mxu0 0.0
    %2118 = vmatpush1.msra.mxu0 0.0
    %2119 = vmatprep.subr.mxu0 0.0
    %2120 = vmatpush1.msra.mxu0 0.0
    %2121 = vmatprep.subr.mxu0 0.0
    %2122 = vmatpush1.msra.mxu0 0.0
    %2123 = vmatprep.subr.mxu0 0.0
    %2124 = vmatpush1.msra.mxu0 0.0
    %2125 = vmatprep.subr.mxu0 0.0
    %2126 = vmatpush1.msra.mxu0 0.0
    %2127 = vmatprep.subr.mxu0 0.0
    %2128 = vmatpush1.msra.mxu0 0.0
    %2129 = vmatprep.subr.mxu0 0.0
    %2130 = vmatpush1.msra.mxu0 0.0
    %2131 = vmatprep.subr.mxu0 0.0
    %2132 = vmatpush1.msra.mxu0 0.0
    %2133 = vmatprep.subr.mxu0 0.0
    %2134 = vmatpush1.msra.mxu0 0.0
    %2135 = vmatprep.subr.mxu0 0.0
    %2136 = vmatpush1.msra.mxu0 0.0
    %2137 = vmatprep.subr.mxu0 0.0
    %2138 = vmatpush1.msra.mxu0 0.0
    %2139 = vmatprep.subr.mxu0 0.0
    %2140 = vmatpush1.msra.mxu0 0.0
    %2141 = vmatprep.subr.mxu0 0.0
    %2142 = vmatpush1.msra.mxu0 0.0
    %2143 = vmatprep.subr.mxu0 0.0
    %2144 = vmatpush1.msra.mxu0 0.0
    %2145 = vmatprep.subr.mxu0 0.0
    %2146 = vmatpush1.msra.mxu0 0.0
    %2147 = vmatprep.subr.mxu0 0.0
    %2148 = vmatpush1.msra.mxu0 0.0
    %2149 = vmatprep.subr.mxu0 0.0
    %2150 = vmatpush1.msra.mxu0 0.0
    %2151 = vmatprep.subr.mxu0 0.0
    %2152 = vmatpush1.msra.mxu0 0.0
    %2153 = vmatprep.subr.mxu0 0.0
    %2154 = vmatpush1.msra.mxu0 0.0
    %2155 = vmatprep.mubr.f32.mxu0 0.0
    %2156 = vmatmul.mubr.f32.gmra.mrb[0].mxu0 %v2089
    %v2157 = vpop.f32.mrb[0].mxu0
    %v2158 = vadd.f32 0.0, %v2157
    %v2159 = vpop.f32.mrb[0].mxu0
    %2160 = vdwg.mxu0
    %v2162 = vsel %vm1869, %v1909, 0
    %2164 = vmatprep.subr.mxu0 0.0
    %2165 = vmatpush1.msra.mxu0 %v1191
    %2166 = vmatprep.subr.mxu0 0.0
    %2167 = vmatpush1.msra.mxu0 0.0
    %2168 = vmatprep.subr.mxu0 0.0
    %2169 = vmatpush1.msra.mxu0 0.0
    %2170 = vmatprep.subr.mxu0 0.0
    %2171 = vmatpush1.msra.mxu0 0.0
    %2172 = vmatprep.subr.mxu0 0.0
    %2173 = vmatpush1.msra.mxu0 0.0
    %2174 = vmatprep.subr.mxu0 0.0
    %2175 = vmatpush1.msra.mxu0 0.0
    %2176 = vmatprep.subr.mxu0 0.0
    %2177 = vmatpush1.msra.mxu0 0.0
    %2178 = vmatprep.subr.mxu0 0.0
    %2179 = vmatpush1.msra.mxu0 0.0
    %2180 = vmatprep.subr.mxu0 0.0
    %2181 = vmatpush1.msra.mxu0 0.0
    %2182 = vmatprep.subr.mxu0 0.0
    %2183 = vmatpush1.msra.mxu0 0.0
    %2184 = vmatprep.subr.mxu0 0.0
    %2185 = vmatpush1.msra.mxu0 0.0
    %2186 = vmatprep.subr.mxu0 0.0
    %2187 = vmatpush1.msra.mxu0 0.0
    %2188 = vmatprep.subr.mxu0 0.0
    %2189 = vmatpush1.msra.mxu0 0.0
    %2190 = vmatprep.subr.mxu0 0.0
    %2191 = vmatpush1.msra.mxu0 0.0
    %2192 = vmatprep.subr.mxu0 0.0
    %2193 = vmatpush1.msra.mxu0 0.0
    %2194 = vmatprep.subr.mxu0 0.0
    %2195 = vmatpush1.msra.mxu0 0.0
    %2196 = vmatprep.subr.mxu0 0.0
    %2197 = vmatpush1.msra.mxu0 0.0
    %2198 = vmatprep.subr.mxu0 0.0
    %2199 = vmatpush1.msra.mxu0 0.0
    %2200 = vmatprep.subr.mxu0 0.0
    %2201 = vmatpush1.msra.mxu0 0.0
    %2202 = vmatprep.subr.mxu0 0.0
    %2203 = vmatpush1.msra.mxu0 0.0
    %2204 = vmatprep.subr.mxu0 0.0
    %2205 = vmatpush1.msra.mxu0 0.0
    %2206 = vmatprep.subr.mxu0 0.0
    %2207 = vmatpush1.msra.mxu0 0.0
    %2208 = vmatprep.subr.mxu0 0.0
    %2209 = vmatpush1.msra.mxu0 0.0
    %2210 = vmatprep.subr.mxu0 0.0
    %2211 = vmatpush1.msra.mxu0 0.0
    %2212 = vmatprep.subr.mxu0 0.0
    %2213 = vmatpush1.msra.mxu0 0.0
    %2214 = vmatprep.subr.mxu0 0.0
    %2215 = vmatpush1.msra.mxu0 0.0
    %2216 = vmatprep.subr.mxu0 0.0
    %2217 = vmatpush1.msra.mxu0 0.0
    %2218 = vmatprep.subr.mxu0 0.0
    %2219 = vmatpush1.msra.mxu0 0.0
    %2220 = vmatprep.subr.mxu0 0.0
    %2221 = vmatpush1.msra.mxu0 0.0
    %2222 = vmatprep.subr.mxu0 0.0
    %2223 = vmatpush1.msra.mxu0 0.0
    %2224 = vmatprep.subr.mxu0 0.0
    %2225 = vmatpush1.msra.mxu0 0.0
    %2226 = vmatprep.subr.mxu0 0.0
    %2227 = vmatpush1.msra.mxu0 0.0
    %2228 = vmatprep.mubr.f32.mxu0 0.0
    %2229 = vmatmul.mubr.f32.gmra.mrb[0].mxu0 %v2162
    %v2230 = vpop.f32.mrb[0].mxu0
    %v2231 = vadd.f32 0.0, %v2230
    %v2232 = vpop.f32.mrb[0].mxu0
    %2233 = vdwg.mxu0
    %v2235 = vsel %vm1869, %v1911, 0
    %2237 = vmatprep.subr.mxu0 0.0
    %2238 = vmatpush1.msra.mxu0 %v1256
    %2239 = vmatprep.subr.mxu0 0.0
    %2240 = vmatpush1.msra.mxu0 0.0
    %2241 = vmatprep.subr.mxu0 0.0
    %2242 = vmatpush1.msra.mxu0 0.0
    %2243 = vmatprep.subr.mxu0 0.0
    %2244 = vmatpush1.msra.mxu0 0.0
    %2245 = vmatprep.subr.mxu0 0.0
    %2246 = vmatpush1.msra.mxu0 0.0
    %2247 = vmatprep.subr.mxu0 0.0
    %2248 = vmatpush1.msra.mxu0 0.0
    %2249 = vmatprep.subr.mxu0 0.0
    %2250 = vmatpush1.msra.mxu0 0.0
    %2251 = vmatprep.subr.mxu0 0.0
    %2252 = vmatpush1.msra.mxu0 0.0
    %2253 = vmatprep.subr.mxu0 0.0
    %2254 = vmatpush1.msra.mxu0 0.0
    %2255 = vmatprep.subr.mxu0 0.0
    %2256 = vmatpush1.msra.mxu0 0.0
    %2257 = vmatprep.subr.mxu0 0.0
    %2258 = vmatpush1.msra.mxu0 0.0
    %2259 = vmatprep.subr.mxu0 0.0
    %2260 = vmatpush1.msra.mxu0 0.0
    %2261 = vmatprep.subr.mxu0 0.0
    %2262 = vmatpush1.msra.mxu0 0.0
    %2263 = vmatprep.subr.mxu0 0.0
    %2264 = vmatpush1.msra.mxu0 0.0
    %2265 = vmatprep.subr.mxu0 0.0
    %2266 = vmatpush1.msra.mxu0 0.0
    %2267 = vmatprep.subr.mxu0 0.0
    %2268 = vmatpush1.msra.mxu0 0.0
    %2269 = vmatprep.subr.mxu0 0.0
    %2270 = vmatpush1.msra.mxu0 0.0
    %2271 = vmatprep.subr.mxu0 0.0
    %2272 = vmatpush1.msra.mxu0 0.0
    %2273 = vmatprep.subr.mxu0 0.0
    %2274 = vmatpush1.msra.mxu0 0.0
    %2275 = vmatprep.subr.mxu0 0.0
    %2276 = vmatpush1.msra.mxu0 0.0
    %2277 = vmatprep.subr.mxu0 0.0
    %2278 = vmatpush1.msra.mxu0 0.0
    %2279 = vmatprep.subr.mxu0 0.0
    %2280 = vmatpush1.msra.mxu0 0.0
    %2281 = vmatprep.subr.mxu0 0.0
    %2282 = vmatpush1.msra.mxu0 0.0
    %2283 = vmatprep.subr.mxu0 0.0
    %2284 = vmatpush1.msra.mxu0 0.0
    %2285 = vmatprep.subr.mxu0 0.0
    %2286 = vmatpush1.msra.mxu0 0.0
    %2287 = vmatprep.subr.mxu0 0.0
    %2288 = vmatpush1.msra.mxu0 0.0
    %2289 = vmatprep.subr.mxu0 0.0
    %2290 = vmatpush1.msra.mxu0 0.0
    %2291 = vmatprep.subr.mxu0 0.0
    %2292 = vmatpush1.msra.mxu0 0.0
    %2293 = vmatprep.subr.mxu0 0.0
    %2294 = vmatpush1.msra.mxu0 0.0
    %2295 = vmatprep.subr.mxu0 0.0
    %2296 = vmatpush1.msra.mxu0 0.0
    %2297 = vmatprep.subr.mxu0 0.0
    %2298 = vmatpush1.msra.mxu0 0.0
    %2299 = vmatprep.subr.mxu0 0.0
    %2300 = vmatpush1.msra.mxu0 0.0
    %2301 = vmatprep.mubr.f32.mxu0 0.0
    %2302 = vmatmul.mubr.f32.gmra.mrb[0].mxu0 %v2235
    %v2303 = vpop.f32.mrb[0].mxu0
    %v2304 = vadd.f32 0.0, %v2303
    %v2305 = vpop.f32.mrb[0].mxu0
    %2306 = vdwg.mxu0
    %v2308 = vsel %vm1869, %v1913, 0
    %2310 = vmatprep.subr.mxu0 0.0
    %2311 = vmatpush1.msra.mxu0 %v1257
    %2312 = vmatprep.subr.mxu0 0.0
    %2313 = vmatpush1.msra.mxu0 0.0
    %2314 = vmatprep.subr.mxu0 0.0
    %2315 = vmatpush1.msra.mxu0 0.0
    %2316 = vmatprep.subr.mxu0 0.0
    %2317 = vmatpush1.msra.mxu0 0.0
    %2318 = vmatprep.subr.mxu0 0.0
    %2319 = vmatpush1.msra.mxu0 0.0
    %2320 = vmatprep.subr.mxu0 0.0
    %2321 = vmatpush1.msra.mxu0 0.0
    %2322 = vmatprep.subr.mxu0 0.0
    %2323 = vmatpush1.msra.mxu0 0.0
    %2324 = vmatprep.subr.mxu0 0.0
    %2325 = vmatpush1.msra.mxu0 0.0
    %2326 = vmatprep.subr.mxu0 0.0
    %2327 = vmatpush1.msra.mxu0 0.0
    %2328 = vmatprep.subr.mxu0 0.0
    %2329 = vmatpush1.msra.mxu0 0.0
    %2330 = vmatprep.subr.mxu0 0.0
    %2331 = vmatpush1.msra.mxu0 0.0
    %2332 = vmatprep.subr.mxu0 0.0
    %2333 = vmatpush1.msra.mxu0 0.0
    %2334 = vmatprep.subr.mxu0 0.0
    %2335 = vmatpush1.msra.mxu0 0.0
    %2336 = vmatprep.subr.mxu0 0.0
    %2337 = vmatpush1.msra.mxu0 0.0
    %2338 = vmatprep.subr.mxu0 0.0
    %2339 = vmatpush1.msra.mxu0 0.0
    %2340 = vmatprep.subr.mxu0 0.0
    %2341 = vmatpush1.msra.mxu0 0.0
    %2342 = vmatprep.subr.mxu0 0.0
    %2343 = vmatpush1.msra.mxu0 0.0
    %2344 = vmatprep.subr.mxu0 0.0
    %2345 = vmatpush1.msra.mxu0 0.0
    %2346 = vmatprep.subr.mxu0 0.0
    %2347 = vmatpush1.msra.mxu0 0.0
    %2348 = vmatprep.subr.mxu0 0.0
    %2349 = vmatpush1.msra.mxu0 0.0
    %2350 = vmatprep.subr.mxu0 0.0
    %2351 = vmatpush1.msra.mxu0 0.0
    %2352 = vmatprep.subr.mxu0 0.0
    %2353 = vmatpush1.msra.mxu0 0.0
    %2354 = vmatprep.subr.mxu0 0.0
    %2355 = vmatpush1.msra.mxu0 0.0
    %2356 = vmatprep.subr.mxu0 0.0
    %2357 = vmatpush1.msra.mxu0 0.0
    %2358 = vmatprep.subr.mxu0 0.0
    %2359 = vmatpush1.msra.mxu0 0.0
    %2360 = vmatprep.subr.mxu0 0.0
    %2361 = vmatpush1.msra.mxu0 0.0
    %2362 = vmatprep.subr.mxu0 0.0
    %2363 = vmatpush1.msra.mxu0 0.0
    %2364 = vmatprep.subr.mxu0 0.0
    %2365 = vmatpush1.msra.mxu0 0.0
    %2366 = vmatprep.subr.mxu0 0.0
    %2367 = vmatpush1.msra.mxu0 0.0
    %2368 = vmatprep.subr.mxu0 0.0
    %2369 = vmatpush1.msra.mxu0 0.0
    %2370 = vmatprep.subr.mxu0 0.0
    %2371 = vmatpush1.msra.mxu0 0.0
    %2372 = vmatprep.subr.mxu0 0.0
    %2373 = vmatpush1.msra.mxu0 0.0
    %2374 = vmatprep.mubr.f32.mxu0 0.0
    %2375 = vmatmul.mubr.f32.gmra.mrb[0].mxu0 %v2308
    %v2376 = vpop.f32.mrb[0].mxu0
    %v2377 = vadd.f32 0.0, %v2376
    %v2378 = vpop.f32.mrb[0].mxu0
    %2379 = vdwg.mxu0
    %v2381 = vsel %vm1869, %v1915, 0
    %2383 = vmatprep.subr.mxu0 0.0
    %2384 = vmatpush1.msra.mxu0 %v1258
    %2385 = vmatprep.subr.mxu0 0.0
    %2386 = vmatpush1.msra.mxu0 0.0
    %2387 = vmatprep.subr.mxu0 0.0
    %2388 = vmatpush1.msra.mxu0 0.0
    %2389 = vmatprep.subr.mxu0 0.0
    %2390 = vmatpush1.msra.mxu0 0.0
    %2391 = vmatprep.subr.mxu0 0.0
    %2392 = vmatpush1.msra.mxu0 0.0
    %2393 = vmatprep.subr.mxu0 0.0
    %2394 = vmatpush1.msra.mxu0 0.0
    %2395 = vmatprep.subr.mxu0 0.0
    %2396 = vmatpush1.msra.mxu0 0.0
    %2397 = vmatprep.subr.mxu0 0.0
    %2398 = vmatpush1.msra.mxu0 0.0
    %2399 = vmatprep.subr.mxu0 0.0
    %2400 = vmatpush1.msra.mxu0 0.0
    %2401 = vmatprep.subr.mxu0 0.0
    %2402 = vmatpush1.msra.mxu0 0.0
    %2403 = vmatprep.subr.mxu0 0.0
    %2404 = vmatpush1.msra.mxu0 0.0
    %2405 = vmatprep.subr.mxu0 0.0
    %2406 = vmatpush1.msra.mxu0 0.0
    %2407 = vmatprep.subr.mxu0 0.0
    %2408 = vmatpush1.msra.mxu0 0.0
    %2409 = vmatprep.subr.mxu0 0.0
    %2410 = vmatpush1.msra.mxu0 0.0
    %2411 = vmatprep.subr.mxu0 0.0
    %2412 = vmatpush1.msra.mxu0 0.0
    %2413 = vmatprep.subr.mxu0 0.0
    %2414 = vmatpush1.msra.mxu0 0.0
    %2415 = vmatprep.subr.mxu0 0.0
    %2416 = vmatpush1.msra.mxu0 0.0
    %2417 = vmatprep.subr.mxu0 0.0
    %2418 = vmatpush1.msra.mxu0 0.0
    %2419 = vmatprep.subr.mxu0 0.0
    %2420 = vmatpush1.msra.mxu0 0.0
    %2421 = vmatprep.subr.mxu0 0.0
    %2422 = vmatpush1.msra.mxu0 0.0
    %2423 = vmatprep.subr.mxu0 0.0
    %2424 = vmatpush1.msra.mxu0 0.0
    %2425 = vmatprep.subr.mxu0 0.0
    %2426 = vmatpush1.msra.mxu0 0.0
    %2427 = vmatprep.subr.mxu0 0.0
    %2428 = vmatpush1.msra.mxu0 0.0
    %2429 = vmatprep.subr.mxu0 0.0
    %2430 = vmatpush1.msra.mxu0 0.0
    %2431 = vmatprep.subr.mxu0 0.0
    %2432 = vmatpush1.msra.mxu0 0.0
    %2433 = vmatprep.subr.mxu0 0.0
    %2434 = vmatpush1.msra.mxu0 0.0
    %2435 = vmatprep.subr.mxu0 0.0
    %2436 = vmatpush1.msra.mxu0 0.0
    %2437 = vmatprep.subr.mxu0 0.0
    %2438 = vmatpush1.msra.mxu0 0.0
    %2439 = vmatprep.subr.mxu0 0.0
    %2440 = vmatpush1.msra.mxu0 0.0
    %2441 = vmatprep.subr.mxu0 0.0
    %2442 = vmatpush1.msra.mxu0 0.0
    %2443 = vmatprep.subr.mxu0 0.0
    %2444 = vmatpush1.msra.mxu0 0.0
    %2445 = vmatprep.subr.mxu0 0.0
    %2446 = vmatpush1.msra.mxu0 0.0
    %2447 = vmatprep.mubr.f32.mxu0 0.0
    %2448 = vmatmul.mubr.f32.gmra.mrb[0].mxu0 %v2381
    %v2449 = vpop.f32.mrb[0].mxu0
    %v2450 = vadd.f32 0.0, %v2449
    %v2451 = vpop.f32.mrb[0].mxu0
    %2452 = vdwg.mxu0
    %v2454 = vsel %vm1869, %v1917, 0
    %2456 = vmatprep.subr.mxu0 0.0
    %2457 = vmatpush1.msra.mxu0 %v1259
    %2458 = vmatprep.subr.mxu0 0.0
    %2459 = vmatpush1.msra.mxu0 0.0
    %2460 = vmatprep.subr.mxu0 0.0
    %2461 = vmatpush1.msra.mxu0 0.0
    %2462 = vmatprep.subr.mxu0 0.0
    %2463 = vmatpush1.msra.mxu0 0.0
    %2464 = vmatprep.subr.mxu0 0.0
    %2465 = vmatpush1.msra.mxu0 0.0
    %2466 = vmatprep.subr.mxu0 0.0
    %2467 = vmatpush1.msra.mxu0 0.0
    %2468 = vmatprep.subr.mxu0 0.0
    %2469 = vmatpush1.msra.mxu0 0.0
    %2470 = vmatprep.subr.mxu0 0.0
    %2471 = vmatpush1.msra.mxu0 0.0
    %2472 = vmatprep.subr.mxu0 0.0
    %2473 = vmatpush1.msra.mxu0 0.0
    %2474 = vmatprep.subr.mxu0 0.0
    %2475 = vmatpush1.msra.mxu0 0.0
    %2476 = vmatprep.subr.mxu0 0.0
    %2477 = vmatpush1.msra.mxu0 0.0
    %2478 = vmatprep.subr.mxu0 0.0
    %2479 = vmatpush1.msra.mxu0 0.0
    %2480 = vmatprep.subr.mxu0 0.0
    %2481 = vmatpush1.msra.mxu0 0.0
    %2482 = vmatprep.subr.mxu0 0.0
    %2483 = vmatpush1.msra.mxu0 0.0
    %2484 = vmatprep.subr.mxu0 0.0
    %2485 = vmatpush1.msra.mxu0 0.0
    %2486 = vmatprep.subr.mxu0 0.0
    %2487 = vmatpush1.msra.mxu0 0.0
    %2488 = vmatprep.subr.mxu0 0.0
    %2489 = vmatpush1.msra.mxu0 0.0
    %2490 = vmatprep.subr.mxu0 0.0
    %2491 = vmatpush1.msra.mxu0 0.0
    %2492 = vmatprep.subr.mxu0 0.0
    %2493 = vmatpush1.msra.mxu0 0.0
    %2494 = vmatprep.subr.mxu0 0.0
    %2495 = vmatpush1.msra.mxu0 0.0
    %2496 = vmatprep.subr.mxu0 0.0
    %2497 = vmatpush1.msra.mxu0 0.0
    %2498 = vmatprep.subr.mxu0 0.0
    %2499 = vmatpush1.msra.mxu0 0.0
    %2500 = vmatprep.subr.mxu0 0.0
    %2501 = vmatpush1.msra.mxu0 0.0
    %2502 = vmatprep.subr.mxu0 0.0
    %2503 = vmatpush1.msra.mxu0 0.0
    %2504 = vmatprep.subr.mxu0 0.0
    %2505 = vmatpush1.msra.mxu0 0.0
    %2506 = vmatprep.subr.mxu0 0.0
    %2507 = vmatpush1.msra.mxu0 0.0
    %2508 = vmatprep.subr.mxu0 0.0
    %2509 = vmatpush1.msra.mxu0 0.0
    %2510 = vmatprep.subr.mxu0 0.0
    %2511 = vmatpush1.msra.mxu0 0.0
    %2512 = vmatprep.subr.mxu0 0.0
    %2513 = vmatpush1.msra.mxu0 0.0
    %2514 = vmatprep.subr.mxu0 0.0
    %2515 = vmatpush1.msra.mxu0 0.0
    %2516 = vmatprep.subr.mxu0 0.0
    %2517 = vmatpush1.msra.mxu0 0.0
    %2518 = vmatprep.subr.mxu0 0.0
    %2519 = vmatpush1.msra.mxu0 0.0
    %2520 = vmatprep.mubr.f32.mxu0 0.0
    %2521 = vmatmul.mubr.f32.gmra.mrb[0].mxu0 %v2454
    %v2522 = vpop.f32.mrb[0].mxu0
    %v2523 = vadd.f32 0.0, %v2522
    %v2524 = vpop.f32.mrb[0].mxu0
    %2525 = vdwg.mxu0
    %v2526 = vrcp.pop %v1920
    %v2527 = vrcp.pop %v1923
    %v2528 = vrcp.pop %v1926
    %v2529 = vrcp.pop %v1929
    %v2530 = vrcp.pop %v1932
    %v2531 = vrcp.pop %v1935
    %v2532 = vrcp.pop %v1938
    %v2533 = vrcp.pop %v1941
    %v2534 = vmul.f32 %v2012, %v2526
    %v2535 = vmul.f32 %v2085, %v2527
    %v2536 = vmul.f32 %v2158, %v2528
    %v2537 = vmul.f32 %v2231, %v2529
    %v2538 = vmul.f32 %v2304, %v2530
    %v2539 = vmul.f32 %v2377, %v2531
    %v2540 = vmul.f32 %v2450, %v2532
    %v2541 = vmul.f32 %v2523, %v2533
    %v2542 = vcombine.low %v2534, %v2536
    %v2543 = vcombine.high %v2534, %v2536
    %v2545 = vunpack.c.l.s4 1983009808
    %v2546 = vunpack.c.0.s8 %v2545
    %v2547 = vlaneseq
    %v2548 = vshrl.u32 %v2547, 7
    %v2549 = vsub.s32 %v2546, %v2548
    %v2550 = vrot.slane %v2542, %v2549
    %v2552 = vunpack.c.l.s4 1983009808
    %v2553 = vunpack.c.0.s8 %v2552
    %v2554 = vlaneseq
    %v2555 = vshrl.u32 %v2554, 7
    %v2556 = vsub.s32 %v2553, %v2555
    %v2557 = vrot.slane %v2543, %v2556
    %v2558 = vcombine.low %v2535, %v2537
    %v2559 = vcombine.high %v2535, %v2537
    %v2561 = vunpack.c.l.s4 1983009808
    %v2562 = vunpack.c.0.s8 %v2561
    %v2563 = vlaneseq
    %v2564 = vshrl.u32 %v2563, 7
    %v2565 = vsub.s32 %v2562, %v2564
    %v2566 = vrot.slane %v2558, %v2565
    %v2568 = vunpack.c.l.s4 1983009808
    %v2569 = vunpack.c.0.s8 %v2568
    %v2570 = vlaneseq
    %v2571 = vshrl.u32 %v2570, 7
    %v2572 = vsub.s32 %v2569, %v2571
    %v2573 = vrot.slane %v2559, %v2572
    %v2574 = vcombine.low %v2550, %v2566
    %v2575 = vcombine.high %v2550, %v2566
    %v2577 = vunpack.c.l.s4 1934713408
    %v2578 = vunpack.c.0.s8 %v2577
    %v2579 = vlaneseq
    %v2580 = vshrl.u32 %v2579, 7
    %v2581 = vsub.s32 %v2578, %v2580
    %v2582 = vrot.slane %v2574, %v2581
    %v2584 = vunpack.c.l.s4 1934713408
    %v2585 = vunpack.c.0.s8 %v2584
    %v2586 = vlaneseq
    %v2587 = vshrl.u32 %v2586, 7
    %v2588 = vsub.s32 %v2585, %v2587
    %v2589 = vrot.slane %v2575, %v2588
    %v2590 = vcombine.low %v2557, %v2573
    %v2591 = vcombine.high %v2557, %v2573
    %v2593 = vunpack.c.l.s4 1934713408
    %v2594 = vunpack.c.0.s8 %v2593
    %v2595 = vlaneseq
    %v2596 = vshrl.u32 %v2595, 7
    %v2597 = vsub.s32 %v2594, %v2596
    %v2598 = vrot.slane %v2590, %v2597
    %v2600 = vunpack.c.l.s4 1934713408
    %v2601 = vunpack.c.0.s8 %v2600
    %v2602 = vlaneseq
    %v2603 = vshrl.u32 %v2602, 7
    %v2604 = vsub.s32 %v2601, %v2603
    %v2605 = vrot.slane %v2591, %v2604
    %v2606 = vcombine.high %v2582, 0.0
    %v2607 = vcombine.high %v2589, 0.0
    %v2608 = vcombine.high %v2598, 0.0
    %v2609 = vcombine.high %v2605, 0.0
    %v2610 = vcombine.low %v2538, %v2540
    %v2611 = vcombine.high %v2538, %v2540
    %v2613 = vunpack.c.l.s4 1983009808
    %v2614 = vunpack.c.0.s8 %v2613
    %v2615 = vlaneseq
    %v2616 = vshrl.u32 %v2615, 7
    %v2617 = vsub.s32 %v2614, %v2616
    %v2618 = vrot.slane %v2610, %v2617
    %v2620 = vunpack.c.l.s4 1983009808
    %v2621 = vunpack.c.0.s8 %v2620
    %v2622 = vlaneseq
    %v2623 = vshrl.u32 %v2622, 7
    %v2624 = vsub.s32 %v2621, %v2623
    %v2625 = vrot.slane %v2611, %v2624
    %v2626 = vcombine.low %v2539, %v2541
    %v2627 = vcombine.high %v2539, %v2541
    %v2629 = vunpack.c.l.s4 1983009808
    %v2630 = vunpack.c.0.s8 %v2629
    %v2631 = vlaneseq
    %v2632 = vshrl.u32 %v2631, 7
    %v2633 = vsub.s32 %v2630, %v2632
    %v2634 = vrot.slane %v2626, %v2633
    %v2636 = vunpack.c.l.s4 1983009808
    %v2637 = vunpack.c.0.s8 %v2636
    %v2638 = vlaneseq
    %v2639 = vshrl.u32 %v2638, 7
    %v2640 = vsub.s32 %v2637, %v2639
    %v2641 = vrot.slane %v2627, %v2640
    %v2642 = vcombine.low %v2618, %v2634
    %v2643 = vcombine.high %v2618, %v2634
    %v2645 = vunpack.c.l.s4 1934713408
    %v2646 = vunpack.c.0.s8 %v2645
    %v2647 = vlaneseq
    %v2648 = vshrl.u32 %v2647, 7
    %v2649 = vsub.s32 %v2646, %v2648
    %v2650 = vrot.slane %v2642, %v2649
    %v2652 = vunpack.c.l.s4 1934713408
    %v2653 = vunpack.c.0.s8 %v2652
    %v2654 = vlaneseq
    %v2655 = vshrl.u32 %v2654, 7
    %v2656 = vsub.s32 %v2653, %v2655
    %v2657 = vrot.slane %v2643, %v2656
    %v2658 = vcombine.low %v2625, %v2641
    %v2659 = vcombine.high %v2625, %v2641
    %v2661 = vunpack.c.l.s4 1934713408
    %v2662 = vunpack.c.0.s8 %v2661
    %v2663 = vlaneseq
    %v2664 = vshrl.u32 %v2663, 7
    %v2665 = vsub.s32 %v2662, %v2664
    %v2666 = vrot.slane %v2658, %v2665
    %v2668 = vunpack.c.l.s4 1934713408
    %v2669 = vunpack.c.0.s8 %v2668
    %v2670 = vlaneseq
    %v2671 = vshrl.u32 %v2670, 7
    %v2672 = vsub.s32 %v2669, %v2671
    %v2673 = vrot.slane %v2659, %v2672
    %v2674 = vcombine.high %v2650, 0.0
    %v2675 = vcombine.high %v2657, 0.0
    %v2676 = vcombine.high %v2666, 0.0
    %v2677 = vcombine.high %v2673, 0.0
    %v2678 = vcombine.low %v2582, %v2606
    %v2680 = vunpack.c.l.s4 1983009808
    %v2681 = vunpack.c.0.s8 %v2680
    %v2682 = vlaneseq
    %v2683 = vshrl.u32 %v2682, 7
    %v2684 = vsub.s32 %v2681, %v2683
    %v2685 = vrot.slane %v2678, %v2684
    %v2686 = vcombine.low %v2650, %v2674
    %v2688 = vunpack.c.l.s4 1983009808
    %v2689 = vunpack.c.0.s8 %v2688
    %v2690 = vlaneseq
    %v2691 = vshrl.u32 %v2690, 7
    %v2692 = vsub.s32 %v2689, %v2691
    %v2693 = vrot.slane %v2686, %v2692
    %v2694 = vcombine.low %v2589, %v2607
    %v2696 = vunpack.c.l.s4 1983009808
    %v2697 = vunpack.c.0.s8 %v2696
    %v2698 = vlaneseq
    %v2699 = vshrl.u32 %v2698, 7
    %v2700 = vsub.s32 %v2697, %v2699
    %v2701 = vrot.slane %v2694, %v2700
    %v2702 = vcombine.low %v2657, %v2675
    %v2704 = vunpack.c.l.s4 1983009808
    %v2705 = vunpack.c.0.s8 %v2704
    %v2706 = vlaneseq
    %v2707 = vshrl.u32 %v2706, 7
    %v2708 = vsub.s32 %v2705, %v2707
    %v2709 = vrot.slane %v2702, %v2708
    %v2710 = vcombine.low %v2685, %v2693
    %v2711 = vcombine.high %v2685, %v2693
    %v2713 = vunpack.c.l.s4 1934713408
    %v2714 = vunpack.c.0.s8 %v2713
    %v2715 = vlaneseq
    %v2716 = vshrl.u32 %v2715, 7
    %v2717 = vsub.s32 %v2714, %v2716
    %v2718 = vrot.slane %v2710, %v2717
    %v2720 = vunpack.c.l.s4 1934713408
    %v2721 = vunpack.c.0.s8 %v2720
    %v2722 = vlaneseq
    %v2723 = vshrl.u32 %v2722, 7
    %v2724 = vsub.s32 %v2721, %v2723
    %v2725 = vrot.slane %v2711, %v2724
    %v2726 = vcombine.low %v2701, %v2709
    %v2727 = vcombine.high %v2701, %v2709
    %v2729 = vunpack.c.l.s4 1934713408
    %v2730 = vunpack.c.0.s8 %v2729
    %v2731 = vlaneseq
    %v2732 = vshrl.u32 %v2731, 7
    %v2733 = vsub.s32 %v2730, %v2732
    %v2734 = vrot.slane %v2726, %v2733
    %v2736 = vunpack.c.l.s4 1934713408
    %v2737 = vunpack.c.0.s8 %v2736
    %v2738 = vlaneseq
    %v2739 = vshrl.u32 %v2738, 7
    %v2740 = vsub.s32 %v2737, %v2739
    %v2741 = vrot.slane %v2727, %v2740
    %v2742 = vcombine.low %v2718, %v2734
    %v2743 = vcombine.high %v2718, %v2734
    %v2744 = vcombine.low %v2725, %v2741
    %v2745 = vcombine.high %v2725, %v2741
    %v2746 = vcombine.low %v2598, %v2608
    %v2748 = vunpack.c.l.s4 1983009808
    %v2749 = vunpack.c.0.s8 %v2748
    %v2750 = vlaneseq
    %v2751 = vshrl.u32 %v2750, 7
    %v2752 = vsub.s32 %v2749, %v2751
    %v2753 = vrot.slane %v2746, %v2752
    %v2754 = vcombine.low %v2666, %v2676
    %v2756 = vunpack.c.l.s4 1983009808
    %v2757 = vunpack.c.0.s8 %v2756
    %v2758 = vlaneseq
    %v2759 = vshrl.u32 %v2758, 7
    %v2760 = vsub.s32 %v2757, %v2759
    %v2761 = vrot.slane %v2754, %v2760
    %v2762 = vcombine.low %v2605, %v2609
    %v2764 = vunpack.c.l.s4 1983009808
    %v2765 = vunpack.c.0.s8 %v2764
    %v2766 = vlaneseq
    %v2767 = vshrl.u32 %v2766, 7
    %v2768 = vsub.s32 %v2765, %v2767
    %v2769 = vrot.slane %v2762, %v2768
    %v2770 = vcombine.low %v2673, %v2677
    %v2772 = vunpack.c.l.s4 1983009808
    %v2773 = vunpack.c.0.s8 %v2772
    %v2774 = vlaneseq
    %v2775 = vshrl.u32 %v2774, 7
    %v2776 = vsub.s32 %v2773, %v2775
    %v2777 = vrot.slane %v2770, %v2776
    %v2778 = vcombine.low %v2753, %v2761
    %v2779 = vcombine.high %v2753, %v2761
    %v2781 = vunpack.c.l.s4 1934713408
    %v2782 = vunpack.c.0.s8 %v2781
    %v2783 = vlaneseq
    %v2784 = vshrl.u32 %v2783, 7
    %v2785 = vsub.s32 %v2782, %v2784
    %v2786 = vrot.slane %v2778, %v2785
    %v2788 = vunpack.c.l.s4 1934713408
    %v2789 = vunpack.c.0.s8 %v2788
    %v2790 = vlaneseq
    %v2791 = vshrl.u32 %v2790, 7
    %v2792 = vsub.s32 %v2789, %v2791
    %v2793 = vrot.slane %v2779, %v2792
    %v2794 = vcombine.low %v2769, %v2777
    %v2795 = vcombine.high %v2769, %v2777
    %v2797 = vunpack.c.l.s4 1934713408
    %v2798 = vunpack.c.0.s8 %v2797
    %v2799 = vlaneseq
    %v2800 = vshrl.u32 %v2799, 7
    %v2801 = vsub.s32 %v2798, %v2800
    %v2802 = vrot.slane %v2794, %v2801
    %v2804 = vunpack.c.l.s4 1934713408
    %v2805 = vunpack.c.0.s8 %v2804
    %v2806 = vlaneseq
    %v2807 = vshrl.u32 %v2806, 7
    %v2808 = vsub.s32 %v2805, %v2807
    %v2809 = vrot.slane %v2795, %v2808
    %v2810 = vcombine.low %v2786, %v2802
    %v2811 = vcombine.high %v2786, %v2802
    %v2812 = vcombine.low %v2793, %v2809
    %v2813 = vcombine.high %v2793, %v2809
    %2816 = vrot.lane.b32.xlu0 %v2743, 32
    %v2817 = vpop.permute.xlu0 %2816
    %2818 = vrot.lane.b32.xlu0 %v2811, 32
    %v2819 = vpop.permute.xlu0 %2818
    %2824 = vrot.lane.b32.xlu0 %v2744, 64
    %v2825 = vpop.permute.xlu0 %2824
    %2826 = vrot.lane.b32.xlu0 %v2812, 64
    %v2827 = vpop.permute.xlu0 %2826
    %2832 = vrot.lane.b32.xlu0 %v2745, 96
    %v2833 = vpop.permute.xlu0 %2832
    %2834 = vrot.lane.b32.xlu0 %v2813, 96
    %v2835 = vpop.permute.xlu0 %2834
    %v2838 = vsel %vm1260, %v2742, %v2817
    %v2839 = vsel %vm1260, %v2810, %v2819
    %vm2840 = vcmask 523264
    %v2841 = vsel %vm2840, %v2838, %v2825
    %v2842 = vsel %vm2840, %v2839, %v2827
    %vm2843 = vcmask 785408
    %v2844 = vsel %vm2843, %v2841, %v2833
    %v2845 = vsel %vm2843, %v2842, %v2835
    %v2846 = vld [vmem:[#allocation7] sm:$0xff]
    %v2847 = vld [vmem:[#allocation7 + $0x8] sm:$0xff]
    %v2848 = vld [vmem:[#allocation7 + $0x10] sm:$0xff]
    %v2849 = vld [vmem:[#allocation7 + $0x18] sm:$0xff]
    %v2850 = vld [vmem:[#allocation7 + $0x20] sm:$0xff]
    %v2851 = vld [vmem:[#allocation7 + $0x28] sm:$0xff]
    %v2852 = vld [vmem:[#allocation7 + $0x30] sm:$0xff]
    %v2853 = vld [vmem:[#allocation7 + $0x38] sm:$0xff]
    %v2854 = vld [vmem:[#allocation7 + $0x40] sm:$0xff]
    %v2855 = vld [vmem:[#allocation7 + $0x48] sm:$0xff]
    %v2856 = vld [vmem:[#allocation7 + $0x50] sm:$0xff]
    %v2857 = vld [vmem:[#allocation7 + $0x58] sm:$0xff]
    %v2858 = vld [vmem:[#allocation7 + $0x60] sm:$0xff]
    %v2859 = vld [vmem:[#allocation7 + $0x68] sm:$0xff]
    %v2860 = vld [vmem:[#allocation7 + $0x70] sm:$0xff]
    %v2861 = vld [vmem:[#allocation7 + $0x78] sm:$0xff]
    %v2862 = vld [vmem:[%s4] sm:$0x1]
    %v2864 = vlaneseq
    %v2865 = vshrl.u32 %v2864, 7
    %v2866 = vsub.s32 0, %v2865
    %v2867 = vrot.slane %v2862, %v2866
    %2869 = vmatprep.subr.mxu0 0.0
    %2870 = vmatpush1.xpose.msra.mxu0 %v2846
    %2871 = vmatprep.subr.mxu0 0.0
    %2872 = vmatpush1.xpose.msra.mxu0 %v2847
    %2873 = vmatprep.subr.mxu0 0.0
    %2874 = vmatpush1.xpose.msra.mxu0 %v2848
    %2875 = vmatprep.subr.mxu0 0.0
    %2876 = vmatpush1.xpose.msra.mxu0 %v2849
    %2877 = vmatprep.subr.mxu0 0.0
    %2878 = vmatpush1.xpose.msra.mxu0 %v2850
    %2879 = vmatprep.subr.mxu0 0.0
    %2880 = vmatpush1.xpose.msra.mxu0 %v2851
    %2881 = vmatprep.subr.mxu0 0.0
    %2882 = vmatpush1.xpose.msra.mxu0 %v2852
    %2883 = vmatprep.subr.mxu0 0.0
    %2884 = vmatpush1.xpose.msra.mxu0 %v2853
    %2885 = vmatprep.subr.mxu0 0.0
    %2886 = vmatpush1.xpose.msra.mxu0 %v2854
    %2887 = vmatprep.subr.mxu0 0.0
    %2888 = vmatpush1.xpose.msra.mxu0 %v2855
    %2889 = vmatprep.subr.mxu0 0.0
    %2890 = vmatpush1.xpose.msra.mxu0 %v2856
    %2891 = vmatprep.subr.mxu0 0.0
    %2892 = vmatpush1.xpose.msra.mxu0 %v2857
    %2893 = vmatprep.subr.mxu0 0.0
    %2894 = vmatpush1.xpose.msra.mxu0 %v2858
    %2895 = vmatprep.subr.mxu0 0.0
    %2896 = vmatpush1.xpose.msra.mxu0 %v2859
    %2897 = vmatprep.subr.mxu0 0.0
    %2898 = vmatpush1.xpose.msra.mxu0 %v2860
    %2899 = vmatprep.subr.mxu0 0.0
    %2900 = vmatpush1.xpose.msra.mxu0 %v2861
    %2901 = vmatprep.subr.mxu0 0.0
    %2902 = vmatpush1.xpose.msra.mxu0 0.0
    %2903 = vmatprep.subr.mxu0 0.0
    %2904 = vmatpush1.xpose.msra.mxu0 0.0
    %2905 = vmatprep.subr.mxu0 0.0
    %2906 = vmatpush1.xpose.msra.mxu0 0.0
    %2907 = vmatprep.subr.mxu0 0.0
    %2908 = vmatpush1.xpose.msra.mxu0 0.0
    %2909 = vmatprep.subr.mxu0 0.0
    %2910 = vmatpush1.xpose.msra.mxu0 0.0
    %2911 = vmatprep.subr.mxu0 0.0
    %2912 = vmatpush1.xpose.msra.mxu0 0.0
    %2913 = vmatprep.subr.mxu0 0.0
    %2914 = vmatpush1.xpose.msra.mxu0 0.0
    %2915 = vmatprep.subr.mxu0 0.0
    %2916 = vmatpush1.xpose.msra.mxu0 0.0
    %2917 = vmatprep.subr.mxu0 0.0
    %2918 = vmatpush1.xpose.msra.mxu0 0.0
    %2919 = vmatprep.subr.mxu0 0.0
    %2920 = vmatpush1.xpose.msra.mxu0 0.0
    %2921 = vmatprep.subr.mxu0 0.0
    %2922 = vmatpush1.xpose.msra.mxu0 0.0
    %2923 = vmatprep.subr.mxu0 0.0
    %2924 = vmatpush1.xpose.msra.mxu0 0.0
    %2925 = vmatprep.subr.mxu0 0.0
    %2926 = vmatpush1.xpose.msra.mxu0 0.0
    %2927 = vmatprep.subr.mxu0 0.0
    %2928 = vmatpush1.xpose.msra.mxu0 0.0
    %2929 = vmatprep.subr.mxu0 0.0
    %2930 = vmatpush1.xpose.msra.mxu0 0.0
    %2931 = vmatprep.subr.mxu0 0.0
    %2932 = vmatpush1.xpose.msra.mxu0 0.0
    %2933 = vmatprep.mubr.f32.mxu0 0.0
    %2934 = vmatmul.mubr.f32.gmra.mrb[0].mxu0 %v2844
    %v2935 = vpop.f32.mrb[0].mxu0
    %v2936 = vadd.f32 %v2867, %v2935
    %v2937 = vpop.f32.mrb[0].mxu0
    %2938 = vmatprep.mubr.f32.mxu0 0.0
    %2939 = vmatmul.mubr.f32.gmra.mrb[0].mxu0 %v2845
    %v2940 = vpop.f32.mrb[0].mxu0
    %v2941 = vadd.f32 %v2867, %v2940
    %v2942 = vpop.f32.mrb[0].mxu0
    %2943 = vdwg.mxu0
    %v2944 = vadd.f32 %v2936, %v210
    %v2945 = vadd.f32 %v2941, %v227
    %v2946 = vld [vmem:[%s5] sm:$0x1]
    %v2947 = vld [vmem:[%s6] sm:$0x1]
    %2948 = vadd.xlane.f32.xlu0 %v2944
    %v2949 = vpop.xlane.xlu0 %2948
    %2950 = vadd.xlane.f32.xlu0 %v2945
    %v2951 = vpop.xlane.xlu0 %2950
    %v2952 = vrcp.pop 128.0
    %v2953 = vmul.f32 %v2949, %v2952
    %v2954 = vmul.f32 %v2951, %v2952
    %v2955 = vsub.f32 %v2944, %v2953
    %v2956 = vsub.f32 %v2945, %v2954
    %v2957 = vmul.f32 %v2955, %v2955
    %v2958 = vmul.f32 %v2956, %v2956
    %2959 = vadd.xlane.f32.xlu0 %v2957
    %v2960 = vpop.xlane.xlu0 %2959
    %2961 = vadd.xlane.f32.xlu0 %v2958
    %v2962 = vpop.xlane.xlu0 %2961
    %v2963 = vmul.f32 %v2960, %v2952
    %v2964 = vmul.f32 %v2962, %v2952
    %v2965 = vadd.f32 %v2963, 1e-05
    %v2966 = vadd.f32 %v2964, 1e-05
    %v2967 = vrsqrt.pop %v2965
    %v2968 = vrsqrt.pop %v2966
    %v2969 = vmul.f32 %v2955, %v2967
    %v2970 = vmul.f32 %v2956, %v2968
    %v2972 = vlaneseq
    %v2973 = vshrl.u32 %v2972, 7
    %v2974 = vsub.s32 0, %v2973
    %v2975 = vrot.slane %v2946, %v2974
    %v2977 = vmul.f32 %v2969, %v2975
    %v2978 = vmul.f32 %v2970, %v2975
    %v2980 = vlaneseq
    %v2981 = vshrl.u32 %v2980, 7
    %v2982 = vsub.s32 0, %v2981
    %v2983 = vrot.slane %v2947, %v2982
    %v2985 = vadd.f32 %v2977, %v2983
    %v2986 = vadd.f32 %v2978, %v2983
    %v2987 = vld [vmem:[#allocation8] sm:$0xff]
    %v2988 = vld [vmem:[#allocation8 + $0x8] sm:$0xff]
    %v2989 = vld [vmem:[#allocation8 + $0x10] sm:$0xff]
    %v2990 = vld [vmem:[#allocation8 + $0x18] sm:$0xff]
    %v2991 = vld [vmem:[#allocation8 + $0x20] sm:$0xff]
    %v2992 = vld [vmem:[#allocation8 + $0x28] sm:$0xff]
    %v2993 = vld [vmem:[#allocation8 + $0x30] sm:$0xff]
    %v2994 = vld [vmem:[#allocation8 + $0x38] sm:$0xff]
    %v2995 = vld [vmem:[#allocation8 + $0x40] sm:$0xff]
    %v2996 = vld [vmem:[#allocation8 + $0x48] sm:$0xff]
    %v2997 = vld [vmem:[#allocation8 + $0x50] sm:$0xff]
    %v2998 = vld [vmem:[#allocation8 + $0x58] sm:$0xff]
    %v2999 = vld [vmem:[#allocation8 + $0x60] sm:$0xff]
    %v3000 = vld [vmem:[#allocation8 + $0x68] sm:$0xff]
    %v3001 = vld [vmem:[#allocation8 + $0x70] sm:$0xff]
    %v3002 = vld [vmem:[#allocation8 + $0x78] sm:$0xff]
    %v3003 = vld [vmem:[#allocation8 + $0x80] sm:$0xff]
    %v3004 = vld [vmem:[#allocation8 + $0x88] sm:$0xff]
    %v3005 = vld [vmem:[#allocation8 + $0x90] sm:$0xff]
    %v3006 = vld [vmem:[#allocation8 + $0x98] sm:$0xff]
    %v3007 = vld [vmem:[#allocation8 + $0xa0] sm:$0xff]
    %v3008 = vld [vmem:[#allocation8 + $0xa8] sm:$0xff]
    %v3009 = vld [vmem:[#allocation8 + $0xb0] sm:$0xff]
    %v3010 = vld [vmem:[#allocation8 + $0xb8] sm:$0xff]
    %v3011 = vld [vmem:[#allocation8 + $0xc0] sm:$0xff]
    %v3012 = vld [vmem:[#allocation8 + $0xc8] sm:$0xff]
    %v3013 = vld [vmem:[#allocation8 + $0xd0] sm:$0xff]
    %v3014 = vld [vmem:[#allocation8 + $0xd8] sm:$0xff]
    %v3015 = vld [vmem:[#allocation8 + $0xe0] sm:$0xff]
    %v3016 = vld [vmem:[#allocation8 + $0xe8] sm:$0xff]
    %v3017 = vld [vmem:[#allocation8 + $0xf0] sm:$0xff]
    %v3018 = vld [vmem:[#allocation8 + $0xf8] sm:$0xff]
    %v3019 = vld [vmem:[%s8] sm:$0x3]
    %v3021 = vlaneseq
    %v3022 = vshrl.u32 %v3021, 7
    %v3023 = vsub.s32 0, %v3022
    %v3024 = vrot.slane %v3019, %v3023
    %v3025 = vlaneseq
    %v3026 = vshrl.u32 %v3025, 7
    %v3027 = vsub.s32 1, %v3026
    %v3028 = vrot.slane %v3019, %v3027
    %3031 = vmatprep.subr.mxu0 0.0
    %3032 = vmatpush1.xpose.msra.mxu0 %v2987
    %3033 = vmatprep.subr.mxu0 0.0
    %3034 = vmatpush1.xpose.msra.mxu0 %v2988
    %3035 = vmatprep.subr.mxu0 0.0
    %3036 = vmatpush1.xpose.msra.mxu0 %v2989
    %3037 = vmatprep.subr.mxu0 0.0
    %3038 = vmatpush1.xpose.msra.mxu0 %v2990
    %3039 = vmatprep.subr.mxu0 0.0
    %3040 = vmatpush1.xpose.msra.mxu0 %v2991
    %3041 = vmatprep.subr.mxu0 0.0
    %3042 = vmatpush1.xpose.msra.mxu0 %v2992
    %3043 = vmatprep.subr.mxu0 0.0
    %3044 = vmatpush1.xpose.msra.mxu0 %v2993
    %3045 = vmatprep.subr.mxu0 0.0
    %3046 = vmatpush1.xpose.msra.mxu0 %v2994
    %3047 = vmatprep.subr.mxu0 0.0
    %3048 = vmatpush1.xpose.msra.mxu0 %v2995
    %3049 = vmatprep.subr.mxu0 0.0
    %3050 = vmatpush1.xpose.msra.mxu0 %v2996
    %3051 = vmatprep.subr.mxu0 0.0
    %3052 = vmatpush1.xpose.msra.mxu0 %v2997
    %3053 = vmatprep.subr.mxu0 0.0
    %3054 = vmatpush1.xpose.msra.mxu0 %v2998
    %3055 = vmatprep.subr.mxu0 0.0
    %3056 = vmatpush1.xpose.msra.mxu0 %v2999
    %3057 = vmatprep.subr.mxu0 0.0
    %3058 = vmatpush1.xpose.msra.mxu0 %v3000
    %3059 = vmatprep.subr.mxu0 0.0
    %3060 = vmatpush1.xpose.msra.mxu0 %v3001
    %3061 = vmatprep.subr.mxu0 0.0
    %3062 = vmatpush1.xpose.msra.mxu0 %v3002
    %3063 = vmatprep.subr.mxu0 0.0
    %3064 = vmatpush1.xpose.msra.mxu0 %v3003
    %3065 = vmatprep.subr.mxu0 0.0
    %3066 = vmatpush1.xpose.msra.mxu0 %v3004
    %3067 = vmatprep.subr.mxu0 0.0
    %3068 = vmatpush1.xpose.msra.mxu0 %v3005
    %3069 = vmatprep.subr.mxu0 0.0
    %3070 = vmatpush1.xpose.msra.mxu0 %v3006
    %3071 = vmatprep.subr.mxu0 0.0
    %3072 = vmatpush1.xpose.msra.mxu0 %v3007
    %3073 = vmatprep.subr.mxu0 0.0
    %3074 = vmatpush1.xpose.msra.mxu0 %v3008
    %3075 = vmatprep.subr.mxu0 0.0
    %3076 = vmatpush1.xpose.msra.mxu0 %v3009
    %3077 = vmatprep.subr.mxu0 0.0
    %3078 = vmatpush1.xpose.msra.mxu0 %v3010
    %3079 = vmatprep.subr.mxu0 0.0
    %3080 = vmatpush1.xpose.msra.mxu0 %v3011
    %3081 = vmatprep.subr.mxu0 0.0
    %3082 = vmatpush1.xpose.msra.mxu0 %v3012
    %3083 = vmatprep.subr.mxu0 0.0
    %3084 = vmatpush1.xpose.msra.mxu0 %v3013
    %3085 = vmatprep.subr.mxu0 0.0
    %3086 = vmatpush1.xpose.msra.mxu0 %v3014
    %3087 = vmatprep.subr.mxu0 0.0
    %3088 = vmatpush1.xpose.msra.mxu0 %v3015
    %3089 = vmatprep.subr.mxu0 0.0
    %3090 = vmatpush1.xpose.msra.mxu0 %v3016
    %3091 = vmatprep.subr.mxu0 0.0
    %3092 = vmatpush1.xpose.msra.mxu0 %v3017
    %3093 = vmatprep.subr.mxu0 0.0
    %3094 = vmatpush1.xpose.msra.mxu0 %v3018
    %3095 = vmatprep.mubr.f32.mxu0 0.0
    %3096 = vmatmul.mubr.f32.gmra.mrb[0].mxu0 %v2985
    %v3097 = vpop.f32.mrb[0].mxu0
    %v3098 = vadd.f32 %v3024, %v3097
    %v3099 = vpop.f32.mrb[0].mxu0
    %v3100 = vadd.f32 %v3028, %v3099
    %3101 = vmatprep.mubr.f32.mxu0 0.0
    %3102 = vmatmul.mubr.f32.gmra.mrb[0].mxu0 %v2986
    %v3103 = vpop.f32.mrb[0].mxu0
    %v3104 = vadd.f32 %v3024, %v3103
    %v3105 = vpop.f32.mrb[0].mxu0
    %v3106 = vadd.f32 %v3028, %v3105
    %3107 = vdwg.mxu0
    %v3108 = vmax.f32 %v3098, 0.0
    %v3109 = vmax.f32 %v3100, 0.0
    %v3110 = vmax.f32 %v3104, 0.0
    %v3111 = vmax.f32 %v3106, 0.0
    %v3112 = vld [vmem:[#allocation10] sm:$0xff]
    %v3113 = vld [vmem:[#allocation10 + $0x8] sm:$0xff]
    %v3114 = vld [vmem:[#allocation10 + $0x10] sm:$0xff]
    %v3115 = vld [vmem:[#allocation10 + $0x18] sm:$0xff]
    %v3116 = vld [vmem:[#allocation10 + $0x20] sm:$0xff]
    %v3117 = vld [vmem:[#allocation10 + $0x28] sm:$0xff]
    %v3118 = vld [vmem:[#allocation10 + $0x30] sm:$0xff]
    %v3119 = vld [vmem:[#allocation10 + $0x38] sm:$0xff]
    %v3120 = vld [vmem:[#allocation10 + $0x40] sm:$0xff]
    %v3121 = vld [vmem:[#allocation10 + $0x48] sm:$0xff]
    %v3122 = vld [vmem:[#allocation10 + $0x50] sm:$0xff]
    %v3123 = vld [vmem:[#allocation10 + $0x58] sm:$0xff]
    %v3124 = vld [vmem:[#allocation10 + $0x60] sm:$0xff]
    %v3125 = vld [vmem:[#allocation10 + $0x68] sm:$0xff]
    %v3126 = vld [vmem:[#allocation10 + $0x70] sm:$0xff]
    %v3127 = vld [vmem:[#allocation10 + $0x78] sm:$0xff]
    %v3128 = vld [vmem:[#allocation10 + $0x80] sm:$0xff]
    %v3129 = vld [vmem:[#allocation10 + $0x88] sm:$0xff]
    %v3130 = vld [vmem:[#allocation10 + $0x90] sm:$0xff]
    %v3131 = vld [vmem:[#allocation10 + $0x98] sm:$0xff]
    %v3132 = vld [vmem:[#allocation10 + $0xa0] sm:$0xff]
    %v3133 = vld [vmem:[#allocation10 + $0xa8] sm:$0xff]
    %v3134 = vld [vmem:[#allocation10 + $0xb0] sm:$0xff]
    %v3135 = vld [vmem:[#allocation10 + $0xb8] sm:$0xff]
    %v3136 = vld [vmem:[#allocation10 + $0xc0] sm:$0xff]
    %v3137 = vld [vmem:[#allocation10 + $0xc8] sm:$0xff]
    %v3138 = vld [vmem:[#allocation10 + $0xd0] sm:$0xff]
    %v3139 = vld [vmem:[#allocation10 + $0xd8] sm:$0xff]
    %v3140 = vld [vmem:[#allocation10 + $0xe0] sm:$0xff]
    %v3141 = vld [vmem:[#allocation10 + $0xe8] sm:$0xff]
    %v3142 = vld [vmem:[#allocation10 + $0xf0] sm:$0xff]
    %v3143 = vld [vmem:[#allocation10 + $0xf8] sm:$0xff]
    %v3144 = vld [vmem:[%s10] sm:$0x1]
    %v3146 = vlaneseq
    %v3147 = vshrl.u32 %v3146, 7
    %v3148 = vsub.s32 0, %v3147
    %v3149 = vrot.slane %v3144, %v3148
    %3151 = vmatprep.subr.mxu0 %v3113
    %3152 = vmatpush1.xpose.msra.mxu0 %v3112
    %3153 = vmatprep.subr.mxu0 %v3115
    %3154 = vmatpush1.xpose.msra.mxu0 %v3114
    %3155 = vmatprep.subr.mxu0 %v3117
    %3156 = vmatpush1.xpose.msra.mxu0 %v3116
    %3157 = vmatprep.subr.mxu0 %v3119
    %3158 = vmatpush1.xpose.msra.mxu0 %v3118
    %3159 = vmatprep.subr.mxu0 %v3121
    %3160 = vmatpush1.xpose.msra.mxu0 %v3120
    %3161 = vmatprep.subr.mxu0 %v3123
    %3162 = vmatpush1.xpose.msra.mxu0 %v3122
    %3163 = vmatprep.subr.mxu0 %v3125
    %3164 = vmatpush1.xpose.msra.mxu0 %v3124
    %3165 = vmatprep.subr.mxu0 %v3127
    %3166 = vmatpush1.xpose.msra.mxu0 %v3126
    %3167 = vmatprep.subr.mxu0 %v3129
    %3168 = vmatpush1.xpose.msra.mxu0 %v3128
    %3169 = vmatprep.subr.mxu0 %v3131
    %3170 = vmatpush1.xpose.msra.mxu0 %v3130
    %3171 = vmatprep.subr.mxu0 %v3133
    %3172 = vmatpush1.xpose.msra.mxu0 %v3132
    %3173 = vmatprep.subr.mxu0 %v3135
    %3174 = vmatpush1.xpose.msra.mxu0 %v3134
    %3175 = vmatprep.subr.mxu0 %v3137
    %3176 = vmatpush1.xpose.msra.mxu0 %v3136
    %3177 = vmatprep.subr.mxu0 %v3139
    %3178 = vmatpush1.xpose.msra.mxu0 %v3138
    %3179 = vmatprep.subr.mxu0 %v3141
    %3180 = vmatpush1.xpose.msra.mxu0 %v3140
    %3181 = vmatprep.subr.mxu0 %v3143
    %3182 = vmatpush1.xpose.msra.mxu0 %v3142
    %3183 = vmatprep.subr.mxu0 0.0
    %3184 = vmatpush1.xpose.msra.mxu0 0.0
    %3185 = vmatprep.subr.mxu0 0.0
    %3186 = vmatpush1.xpose.msra.mxu0 0.0
    %3187 = vmatprep.subr.mxu0 0.0
    %3188 = vmatpush1.xpose.msra.mxu0 0.0
    %3189 = vmatprep.subr.mxu0 0.0
    %3190 = vmatpush1.xpose.msra.mxu0 0.0
    %3191 = vmatprep.subr.mxu0 0.0
    %3192 = vmatpush1.xpose.msra.mxu0 0.0
    %3193 = vmatprep.subr.mxu0 0.0
    %3194 = vmatpush1.xpose.msra.mxu0 0.0
    %3195 = vmatprep.subr.mxu0 0.0
    %3196 = vmatpush1.xpose.msra.mxu0 0.0
    %3197 = vmatprep.subr.mxu0 0.0
    %3198 = vmatpush1.xpose.msra.mxu0 0.0
    %3199 = vmatprep.subr.mxu0 0.0
    %3200 = vmatpush1.xpose.msra.mxu0 0.0
    %3201 = vmatprep.subr.mxu0 0.0
    %3202 = vmatpush1.xpose.msra.mxu0 0.0
    %3203 = vmatprep.subr.mxu0 0.0
    %3204 = vmatpush1.xpose.msra.mxu0 0.0
    %3205 = vmatprep.subr.mxu0 0.0
    %3206 = vmatpush1.xpose.msra.mxu0 0.0
    %3207 = vmatprep.subr.mxu0 0.0
    %3208 = vmatpush1.xpose.msra.mxu0 0.0
    %3209 = vmatprep.subr.mxu0 0.0
    %3210 = vmatpush1.xpose.msra.mxu0 0.0
    %3211 = vmatprep.subr.mxu0 0.0
    %3212 = vmatpush1.xpose.msra.mxu0 0.0
    %3213 = vmatprep.subr.mxu0 0.0
    %3214 = vmatpush1.xpose.msra.mxu0 0.0
    %3215 = vmatprep.mubr.f32.mxu0 %v3109
    %3216 = vmatmul.mubr.f32.gmra.mrb[0].mxu0 %v3108
    %v3217 = vpop.f32.mrb[0].mxu0
    %v3218 = vadd.f32 %v3149, %v3217
    %v3219 = vpop.f32.mrb[0].mxu0
    %3220 = vmatprep.mubr.f32.mxu0 %v3111
    %3221 = vmatmul.mubr.f32.gmra.mrb[0].mxu0 %v3110
    %v3222 = vpop.f32.mrb[0].mxu0
    %v3223 = vadd.f32 %v3149, %v3222
    %v3224 = vpop.f32.mrb[0].mxu0
    %3225 = vdwg.mxu0
    %v3226 = vadd.f32 %v3218, %v2985
    %v3227 = vadd.f32 %v3223, %v2986
    %v3228 = vld [vmem:[%s11] sm:$0x1]
    %v3229 = vld [vmem:[%s12] sm:$0x1]
    %3230 = vadd.xlane.f32.xlu0 %v3226
    %v3231 = vpop.xlane.xlu0 %3230
    %3232 = vadd.xlane.f32.xlu0 %v3227
    %v3233 = vpop.xlane.xlu0 %3232
    %v3234 = vmul.f32 %v3231, %v2952
    %v3235 = vmul.f32 %v3233, %v2952
    %v3236 = vsub.f32 %v3226, %v3234
    %v3237 = vsub.f32 %v3227, %v3235
    %v3238 = vmul.f32 %v3236, %v3236
    %v3239 = vmul.f32 %v3237, %v3237
    %3240 = vadd.xlane.f32.xlu0 %v3238
    %v3241 = vpop.xlane.xlu0 %3240
    %3242 = vadd.xlane.f32.xlu0 %v3239
    %v3243 = vpop.xlane.xlu0 %3242
    %v3244 = vmul.f32 %v3241, %v2952
    %v3245 = vmul.f32 %v3243, %v2952
    %v3246 = vadd.f32 %v3244, 1e-05
    %v3247 = vadd.f32 %v3245, 1e-05
    %v3248 = vrsqrt.pop %v3246
    %v3249 = vrsqrt.pop %v3247
    %v3250 = vmul.f32 %v3236, %v3248
    %v3251 = vmul.f32 %v3237, %v3249
    %v3253 = vlaneseq
    %v3254 = vshrl.u32 %v3253, 7
    %v3255 = vsub.s32 0, %v3254
    %v3256 = vrot.slane %v3228, %v3255
    %v3258 = vmul.f32 %v3250, %v3256
    %v3259 = vmul.f32 %v3251, %v3256
    %v3261 = vlaneseq
    %v3262 = vshrl.u32 %v3261, 7
    %v3263 = vsub.s32 0, %v3262
    %v3264 = vrot.slane %v3229, %v3263
    %v3266 = vadd.f32 %v3258, %v3264
    %v3267 = vadd.f32 %v3259, %v3264
    %v3270 = vcombine.high %v3266, %v3266
    %v3272 = vunpack.c.l.s4 1983009808
    %v3273 = vunpack.c.0.s8 %v3272
    %v3274 = vlaneseq
    %v3275 = vshrl.u32 %v3274, 7
    %v3276 = vsub.s32 %v3273, %v3275
    %v3277 = vrot.slane %v3266, %v3276
    %v3279 = vunpack.c.l.s4 1983009808
    %v3280 = vunpack.c.0.s8 %v3279
    %v3281 = vlaneseq
    %v3282 = vshrl.u32 %v3281, 7
    %v3283 = vsub.s32 %v3280, %v3282
    %v3284 = vrot.slane %v3270, %v3283
    %v3285 = vcombine.high %v3277, %v3277
    %v3286 = vcombine.high %v3284, %v3284
    %v3287 = vcombine.high %v3267, %v3267
    %v3289 = vunpack.c.l.s4 1983009808
    %v3290 = vunpack.c.0.s8 %v3289
    %v3291 = vlaneseq
    %v3292 = vshrl.u32 %v3291, 7
    %v3293 = vsub.s32 %v3290, %v3292
    %v3294 = vrot.slane %v3267, %v3293
    %v3296 = vunpack.c.l.s4 1983009808
    %v3297 = vunpack.c.0.s8 %v3296
    %v3298 = vlaneseq
    %v3299 = vshrl.u32 %v3298, 7
    %v3300 = vsub.s32 %v3297, %v3299
    %v3301 = vrot.slane %v3287, %v3300
    %v3302 = vcombine.high %v3294, %v3294
    %v3303 = vcombine.high %v3301, %v3301
    %3312 = vst [vmem:[#allocation11] sm:$0x3] %v3277
    %3313 = vst [vmem:[#allocation11 + $0x2] sm:$0x3] %v3285
    %3314 = vst [vmem:[#allocation11 + $0x4] sm:$0x3] %v3284
    %3315 = vst [vmem:[#allocation11 + $0x6] sm:$0x3] %v3286
    %3316 = vst [vmem:[#allocation11 + $0x8] sm:$0x3] %v3294
    %3317 = vst [vmem:[#allocation11 + $0xa] sm:$0x3] %v3302
    %3318 = vst [vmem:[#allocation11 + $0xc] sm:$0x3] %v3301
    %3319 = vst [vmem:[#allocation11 + $0xe] sm:$0x3] %v3303
    // Predicated region
    $region74: #{tpu_custom_call.1} parent=1 // pred_check
      _
    $region75: #{tpu_custom_call.1} parent=1 // pred_check_branch
      %3321 = sbr.rel (0) target = $region77
    $region76: #{tpu_custom_call.1} parent=1 // pred_region
      %s3323 = ssub.s32 256, 256
      %3324 = vsyncadd [#allocation4], %s3323
      %s3325 = sshll.u32 [#allocation11], 4
      %s3326 = int_to_ptr.vmem [resolvable:$true] %s3325
      %3331 = dma.vmem_to_hbm [thread:$0]  %s3326, 256, %s13, [#allocation4], 32, 32, 2
    $region77: #{tpu_custom_call.1} parent=1 // pred_fallthru
      _
    // Predicated region
    $region78: #{tpu_custom_call.1} parent=1 // pred_check
      _
    $region79: #{tpu_custom_call.1} parent=1 // pred_check_branch
      %3333 = sbr.rel (0) target = $region81
    $region80: #{tpu_custom_call.1} parent=1 // pred_region
      %3334 = dma.done [#allocation4], 256
    $region81: #{tpu_custom_call.1} parent=1 // pred_fallthru
      _
    %3335 = vsyncpa [#allocation3], 1
    %3336 = vsyncpa [#allocation6], 1
    %3337 = vsyncpa [#allocation9], 1
    %3338 = vsyncpa [#allocation4], 1

</llo_original>
